<compile_context>
chip_gen: v7x
topology: tpu7x:2x2x1
jax: 0.10.0
libtpu: 0.0.40
codegen_flags: <defaults>
</compile_context>

<pallas_src>
import jax
import jax.numpy as jnp
from jax.experimental import pallas as pl
from jax.experimental.pallas import tpu as pltpu


def _spectral_corner_kernel(xr_ref, xi_ref, wr_ref, wi_ref, or_ref, oi_ref):
    """out[m,b,o] = sum_i x[m,b,i] * w[m,i,o] (complex), via 3 real MXU matmuls.

    Block shapes (the leading corner axis is squeezed away by the BlockSpec):
      x*: (TM, B, Ci)   w*: (TM, Ci, Co)   out*: (TM, B, Co)
    """
    xr = xr_ref[...]
    xi = xi_ref[...]
    wr = wr_ref[...]
    wi = wi_ref[...]

    def mm(a, b):
        # Mode-batched matmul on the MXU (batch dim m leading), fp32 accumulate.
        return jnp.einsum("mbi,mio->mbo", a, b,
                          preferred_element_type=jnp.float32)

    # (xr + i*xi)(wr + i*wi) via Gauss:
    #   k1 = (xr+xi)@wr, k2 = xr@(wi-wr), k3 = xi@(wr+wi)
    #   real = k1 - k3, imag = k1 + k2
    k1 = mm(xr + xi, wr)
    k2 = mm(xr, wi - wr)
    k3 = mm(xi, wr + wi)
    or_ref[...] = k1 - k3
    oi_ref[...] = k1 + k2


def _pad2_bytes(r, c, itemsize=4):
    """Bytes of an (r, c) fp32 tile after (8, 128) vreg padding."""
    return (-(-r // 8) * 8) * (-(-c // 128) * 128) * itemsize


def _pick_mode_tile(M, B, Ci, Co, budget_bytes=40 * 1024 * 1024):
    """Largest mode-tile whose double-buffered VMEM blocks fit the budget
    (budget chosen so it also fits v7x's 64 MiB physical VMEM with headroom)."""
    per_mode = 2 * (_pad2_bytes(B, Ci) + _pad2_bytes(Ci, Co) + _pad2_bytes(B, Co))
    per_mode *= 2  # double buffering
    return int(max(1, min(M, budget_bytes // per_mode)))


def _corner_multiply(xr, xi, wr, wi):
    """xr/xi: (2, M, B, Ci); wr/wi: (2, M, Ci, Co)  ->  (out_r, out_i): (2, M, B, Co)."""
    _, M, B, Ci = xr.shape
    Co = wr.shape[-1]

    tm = _pick_mode_tile(M, B, Ci, Co)
    grid = (2, pl.cdiv(M, tm))

    x_spec = pl.BlockSpec((None, tm, B, Ci), lambda c, m: (c, m, 0, 0))
    w_spec = pl.BlockSpec((None, tm, Ci, Co), lambda c, m: (c, m, 0, 0))
    o_spec = pl.BlockSpec((None, tm, B, Co), lambda c, m: (c, m, 0, 0))
    out_sds = jax.ShapeDtypeStruct((2, M, B, Co), jnp.float32)

    return pl.pallas_call(
        _spectral_corner_kernel,
        grid=grid,
        in_specs=[x_spec, x_spec, w_spec, w_spec],
        out_specs=(o_spec, o_spec),
        out_shape=(out_sds, out_sds),
        compiler_params=pltpu.CompilerParams(
            dimension_semantics=("parallel", "parallel"),
            vmem_limit_bytes=48 * 1024 * 1024,
        ),
    )(xr, xi, wr, wi)


def spectral_conv2d(x, w1_r, w1_i, w2_r, w2_i, *, modes1, modes2):
    """JAX/Pallas port of SpectralConv2d.forward.  x: (B, C_in, H, W) float32."""
    B, Ci, H, W = x.shape
    Co = w1_r.shape[1]
    M = modes1 * modes2

    # TODO(synk): the FFTs stay in XLA (jnp.fft) — there is no Pallas FFT primitive.
    x_hat = jnp.fft.rfft2(x)                    # (B, Ci, H, Wf) complex64
    Wf = x_hat.shape[-1]

    # Gather the two retained mode-corner blocks and stack them on a leading
    # size-2 axis so ONE pallas_call handles both corners.  Modes are flattened
    # to a leading batch axis M for the mode-batched MXU contraction.
    top = x_hat[:, :, :modes1, :modes2]
    bot = x_hat[:, :, H - modes1:, :modes2]
    xc = jnp.stack([top, bot], axis=0)                                # (2, B, Ci, m1, m2)
    xc = xc.reshape(2, B, Ci, M).transpose(0, 3, 1, 2)                # (2, M, B, Ci)
    xr = jnp.real(xc).astype(jnp.float32)
    xi = jnp.imag(xc).astype(jnp.float32)

    wr = jnp.stack([w1_r, w2_r], axis=0).astype(jnp.float32)          # (2, Ci, Co, m1, m2)
    wi = jnp.stack([w1_i, w2_i], axis=0).astype(jnp.float32)
    wr = wr.reshape(2, Ci, Co, M).transpose(0, 3, 1, 2)               # (2, M, Ci, Co)
    wi = wi.reshape(2, Ci, Co, M).transpose(0, 3, 1, 2)

    out_r, out_i = _corner_multiply(xr, xi, wr, wi)                   # (2, M, B, Co)
    out = jax.lax.complex(out_r, out_i)                               # complex64
    out = out.transpose(0, 2, 3, 1).reshape(2, B, Co, modes1, modes2)

    # Assemble the truncated spectrum without a full zero spectrum + scatter
    # copies: rows [0:modes1] and [H-modes1:H] of the first `modes2` columns
    # carry the two corner blocks, everything else is zero.
    if H >= 2 * modes1:
        zero_rows = jnp.zeros((B, Co, H - 2 * modes1, modes2), out.dtype)
        left_cols = jnp.concatenate([out[0], zero_rows, out[1]], axis=2)  # (B, Co, H, modes2)
        out_hat = jnp.pad(left_cols, ((0, 0), (0, 0), (0, 0), (0, Wf - modes2)))
    else:
        # Degenerate overlap case: match PyTorch's "second write wins" exactly.
        out_hat = jnp.zeros((B, Co, H, Wf), out.dtype)
        out_hat = out_hat.at[:, :, :modes1, :modes2].set(out[0])
        out_hat = out_hat.at[:, :, H - modes1:, :modes2].set(out[1])

    return jnp.fft.irfft2(out_hat, s=(H, W))                          # (B, Co, H, W) float32


if __name__ == "__main__":
    B, Ci, Co, H, W = 2, 4, 4, 16, 16
    modes1, modes2 = 4, 4
    scale = 1.0 / (Ci * Co)

    key = jax.random.PRNGKey(0)
    kx, k1r, k1i, k2r, k2i = jax.random.split(key, 5)
    x = jax.random.normal(kx, (B, Ci, H, W), dtype=jnp.float32)
    # torch.rand(..., dtype=cdouble) samples real & imag parts U[0,1); mirror that.
    w1_r = scale * jax.random.uniform(k1r, (Ci, Co, modes1, modes2), dtype=jnp.float32)
    w1_i = scale * jax.random.uniform(k1i, (Ci, Co, modes1, modes2), dtype=jnp.float32)
    w2_r = scale * jax.random.uniform(k2r, (Ci, Co, modes1, modes2), dtype=jnp.float32)
    w2_i = scale * jax.random.uniform(k2i, (Ci, Co, modes1, modes2), dtype=jnp.float32)

    fwd = jax.jit(
        lambda x, a, b, c, d: spectral_conv2d(x, a, b, c, d, modes1=modes1, modes2=modes2)
    )
    y = jax.block_until_ready(fwd(x, w1_r, w1_i, w2_r, w2_i))
    assert y.shape == (B, Co, H, W), y.shape

    # Pure-JAX reference (same math, no Pallas) for a correctness check.
    def ref(x):
        x_hat = jnp.fft.rfft2(x)
        w1 = (w1_r + 1j * w1_i).astype(jnp.complex64)
        w2 = (w2_r + 1j * w2_i).astype(jnp.complex64)
        out_hat = jnp.zeros((B, Co, H, x_hat.shape[-1]), jnp.complex64)
        out_hat = out_hat.at[:, :, :modes1, :modes2].set(
            jnp.einsum('Bikl,iokl->Bokl', x_hat[:, :, :modes1, :modes2], w1))
        out_hat = out_hat.at[:, :, H - modes1:, :modes2].set(
            jnp.einsum('Bikl,iokl->Bokl', x_hat[:, :, H - modes1:, :modes2], w2))
        return jnp.fft.irfft2(out_hat, s=(H, W))

    y_ref = jax.block_until_ready(jax.jit(ref)(x))
    # Tolerance: the PyTorch spec is complex128; here everything is fp32 and the
    # channel contraction runs on the MXU (default matmul precision), so allow a
    # slightly looser bound than pure-fp32-VPU math.
    err = float(jnp.max(jnp.abs(y - y_ref)))
    assert jnp.allclose(y, y_ref, atol=5e-3, rtol=5e-3), err
    print("KERNEL_OK")
</pallas_src>

<mosaic_0001>
module attributes {stable_mosaic.version = 11 : i64} {
  func.func @_spectral_corner_kernel(%arg0: i32, %arg1: i32, %arg2: memref<1x16x2x4xf32, #tpu.memory_space<vmem>>, %arg3: memref<1x16x2x4xf32, #tpu.memory_space<vmem>>, %arg4: memref<1x16x4x4xf32, #tpu.memory_space<vmem>>, %arg5: memref<1x16x4x4xf32, #tpu.memory_space<vmem>>, %arg6: memref<1x16x2x4xf32, #tpu.memory_space<vmem>>, %arg7: memref<1x16x2x4xf32, #tpu.memory_space<vmem>>) attributes {dimension_semantics = [#tpu.dimension_semantics<parallel>, #tpu.dimension_semantics<parallel>], iteration_bounds = array<i64: 2, 1>, scalar_prefetch = 0 : i64, scratch_operands = 0 : i64, tpu.core_type = #tpu.core_type<tc>, window_params = [{transform_indices = @transform_0, window_bounds = array<i64: 1, 16, 2, 4>}, {transform_indices = @transform_1, window_bounds = array<i64: 1, 16, 2, 4>}, {transform_indices = @transform_2, window_bounds = array<i64: 1, 16, 4, 4>}, {transform_indices = @transform_3, window_bounds = array<i64: 1, 16, 4, 4>}, {transform_indices = @transform_4, window_bounds = array<i64: 1, 16, 2, 4>}, {transform_indices = @transform_5, window_bounds = array<i64: 1, 16, 2, 4>}]} {
    %c0 = arith.constant 0 : index
    %c0_0 = arith.constant 0 : index
    %c0_1 = arith.constant 0 : index
    %c0_2 = arith.constant 0 : index
    %0 = vector.load %arg2[%c0, %c0_0, %c0_1, %c0_2] : memref<1x16x2x4xf32, #tpu.memory_space<vmem>>, vector<1x16x2x4xf32>
    %1 = vector.shape_cast %0 : vector<1x16x2x4xf32> to vector<16x2x4xf32>
    %c0_3 = arith.constant 0 : index
    %c0_4 = arith.constant 0 : index
    %c0_5 = arith.constant 0 : index
    %c0_6 = arith.constant 0 : index
    %2 = vector.load %arg3[%c0_3, %c0_4, %c0_5, %c0_6] : memref<1x16x2x4xf32, #tpu.memory_space<vmem>>, vector<1x16x2x4xf32>
    %3 = vector.shape_cast %2 : vector<1x16x2x4xf32> to vector<16x2x4xf32>
    %c0_7 = arith.constant 0 : index
    %c0_8 = arith.constant 0 : index
    %c0_9 = arith.constant 0 : index
    %c0_10 = arith.constant 0 : index
    %4 = vector.load %arg4[%c0_7, %c0_8, %c0_9, %c0_10] : memref<1x16x4x4xf32, #tpu.memory_space<vmem>>, vector<1x16x4x4xf32>
    %5 = vector.shape_cast %4 : vector<1x16x4x4xf32> to vector<16x4x4xf32>
    %c0_11 = arith.constant 0 : index
    %c0_12 = arith.constant 0 : index
    %c0_13 = arith.constant 0 : index
    %c0_14 = arith.constant 0 : index
    %6 = vector.load %arg5[%c0_11, %c0_12, %c0_13, %c0_14] : memref<1x16x4x4xf32, #tpu.memory_space<vmem>>, vector<1x16x4x4xf32>
    %7 = vector.shape_cast %6 : vector<1x16x4x4xf32> to vector<16x4x4xf32>
    %8 = arith.addf %1, %3 : vector<16x2x4xf32>
    "tpu.trace_start"() <{level = 10 : i32, message = "mbi,mio->mbo"}> : () -> ()
    %cst = arith.constant dense<0.000000e+00> : vector<16x2x4xf32>
    %9 = tpu.matmul %8, %5, %cst {dimension_numbers = #tpu.dot_dimension_numbers<[2], [1], [1], [2], [0, 0, 0, 1, 1, 2], [0], [0]>} : vector<16x2x4xf32>, vector<16x4x4xf32>, vector<16x2x4xf32> -> vector<16x2x4xf32>
    "tpu.trace_stop"() : () -> ()
    %10 = arith.subf %7, %5 : vector<16x4x4xf32>
    "tpu.trace_start"() <{level = 10 : i32, message = "mbi,mio->mbo"}> : () -> ()
    %cst_15 = arith.constant dense<0.000000e+00> : vector<16x2x4xf32>
    %11 = tpu.matmul %1, %10, %cst_15 {dimension_numbers = #tpu.dot_dimension_numbers<[2], [1], [1], [2], [0, 0, 0, 1, 1, 2], [0], [0]>} : vector<16x2x4xf32>, vector<16x4x4xf32>, vector<16x2x4xf32> -> vector<16x2x4xf32>
    "tpu.trace_stop"() : () -> ()
    %12 = arith.addf %5, %7 : vector<16x4x4xf32>
    "tpu.trace_start"() <{level = 10 : i32, message = "mbi,mio->mbo"}> : () -> ()
    %cst_16 = arith.constant dense<0.000000e+00> : vector<16x2x4xf32>
    %13 = tpu.matmul %3, %12, %cst_16 {dimension_numbers = #tpu.dot_dimension_numbers<[2], [1], [1], [2], [0, 0, 0, 1, 1, 2], [0], [0]>} : vector<16x2x4xf32>, vector<16x4x4xf32>, vector<16x2x4xf32> -> vector<16x2x4xf32>
    "tpu.trace_stop"() : () -> ()
    %14 = arith.subf %9, %13 : vector<16x2x4xf32>
    %c0_17 = arith.constant 0 : index
    %c0_18 = arith.constant 0 : index
    %c0_19 = arith.constant 0 : index
    %c0_20 = arith.constant 0 : index
    %15 = vector.load %arg6[%c0_17, %c0_18, %c0_19, %c0_20] : memref<1x16x2x4xf32, #tpu.memory_space<vmem>>, vector<1x16x2x4xf32>
    %16 = vector.shape_cast %15 : vector<1x16x2x4xf32> to vector<16x2x4xf32>
    %17 = vector.shape_cast %14 : vector<16x2x4xf32> to vector<1x16x2x4xf32>
    tpu.vector_store %arg6[%c0_17, %c0_18, %c0_19, %c0_20], %17 {strides = array<i32>} : memref<1x16x2x4xf32, #tpu.memory_space<vmem>>, vector<1x16x2x4xf32>,
    %18 = arith.addf %9, %11 : vector<16x2x4xf32>
    %c0_21 = arith.constant 0 : index
    %c0_22 = arith.constant 0 : index
    %c0_23 = arith.constant 0 : index
    %c0_24 = arith.constant 0 : index
    %19 = vector.load %arg7[%c0_21, %c0_22, %c0_23, %c0_24] : memref<1x16x2x4xf32, #tpu.memory_space<vmem>>, vector<1x16x2x4xf32>
    %20 = vector.shape_cast %19 : vector<1x16x2x4xf32> to vector<16x2x4xf32>
    %21 = vector.shape_cast %18 : vector<16x2x4xf32> to vector<1x16x2x4xf32>
    tpu.vector_store %arg7[%c0_21, %c0_22, %c0_23, %c0_24], %21 {strides = array<i32>} : memref<1x16x2x4xf32, #tpu.memory_space<vmem>>, vector<1x16x2x4xf32>,
    return
  }
  func.func @transform_0(%arg0: i32, %arg1: i32) -> (i32, i32, i32, i32) {
    %c0_i32 = arith.constant 0 : i32
    %c0_i32_0 = arith.constant 0 : i32
    %c0_i32_1 = arith.constant 0 : i32
    return %arg0, %arg1, %c0_i32, %c0_i32_0 : i32, i32, i32, i32
  }
  func.func @transform_1(%arg0: i32, %arg1: i32) -> (i32, i32, i32, i32) {
    %c0_i32 = arith.constant 0 : i32
    %c0_i32_0 = arith.constant 0 : i32
    %c0_i32_1 = arith.constant 0 : i32
    return %arg0, %arg1, %c0_i32, %c0_i32_0 : i32, i32, i32, i32
  }
  func.func @transform_2(%arg0: i32, %arg1: i32) -> (i32, i32, i32, i32) {
    %c0_i32 = arith.constant 0 : i32
    %c0_i32_0 = arith.constant 0 : i32
    %c0_i32_1 = arith.constant 0 : i32
    return %arg0, %arg1, %c0_i32, %c0_i32_0 : i32, i32, i32, i32
  }
  func.func @transform_3(%arg0: i32, %arg1: i32) -> (i32, i32, i32, i32) {
    %c0_i32 = arith.constant 0 : i32
    %c0_i32_0 = arith.constant 0 : i32
    %c0_i32_1 = arith.constant 0 : i32
    return %arg0, %arg1, %c0_i32, %c0_i32_0 : i32, i32, i32, i32
  }
  func.func @transform_4(%arg0: i32, %arg1: i32) -> (i32, i32, i32, i32) {
    %c0_i32 = arith.constant 0 : i32
    %c0_i32_0 = arith.constant 0 : i32
    %c0_i32_1 = arith.constant 0 : i32
    return %arg0, %arg1, %c0_i32, %c0_i32_0 : i32, i32, i32, i32
  }
  func.func @transform_5(%arg0: i32, %arg1: i32) -> (i32, i32, i32, i32) {
    %c0_i32 = arith.constant 0 : i32
    %c0_i32_0 = arith.constant 0 : i32
    %c0_i32_1 = arith.constant 0 : i32
    return %arg0, %arg1, %c0_i32, %c0_i32_0 : i32, i32, i32, i32
  }
}

</mosaic_0001>

<llo_original>
// kernel: reverse.0
$region0: #{reverse.0}
  %s0 = inlined_call_operand.vmem [shape: f32[2,4,16,7], index: 0, kind: input, shape index: {}]
  %s1 = inlined_call_operand.vmem [shape: f32[2,4,16,7], index: 1, kind: output, shape index: {}]
  $region1: #{reverse.0} parent=0
    #allocation0 [shape = 'u8[65536]{0}', space=vmem, size = 0x10000, scoped, tag = 'operand span for operand 0']
    #allocation1 [shape = 'u8[32768]{0}', space=vmem, size = 0x8000, scoped, tag = 'operand span for operand 1']
    %s2 = scalar_lea.vmem [#allocation0], 8
    // Predicated region
    $region2: #{reverse.0} parent=1 // pred_check
      _
    $region3: #{reverse.0} parent=1 // pred_check_branch
      %4 = sbr.rel (0) target = $region5
    $region4: #{reverse.0} parent=1 // pred_region
      // Predicated region
      $region6: #{reverse.0} parent=4 // pred_check
        _
      $region7: #{reverse.0} parent=4 // pred_check_branch
        %6 = sbr.rel (0) target = $region9
      $region8: #{reverse.0} parent=4 // pred_region
        // Predicated region
        $region21: #{reverse.0} parent=8 // pred_check
          _
        $region22: #{reverse.0} parent=8 // pred_check_branch
          %35 = sbr.rel (0) target = $region24
        $region23: #{reverse.0} parent=8 // pred_region
          loop: start=0, step=1, limit=1
          $region25: #{reverse.0} parent=23 // loop_pre_header
            _
          $region26: #{reverse.0} parent=23 // loop_header
            %s37 = sphi 0, %s41
            %p38 = scmp.ge.s32.totalorder %s37, 1
            %s42 = sphi %s0, %s0
            %s43 = sphi %s2, %s2
          $region27: #{reverse.0} parent=23 // loop_header_branch
            %40 = sbr.rel (%p38) target = $region31
          $region28: #{reverse.0} parent=23 // loop_body
            %v44 = vld [vmem:[%s42] sm:$0xff]
            %45 = vst [vmem:[%s43] sm:$0xff] %v44
            %v46 = vld [vmem:[%s42 + $0x8] sm:$0xff]
            %47 = vst [vmem:[%s43 + $0x10] sm:$0xff] %v46
            %v48 = vld [vmem:[%s42 + $0x10] sm:$0xff]
            %49 = vst [vmem:[%s43 + $0x20] sm:$0xff] %v48
            %v50 = vld [vmem:[%s42 + $0x18] sm:$0xff]
            %51 = vst [vmem:[%s43 + $0x30] sm:$0xff] %v50
            %v52 = vld [vmem:[%s42 + $0x20] sm:$0xff]
            %53 = vst [vmem:[%s43 + $0x40] sm:$0xff] %v52
            %v54 = vld [vmem:[%s42 + $0x28] sm:$0xff]
            %55 = vst [vmem:[%s43 + $0x50] sm:$0xff] %v54
            %v56 = vld [vmem:[%s42 + $0x30] sm:$0xff]
            %57 = vst [vmem:[%s43 + $0x60] sm:$0xff] %v56
            %v58 = vld [vmem:[%s42 + $0x38] sm:$0xff]
            %59 = vst [vmem:[%s43 + $0x70] sm:$0xff] %v58
          $region29: #{reverse.0} parent=23 // loop_footer
            %s41 = sadd.s32 1, %s37
          $region30: #{reverse.0} parent=23 // loop_footer_branch
            %36 = sbr.rel target = $region26
          $region31: #{reverse.0} parent=23 // loop_exit
            _
        $region24: #{reverse.0} parent=8 // pred_fallthru
          _
        // Predicated region
        $region32: #{reverse.0} parent=8 // pred_check
          _
        $region33: #{reverse.0} parent=8 // pred_check_branch
          %61 = sbr.rel target = $region35
        $region34: #{reverse.0} parent=8 // pred_region
          _
        $region35: #{reverse.0} parent=8 // pred_fallthru
          _
      $region9: #{reverse.0} parent=4 // pred_fallthru
        _
      // Predicated region
      $region10: #{reverse.0} parent=4 // pred_check
        _
      $region11: #{reverse.0} parent=4 // pred_check_branch
        %8 = sbr.rel target = $region13
      $region12: #{reverse.0} parent=4 // pred_region
        loop: start=0, step=1, limit=1
        $region14: #{reverse.0} parent=12 // loop_pre_header
          _
        $region15: #{reverse.0} parent=12 // loop_header
          %s11 = sphi 0, %s15
          %p12 = scmp.ge.s32.totalorder %s11, 1
          %s16 = sphi %s0, %s0
          %s17 = sphi %s2, %s2
        $region16: #{reverse.0} parent=12 // loop_header_branch
          %14 = sbr.rel (%p12) target = $region20
        $region17: #{reverse.0} parent=12 // loop_body
          %v18 = vld [vmem:[%s16] sm:$0xff]
          %19 = vst [vmem:[%s17] sm:$0xff] %v18
          %v20 = vld [vmem:[%s16 + $0x8] sm:$0xff]
          %21 = vst [vmem:[%s17 + $0x10] sm:$0xff] %v20
          %v22 = vld [vmem:[%s16 + $0x10] sm:$0xff]
          %23 = vst [vmem:[%s17 + $0x20] sm:$0xff] %v22
          %v24 = vld [vmem:[%s16 + $0x18] sm:$0xff]
          %25 = vst [vmem:[%s17 + $0x30] sm:$0xff] %v24
          %v26 = vld [vmem:[%s16 + $0x20] sm:$0xff]
          %27 = vst [vmem:[%s17 + $0x40] sm:$0xff] %v26
          %v28 = vld [vmem:[%s16 + $0x28] sm:$0xff]
          %29 = vst [vmem:[%s17 + $0x50] sm:$0xff] %v28
          %v30 = vld [vmem:[%s16 + $0x30] sm:$0xff]
          %31 = vst [vmem:[%s17 + $0x60] sm:$0xff] %v30
          %v32 = vld [vmem:[%s16 + $0x38] sm:$0xff]
          %33 = vst [vmem:[%s17 + $0x70] sm:$0xff] %v32
        $region18: #{reverse.0} parent=12 // loop_footer
          %s15 = sadd.s32 1, %s11
        $region19: #{reverse.0} parent=12 // loop_footer_branch
          %10 = sbr.rel target = $region15
        $region20: #{reverse.0} parent=12 // loop_exit
          _
      $region13: #{reverse.0} parent=4 // pred_fallthru
        _
    $region5: #{reverse.0} parent=1 // pred_fallthru
      _
    %62 = vnop
    %s63 = scalar_lea.vmem [#allocation0], 7
    %v64 = vld [vmem:[%s63] ss:$-1 sm:$0xff]
    %v65 = vrot.slane %v64, 1
    %66 = vst [vmem:[#allocation1] sm:$0xff] %v65
    %s67 = scalar_lea.vmem [#allocation0], 8
    %s68 = scalar_lea.vmem %s67, 7 [#allocation0]
    %v69 = vld [vmem:[%s68] ss:$-1 sm:$0xff]
    %v70 = vrot.slane %v69, 1
    %v71 = vlaneseq
    %v72 = vshrl.u32 %v71, 7
    %vm73 = vcmp.lt.s32.totalorder %v72, 7
    %74 = vst.msk [vmem:[#allocation1] sm:$0xff] %vm73, %v70
    %s75 = scalar_lea.vmem [#allocation1], 8
    %s76 = scalar_lea.vmem [#allocation0], 16
    %s77 = scalar_lea.vmem %s76, 7 [#allocation0]
    %v78 = vld [vmem:[%s77] ss:$-1 sm:$0xff]
    %v79 = vrot.slane %v78, 1
    %80 = vst [vmem:[%s75] sm:$0xff] %v79
    %s81 = scalar_lea.vmem %s76, 8 [#allocation0]
    %s82 = scalar_lea.vmem %s81, 7 [#allocation0]
    %v83 = vld [vmem:[%s82] ss:$-1 sm:$0xff]
    %v84 = vrot.slane %v83, 1
    %v85 = vlaneseq
    %v86 = vshrl.u32 %v85, 7
    %vm87 = vcmp.lt.s32.totalorder %v86, 7
    %88 = vst.msk [vmem:[%s75] sm:$0xff] %vm87, %v84
    %s89 = scalar_lea.vmem [#allocation1], 16
    %s90 = scalar_lea.vmem [#allocation0], 32
    %s91 = scalar_lea.vmem %s90, 7 [#allocation0]
    %v92 = vld [vmem:[%s91] ss:$-1 sm:$0xff]
    %v93 = vrot.slane %v92, 1
    %94 = vst [vmem:[%s89] sm:$0xff] %v93
    %s95 = scalar_lea.vmem %s90, 8 [#allocation0]
    %s96 = scalar_lea.vmem %s95, 7 [#allocation0]
    %v97 = vld [vmem:[%s96] ss:$-1 sm:$0xff]
    %v98 = vrot.slane %v97, 1
    %v99 = vlaneseq
    %v100 = vshrl.u32 %v99, 7
    %vm101 = vcmp.lt.s32.totalorder %v100, 7
    %102 = vst.msk [vmem:[%s89] sm:$0xff] %vm101, %v98
    %s103 = scalar_lea.vmem [#allocation1], 24
    %s104 = scalar_lea.vmem [#allocation0], 48
    %s105 = scalar_lea.vmem %s104, 7 [#allocation0]
    %v106 = vld [vmem:[%s105] ss:$-1 sm:$0xff]
    %v107 = vrot.slane %v106, 1
    %108 = vst [vmem:[%s103] sm:$0xff] %v107
    %s109 = scalar_lea.vmem %s104, 8 [#allocation0]
    %s110 = scalar_lea.vmem %s109, 7 [#allocation0]
    %v111 = vld [vmem:[%s110] ss:$-1 sm:$0xff]
    %v112 = vrot.slane %v111, 1
    %v113 = vlaneseq
    %v114 = vshrl.u32 %v113, 7
    %vm115 = vcmp.lt.s32.totalorder %v114, 7
    %116 = vst.msk [vmem:[%s103] sm:$0xff] %vm115, %v112
    %s117 = scalar_lea.vmem [#allocation1], 32
    %s118 = scalar_lea.vmem [#allocation0], 64
    %s119 = scalar_lea.vmem %s118, 7 [#allocation0]
    %v120 = vld [vmem:[%s119] ss:$-1 sm:$0xff]
    %v121 = vrot.slane %v120, 1
    %122 = vst [vmem:[%s117] sm:$0xff] %v121
    %s123 = scalar_lea.vmem %s118, 8 [#allocation0]
    %s124 = scalar_lea.vmem %s123, 7 [#allocation0]
    %v125 = vld [vmem:[%s124] ss:$-1 sm:$0xff]
    %v126 = vrot.slane %v125, 1
    %v127 = vlaneseq
    %v128 = vshrl.u32 %v127, 7
    %vm129 = vcmp.lt.s32.totalorder %v128, 7
    %130 = vst.msk [vmem:[%s117] sm:$0xff] %vm129, %v126
    %s131 = scalar_lea.vmem [#allocation1], 40
    %s132 = scalar_lea.vmem [#allocation0], 80
    %s133 = scalar_lea.vmem %s132, 7 [#allocation0]
    %v134 = vld [vmem:[%s133] ss:$-1 sm:$0xff]
    %v135 = vrot.slane %v134, 1
    %136 = vst [vmem:[%s131] sm:$0xff] %v135
    %s137 = scalar_lea.vmem %s132, 8 [#allocation0]
    %s138 = scalar_lea.vmem %s137, 7 [#allocation0]
    %v139 = vld [vmem:[%s138] ss:$-1 sm:$0xff]
    %v140 = vrot.slane %v139, 1
    %v141 = vlaneseq
    %v142 = vshrl.u32 %v141, 7
    %vm143 = vcmp.lt.s32.totalorder %v142, 7
    %144 = vst.msk [vmem:[%s131] sm:$0xff] %vm143, %v140
    %s145 = scalar_lea.vmem [#allocation1], 48
    %s146 = scalar_lea.vmem [#allocation0], 96
    %s147 = scalar_lea.vmem %s146, 7 [#allocation0]
    %v148 = vld [vmem:[%s147] ss:$-1 sm:$0xff]
    %v149 = vrot.slane %v148, 1
    %150 = vst [vmem:[%s145] sm:$0xff] %v149
    %s151 = scalar_lea.vmem %s146, 8 [#allocation0]
    %s152 = scalar_lea.vmem %s151, 7 [#allocation0]
    %v153 = vld [vmem:[%s152] ss:$-1 sm:$0xff]
    %v154 = vrot.slane %v153, 1
    %v155 = vlaneseq
    %v156 = vshrl.u32 %v155, 7
    %vm157 = vcmp.lt.s32.totalorder %v156, 7
    %158 = vst.msk [vmem:[%s145] sm:$0xff] %vm157, %v154
    %s159 = scalar_lea.vmem [#allocation1], 56
    %s160 = scalar_lea.vmem [#allocation0], 112
    %s161 = scalar_lea.vmem %s160, 7 [#allocation0]
    %v162 = vld [vmem:[%s161] ss:$-1 sm:$0xff]
    %v163 = vrot.slane %v162, 1
    %164 = vst [vmem:[%s159] sm:$0xff] %v163
    %s165 = scalar_lea.vmem %s160, 8 [#allocation0]
    %s166 = scalar_lea.vmem %s165, 7 [#allocation0]
    %v167 = vld [vmem:[%s166] ss:$-1 sm:$0xff]
    %v168 = vrot.slane %v167, 1
    %v169 = vlaneseq
    %v170 = vshrl.u32 %v169, 7
    %vm171 = vcmp.lt.s32.totalorder %v170, 7
    %172 = vst.msk [vmem:[%s159] sm:$0xff] %vm171, %v168
    // Predicated region
    $region36: #{reverse.0} parent=1 // pred_check
      _
    $region37: #{reverse.0} parent=1 // pred_check_branch
      %174 = sbr.rel (0) target = $region39
    $region38: #{reverse.0} parent=1 // pred_region
      // Predicated region
      $region40: #{reverse.0} parent=38 // pred_check
        _
      $region41: #{reverse.0} parent=38 // pred_check_branch
        %176 = sbr.rel (0) target = $region43
      $region42: #{reverse.0} parent=38 // pred_region
        // Predicated region
        $region55: #{reverse.0} parent=42 // pred_check
          _
        $region56: #{reverse.0} parent=42 // pred_check_branch
          %205 = sbr.rel (0) target = $region58
        $region57: #{reverse.0} parent=42 // pred_region
          loop: start=0, step=1, limit=1
          $region59: #{reverse.0} parent=57 // loop_pre_header
            _
          $region60: #{reverse.0} parent=57 // loop_header
            %s207 = sphi 0, %s211
            %p208 = scmp.ge.s32.totalorder %s207, 1
            %s212 = sphi [#allocation1], [#allocation1]
            %s213 = sphi %s1, %s1
          $region61: #{reverse.0} parent=57 // loop_header_branch
            %210 = sbr.rel (%p208) target = $region65
          $region62: #{reverse.0} parent=57 // loop_body
            %v214 = vld [vmem:[%s212] sm:$0xff]
            %215 = vst [vmem:[%s213] sm:$0xff] %v214
            %v216 = vld [vmem:[%s212 + $0x8] sm:$0xff]
            %217 = vst [vmem:[%s213 + $0x8] sm:$0xff] %v216
            %v218 = vld [vmem:[%s212 + $0x10] sm:$0xff]
            %219 = vst [vmem:[%s213 + $0x10] sm:$0xff] %v218
            %v220 = vld [vmem:[%s212 + $0x18] sm:$0xff]
            %221 = vst [vmem:[%s213 + $0x18] sm:$0xff] %v220
            %v222 = vld [vmem:[%s212 + $0x20] sm:$0xff]
            %223 = vst [vmem:[%s213 + $0x20] sm:$0xff] %v222
            %v224 = vld [vmem:[%s212 + $0x28] sm:$0xff]
            %225 = vst [vmem:[%s213 + $0x28] sm:$0xff] %v224
            %v226 = vld [vmem:[%s212 + $0x30] sm:$0xff]
            %227 = vst [vmem:[%s213 + $0x30] sm:$0xff] %v226
            %v228 = vld [vmem:[%s212 + $0x38] sm:$0xff]
            %229 = vst [vmem:[%s213 + $0x38] sm:$0xff] %v228
          $region63: #{reverse.0} parent=57 // loop_footer
            %s211 = sadd.s32 1, %s207
          $region64: #{reverse.0} parent=57 // loop_footer_branch
            %206 = sbr.rel target = $region60
          $region65: #{reverse.0} parent=57 // loop_exit
            _
        $region58: #{reverse.0} parent=42 // pred_fallthru
          _
        // Predicated region
        $region66: #{reverse.0} parent=42 // pred_check
          _
        $region67: #{reverse.0} parent=42 // pred_check_branch
          %231 = sbr.rel target = $region69
        $region68: #{reverse.0} parent=42 // pred_region
          _
        $region69: #{reverse.0} parent=42 // pred_fallthru
          _
      $region43: #{reverse.0} parent=38 // pred_fallthru
        _
      // Predicated region
      $region44: #{reverse.0} parent=38 // pred_check
        _
      $region45: #{reverse.0} parent=38 // pred_check_branch
        %178 = sbr.rel target = $region47
      $region46: #{reverse.0} parent=38 // pred_region
        loop: start=0, step=1, limit=1
        $region48: #{reverse.0} parent=46 // loop_pre_header
          _
        $region49: #{reverse.0} parent=46 // loop_header
          %s181 = sphi 0, %s185
          %p182 = scmp.ge.s32.totalorder %s181, 1
          %s186 = sphi [#allocation1], [#allocation1]
          %s187 = sphi %s1, %s1
        $region50: #{reverse.0} parent=46 // loop_header_branch
          %184 = sbr.rel (%p182) target = $region54
        $region51: #{reverse.0} parent=46 // loop_body
          %v188 = vld [vmem:[%s186] sm:$0xff]
          %189 = vst [vmem:[%s187] sm:$0xff] %v188
          %v190 = vld [vmem:[%s186 + $0x8] sm:$0xff]
          %191 = vst [vmem:[%s187 + $0x8] sm:$0xff] %v190
          %v192 = vld [vmem:[%s186 + $0x10] sm:$0xff]
          %193 = vst [vmem:[%s187 + $0x10] sm:$0xff] %v192
          %v194 = vld [vmem:[%s186 + $0x18] sm:$0xff]
          %195 = vst [vmem:[%s187 + $0x18] sm:$0xff] %v194
          %v196 = vld [vmem:[%s186 + $0x20] sm:$0xff]
          %197 = vst [vmem:[%s187 + $0x20] sm:$0xff] %v196
          %v198 = vld [vmem:[%s186 + $0x28] sm:$0xff]
          %199 = vst [vmem:[%s187 + $0x28] sm:$0xff] %v198
          %v200 = vld [vmem:[%s186 + $0x30] sm:$0xff]
          %201 = vst [vmem:[%s187 + $0x30] sm:$0xff] %v200
          %v202 = vld [vmem:[%s186 + $0x38] sm:$0xff]
          %203 = vst [vmem:[%s187 + $0x38] sm:$0xff] %v202
        $region52: #{reverse.0} parent=46 // loop_footer
          %s185 = sadd.s32 1, %s181
        $region53: #{reverse.0} parent=46 // loop_footer_branch
          %180 = sbr.rel target = $region49
        $region54: #{reverse.0} parent=46 // loop_exit
          _
      $region47: #{reverse.0} parent=38 // pred_fallthru
        _
    $region39: #{reverse.0} parent=1 // pred_fallthru
      _
    %232 = vnop

// kernel: _lambda_.1
$region0: #{_lambda_.1}
  #allocation0 [shape = 'u32[]', space=smem, size = 0x4, offset = 0x4, fixed_abs, tag = 'smem constant byte address 0x4 - core index']
  #allocation1 [shape = 'u32[144,128]{1,0:T(1,128)}', space=vmem, size = 0x12000, scoped, tag = 'internal scratch']
  %s0 = inlined_call_operand.vmem [shape: f32[2,16,2,4], index: 0, kind: input, shape index: {}]
  %s1 = inlined_call_operand.vmem [shape: f32[2,16,2,4], index: 1, kind: input, shape index: {}]
  %s2 = inlined_call_operand.vmem [shape: f32[2,16,4,4], index: 2, kind: input, shape index: {}]
  %s3 = inlined_call_operand.vmem [shape: f32[2,16,4,4], index: 3, kind: input, shape index: {}]
  %s4 = inlined_call_operand.vmem [shape: f32[2,16,2,4], index: 4, kind: output, shape index: {0}]
  %s5 = inlined_call_operand.vmem [shape: f32[2,16,2,4], index: 5, kind: output, shape index: {1}]
  %6 = xla_tuple %s4, %s5
  %s7 = sld [smem:[#allocation0]]
  $region57: #{_lambda_.1} parent=0
    _
  %s9 = ssub.s32 1, %s7
  %s10 = scalar_select 0, %s9, %s7
  loop: start=0, step=1, limit=4
  $region2: #{_lambda_.1} parent=0 // loop_pre_header
    _
  $region3: #{_lambda_.1} parent=0 // loop_header
    %s12 = sphi 0, %s16
    %p13 = scmp.ge.s32.totalorder %s12, 4
    %s19 = sphi 0, %s31
    %s20 = sphi 0, %s27
    %s21 = sphi 0, %s19
    %s22 = sphi 0, %s20
    %s23 = sphi 0, %s21
    %s24 = sphi 0, %s22
    %s36 = sphi 0, %s38
    %s39 = sphi 0, %s36
    %s40 = sphi 0, %s39
    %s56 = sphi 0, %s40
    %s64 = sphi 0, %s66
    %s67 = sphi 0, %s64
    %s68 = sphi 0, %s67
    %s84 = sphi 0, %s68
    %s92 = sphi 0, %s94
    %s95 = sphi 0, %s92
    %s96 = sphi 0, %s95
    %s112 = sphi 0, %s96
    %s120 = sphi 0, %s122
    %s123 = sphi 0, %s120
    %s124 = sphi 0, %s123
    %s140 = sphi 0, %s124
    %s148 = sphi 0, %s150
    %s151 = sphi 0, %s148
    %s152 = sphi 0, %s151
    %s168 = sphi 0, %s152
    %s176 = sphi 0, %s178
    %s179 = sphi 0, %s176
    %s180 = sphi 0, %s179
    %s196 = sphi 0, %s180
  $region4: #{_lambda_.1} parent=0 // loop_header_branch
    %15 = sbr.rel (%p13) target = $region8
  $region5: #{_lambda_.1} parent=0 // loop_body
    %s17 = ssub.s32 %s12, 1
    %s18 = ssub.s32 %s12, 2
    %s25 = sadd.s32 1, %s20
    %p26 = scmp.ge.s32.totalorder %s25, 1
    %s27 = scalar_select %p26, 0, %s25
    %s28 = sadd.s32 1, %s19
    %s29 = scalar_select %p26, %s28, %s19
    %p30 = scmp.ge.s32.totalorder %s29, 2
    %s31 = scalar_select %p30, 0, %s29
    %s32 = ssub.s32 %s19, %s31
    %s33 = ssub.s32 %s20, %s27
    %s34 = sor.u32 %s32, %s33
    %p35 = scmp.eq.s32.totalorder %s34, 0
    %s37 = sadd.s32 %s36, 1
    %s38 = scalar_select %p35, %s36, %s37
    %p41 = pneg %p35
    %p42 = scmp.eq.s32.totalorder %s12, 1
    %p43 = por %p41, %p42
    %p44 = scmp.ne.s32.totalorder %s36, %s39
    %p45 = scmp.eq.s32.totalorder %s12, 0
    %p46 = por %p44, %p45
    %p47 = scmp.ne.s32.totalorder %s36, %s39
    %p48 = scmp.eq.s32.totalorder %s17, 1
    %p49 = por %p47, %p48
    %p50 = scmp.ne.s32.totalorder %s39, %s40
    %p51 = scmp.eq.s32.totalorder %s17, 0
    %p52 = por %p50, %p51
    %p53 = scmp.ne.s32.totalorder %s39, %s40
    %p54 = scmp.eq.s32.totalorder %s18, 1
    %p55 = por %p53, %p54
    %p57 = scmp.ne.s32.totalorder %s40, %s56
    %p58 = scmp.eq.s32.totalorder %s18, 0
    %p59 = por %p57, %p58
    %s60 = ssub.s32 %s19, %s31
    %s61 = ssub.s32 %s20, %s27
    %s62 = sor.u32 %s60, %s61
    %p63 = scmp.eq.s32.totalorder %s62, 0
    %s65 = sadd.s32 %s64, 1
    %s66 = scalar_select %p63, %s64, %s65
    %p69 = pneg %p63
    %p70 = scmp.eq.s32.totalorder %s12, 1
    %p71 = por %p69, %p70
    %p72 = scmp.ne.s32.totalorder %s64, %s67
    %p73 = scmp.eq.s32.totalorder %s12, 0
    %p74 = por %p72, %p73
    %p75 = scmp.ne.s32.totalorder %s64, %s67
    %p76 = scmp.eq.s32.totalorder %s17, 1
    %p77 = por %p75, %p76
    %p78 = scmp.ne.s32.totalorder %s67, %s68
    %p79 = scmp.eq.s32.totalorder %s17, 0
    %p80 = por %p78, %p79
    %p81 = scmp.ne.s32.totalorder %s67, %s68
    %p82 = scmp.eq.s32.totalorder %s18, 1
    %p83 = por %p81, %p82
    %p85 = scmp.ne.s32.totalorder %s68, %s84
    %p86 = scmp.eq.s32.totalorder %s18, 0
    %p87 = por %p85, %p86
    %s88 = ssub.s32 %s19, %s31
    %s89 = ssub.s32 %s20, %s27
    %s90 = sor.u32 %s88, %s89
    %p91 = scmp.eq.s32.totalorder %s90, 0
    %s93 = sadd.s32 %s92, 1
    %s94 = scalar_select %p91, %s92, %s93
    %p97 = pneg %p91
    %p98 = scmp.eq.s32.totalorder %s12, 1
    %p99 = por %p97, %p98
    %p100 = scmp.ne.s32.totalorder %s92, %s95
    %p101 = scmp.eq.s32.totalorder %s12, 0
    %p102 = por %p100, %p101
    %p103 = scmp.ne.s32.totalorder %s92, %s95
    %p104 = scmp.eq.s32.totalorder %s17, 1
    %p105 = por %p103, %p104
    %p106 = scmp.ne.s32.totalorder %s95, %s96
    %p107 = scmp.eq.s32.totalorder %s17, 0
    %p108 = por %p106, %p107
    %p109 = scmp.ne.s32.totalorder %s95, %s96
    %p110 = scmp.eq.s32.totalorder %s18, 1
    %p111 = por %p109, %p110
    %p113 = scmp.ne.s32.totalorder %s96, %s112
    %p114 = scmp.eq.s32.totalorder %s18, 0
    %p115 = por %p113, %p114
    %s116 = ssub.s32 %s19, %s31
    %s117 = ssub.s32 %s20, %s27
    %s118 = sor.u32 %s116, %s117
    %p119 = scmp.eq.s32.totalorder %s118, 0
    %s121 = sadd.s32 %s120, 1
    %s122 = scalar_select %p119, %s120, %s121
    %p125 = pneg %p119
    %p126 = scmp.eq.s32.totalorder %s12, 1
    %p127 = por %p125, %p126
    %p128 = scmp.ne.s32.totalorder %s120, %s123
    %p129 = scmp.eq.s32.totalorder %s12, 0
    %p130 = por %p128, %p129
    %p131 = scmp.ne.s32.totalorder %s120, %s123
    %p132 = scmp.eq.s32.totalorder %s17, 1
    %p133 = por %p131, %p132
    %p134 = scmp.ne.s32.totalorder %s123, %s124
    %p135 = scmp.eq.s32.totalorder %s17, 0
    %p136 = por %p134, %p135
    %p137 = scmp.ne.s32.totalorder %s123, %s124
    %p138 = scmp.eq.s32.totalorder %s18, 1
    %p139 = por %p137, %p138
    %p141 = scmp.ne.s32.totalorder %s124, %s140
    %p142 = scmp.eq.s32.totalorder %s18, 0
    %p143 = por %p141, %p142
    %s144 = ssub.s32 %s19, %s31
    %s145 = ssub.s32 %s20, %s27
    %s146 = sor.u32 %s144, %s145
    %p147 = scmp.eq.s32.totalorder %s146, 0
    %s149 = sadd.s32 %s148, 1
    %s150 = scalar_select %p147, %s148, %s149
    %p153 = pneg %p147
    %p154 = scmp.eq.s32.totalorder %s12, 1
    %p155 = por %p153, %p154
    %p156 = scmp.ne.s32.totalorder %s148, %s151
    %p157 = scmp.eq.s32.totalorder %s12, 0
    %p158 = por %p156, %p157
    %p159 = scmp.ne.s32.totalorder %s148, %s151
    %p160 = scmp.eq.s32.totalorder %s17, 1
    %p161 = por %p159, %p160
    %p162 = scmp.ne.s32.totalorder %s151, %s152
    %p163 = scmp.eq.s32.totalorder %s17, 0
    %p164 = por %p162, %p163
    %p165 = scmp.ne.s32.totalorder %s151, %s152
    %p166 = scmp.eq.s32.totalorder %s18, 1
    %p167 = por %p165, %p166
    %p169 = scmp.ne.s32.totalorder %s152, %s168
    %p170 = scmp.eq.s32.totalorder %s18, 0
    %p171 = por %p169, %p170
    %s172 = ssub.s32 %s19, %s31
    %s173 = ssub.s32 %s20, %s27
    %s174 = sor.u32 %s172, %s173
    %p175 = scmp.eq.s32.totalorder %s174, 0
    %s177 = sadd.s32 %s176, 1
    %s178 = scalar_select %p175, %s176, %s177
    %p181 = pneg %p175
    %p182 = scmp.eq.s32.totalorder %s12, 1
    %p183 = por %p181, %p182
    %p184 = scmp.ne.s32.totalorder %s176, %s179
    %p185 = scmp.eq.s32.totalorder %s12, 0
    %p186 = por %p184, %p185
    %p187 = scmp.ne.s32.totalorder %s176, %s179
    %p188 = scmp.eq.s32.totalorder %s17, 1
    %p189 = por %p187, %p188
    %p190 = scmp.ne.s32.totalorder %s179, %s180
    %p191 = scmp.eq.s32.totalorder %s17, 0
    %p192 = por %p190, %p191
    %p193 = scmp.ne.s32.totalorder %s179, %s180
    %p194 = scmp.eq.s32.totalorder %s18, 1
    %p195 = por %p193, %p194
    %p197 = scmp.ne.s32.totalorder %s180, %s196
    %p198 = scmp.eq.s32.totalorder %s18, 0
    %p199 = por %p197, %p198
    %p200 = scmp.le.s32.totalorder 1, %s12
    %p201 = scmp.lt.s32.totalorder %s12, 3
    %p202 = pnand %p200, %p201
    %p203 = pneg %p202
    // Predicated region
    $region9: #{_lambda_.1} parent=5 // pred_check
      _
    $region10: #{_lambda_.1} parent=5 // pred_check_branch
      %205 = sbr.rel (%p202) target = $region12
    $region11: #{_lambda_.1} parent=5 // pred_region
      %s206 = ssub.s32 %s12, 1
    $region12: #{_lambda_.1} parent=5 // pred_fallthru
      _
    %p207 = scmp.lt.s32.totalorder %s12, 2
    // Predicated region
    $region13: #{_lambda_.1} parent=5 // pred_check
      %p208 = pneg %p207
    $region14: #{_lambda_.1} parent=5 // pred_check_branch
      %210 = sbr.rel (%p208) target = $region16
    $region15: #{_lambda_.1} parent=5 // pred_region
      // Predicated region
      $region17: #{_lambda_.1} parent=15 // pred_check
        %p211 = pneg %p46
      $region18: #{_lambda_.1} parent=15 // pred_check_branch
        %213 = sbr.rel (%p211) target = $region20
      $region19: #{_lambda_.1} parent=15 // pred_region
        %s214 = smul.u32 16, %s20
        %p215 = scmp.lt.s32.totalorder %s19, 1
        %s216 = scalar_select %p215, %s19, 1
        %p217 = scmp.lt.s32.totalorder %s214, 15
        %s218 = scalar_select %p217, %s214, 15
        %s219 = smul.addr %s216, 16
        %s220 = sadd.s32 %s218, %s219
        %s221 = smul.addr %s220, 2
        %s222 = scalar_lea.vmem %s0, %s221
        %s223 = smul.u32 16, %s20
      $region20: #{_lambda_.1} parent=15 // pred_fallthru
        _
      // Predicated region
      $region21: #{_lambda_.1} parent=15 // pred_check
        %p224 = pneg %p74
      $region22: #{_lambda_.1} parent=15 // pred_check_branch
        %226 = sbr.rel (%p224) target = $region24
      $region23: #{_lambda_.1} parent=15 // pred_region
        %s227 = smul.u32 16, %s20
        %p228 = scmp.lt.s32.totalorder %s19, 1
        %s229 = scalar_select %p228, %s19, 1
        %p230 = scmp.lt.s32.totalorder %s227, 15
        %s231 = scalar_select %p230, %s227, 15
        %s232 = smul.addr %s229, 16
        %s233 = sadd.s32 %s231, %s232
        %s234 = smul.addr %s233, 2
        %s235 = scalar_lea.vmem %s1, %s234
        %s236 = smul.u32 16, %s20
      $region24: #{_lambda_.1} parent=15 // pred_fallthru
        _
      // Predicated region
      $region25: #{_lambda_.1} parent=15 // pred_check
        %p237 = pneg %p102
      $region26: #{_lambda_.1} parent=15 // pred_check_branch
        %239 = sbr.rel (%p237) target = $region28
      $region27: #{_lambda_.1} parent=15 // pred_region
        %s240 = smul.u32 16, %s20
        %p241 = scmp.lt.s32.totalorder %s19, 1
        %s242 = scalar_select %p241, %s19, 1
        %p243 = scmp.lt.s32.totalorder %s240, 15
        %s244 = scalar_select %p243, %s240, 15
        %s245 = smul.addr %s242, 16
        %s246 = sadd.s32 %s244, %s245
        %s247 = smul.addr %s246, 4
        %s248 = scalar_lea.vmem %s2, %s247
        %s249 = smul.u32 16, %s20
      $region28: #{_lambda_.1} parent=15 // pred_fallthru
        _
      // Predicated region
      $region29: #{_lambda_.1} parent=15 // pred_check
        %p250 = pneg %p130
      $region30: #{_lambda_.1} parent=15 // pred_check_branch
        %252 = sbr.rel (%p250) target = $region32
      $region31: #{_lambda_.1} parent=15 // pred_region
        %s253 = smul.u32 16, %s20
        %p254 = scmp.lt.s32.totalorder %s19, 1
        %s255 = scalar_select %p254, %s19, 1
        %p256 = scmp.lt.s32.totalorder %s253, 15
        %s257 = scalar_select %p256, %s253, 15
        %s258 = smul.addr %s255, 16
        %s259 = sadd.s32 %s257, %s258
        %s260 = smul.addr %s259, 4
        %s261 = scalar_lea.vmem %s3, %s260
        %s262 = smul.u32 16, %s20
      $region32: #{_lambda_.1} parent=15 // pred_fallthru
        _
    $region16: #{_lambda_.1} parent=5 // pred_fallthru
      _
    %p263 = scmp.le.s32.totalorder 1, %s12
    %p264 = scmp.lt.s32.totalorder %s12, 3
    %p265 = pnand %p263, %p264
    %p266 = pneg %p265
    // Predicated region
    $region33: #{_lambda_.1} parent=5 // pred_check
      _
    $region34: #{_lambda_.1} parent=5 // pred_check_branch
      %268 = sbr.rel (%p265) target = $region36
    $region35: #{_lambda_.1} parent=5 // pred_region
      %s269 = ssub.s32 %s12, 1
      %s270 = smul.u32 16, %s22
      %p271 = scmp.lt.s32.totalorder %s21, 1
      %s272 = scalar_select %p271, %s21, 1
      %p273 = scmp.lt.s32.totalorder %s270, 15
      %s274 = scalar_select %p273, %s270, 15
      %s275 = smul.addr %s272, 16
      %s276 = sadd.s32 %s274, %s275
      %s277 = smul.addr %s276, 2
      %s278 = scalar_lea.vmem %s0, %s277
      %p279 = pneg %p52
      %p280 = pneg %p49
      %s281 = smul.u32 16, %s22
      %p282 = scmp.lt.s32.totalorder %s21, 1
      %s283 = scalar_select %p282, %s21, 1
      %p284 = scmp.lt.s32.totalorder %s281, 15
      %s285 = scalar_select %p284, %s281, 15
      %s286 = smul.addr %s283, 16
      %s287 = sadd.s32 %s285, %s286
      %s288 = smul.addr %s287, 2
      %s289 = scalar_lea.vmem %s1, %s288
      %p290 = pneg %p80
      %p291 = pneg %p77
      %s292 = smul.u32 16, %s22
      %p293 = scmp.lt.s32.totalorder %s21, 1
      %s294 = scalar_select %p293, %s21, 1
      %p295 = scmp.lt.s32.totalorder %s292, 15
      %s296 = scalar_select %p295, %s292, 15
      %s297 = smul.addr %s294, 16
      %s298 = sadd.s32 %s296, %s297
      %s299 = smul.addr %s298, 4
      %s300 = scalar_lea.vmem %s2, %s299
      %p301 = pneg %p108
      %p302 = pneg %p105
      %s303 = smul.u32 16, %s22
      %p304 = scmp.lt.s32.totalorder %s21, 1
      %s305 = scalar_select %p304, %s21, 1
      %p306 = scmp.lt.s32.totalorder %s303, 15
      %s307 = scalar_select %p306, %s303, 15
      %s308 = smul.addr %s305, 16
      %s309 = sadd.s32 %s307, %s308
      %s310 = smul.addr %s309, 4
      %s311 = scalar_lea.vmem %s3, %s310
      %p312 = pneg %p136
      %p313 = pneg %p133
      %p314 = pneg %p164
      %p315 = pneg %p161
      %s316 = smul.u32 16, %s22
      %p317 = scmp.lt.s32.totalorder %s21, 1
      %s318 = scalar_select %p317, %s21, 1
      %p319 = scmp.lt.s32.totalorder %s316, 15
      %s320 = scalar_select %p319, %s316, 15
      %s321 = smul.addr %s318, 16
      %s322 = sadd.s32 %s320, %s321
      %s323 = smul.addr %s322, 2
      %s324 = scalar_lea.vmem %s4, %s323
      %p325 = pneg %p192
      %p326 = pneg %p189
      %s327 = smul.u32 16, %s22
      %p328 = scmp.lt.s32.totalorder %s21, 1
      %s329 = scalar_select %p328, %s21, 1
      %p330 = scmp.lt.s32.totalorder %s327, 15
      %s331 = scalar_select %p330, %s327, 15
      %s332 = smul.addr %s329, 16
      %s333 = sadd.s32 %s331, %s332
      %s334 = smul.addr %s333, 2
      %s335 = scalar_lea.vmem %s5, %s334
      %s336 = smul.u32 16, %s22
      %p337 = scmp.lt.s32.totalorder %s21, 1
      %s338 = scalar_select %p337, %s21, 1
      %p339 = scmp.lt.s32.totalorder %s336, 15
      %s340 = scalar_select %p339, %s336, 15
      %s341 = smul.addr %s338, 16
      %s342 = sadd.s32 %s340, %s341
      %s343 = smul.addr %s342, 2
      %s344 = scalar_lea.vmem %s0, %s343
      %s345 = smul.u32 16, %s22
      %s346 = smul.u32 16, %s22
      %p347 = scmp.lt.s32.totalorder %s21, 1
      %s348 = scalar_select %p347, %s21, 1
      %p349 = scmp.lt.s32.totalorder %s346, 15
      %s350 = scalar_select %p349, %s346, 15
      %s351 = smul.addr %s348, 16
      %s352 = sadd.s32 %s350, %s351
      %s353 = smul.addr %s352, 2
      %s354 = scalar_lea.vmem %s1, %s353
      %s355 = smul.u32 16, %s22
      %s356 = smul.u32 16, %s22
      %p357 = scmp.lt.s32.totalorder %s21, 1
      %s358 = scalar_select %p357, %s21, 1
      %p359 = scmp.lt.s32.totalorder %s356, 15
      %s360 = scalar_select %p359, %s356, 15
      %s361 = smul.addr %s358, 16
      %s362 = sadd.s32 %s360, %s361
      %s363 = smul.addr %s362, 4
      %s364 = scalar_lea.vmem %s2, %s363
      %s365 = smul.u32 16, %s22
      %s366 = smul.u32 16, %s22
      %p367 = scmp.lt.s32.totalorder %s21, 1
      %s368 = scalar_select %p367, %s21, 1
      %p369 = scmp.lt.s32.totalorder %s366, 15
      %s370 = scalar_select %p369, %s366, 15
      %s371 = smul.addr %s368, 16
      %s372 = sadd.s32 %s370, %s371
      %s373 = smul.addr %s372, 4
      %s374 = scalar_lea.vmem %s3, %s373
      %s375 = smul.u32 16, %s22
      %s376 = smul.u32 16, %s22
      %p377 = scmp.lt.s32.totalorder %s21, 1
      %s378 = scalar_select %p377, %s21, 1
      %p379 = scmp.lt.s32.totalorder %s376, 15
      %s380 = scalar_select %p379, %s376, 15
      %s381 = smul.addr %s378, 16
      %s382 = sadd.s32 %s380, %s381
      %s383 = smul.addr %s382, 2
      %s384 = scalar_lea.vmem %s4, %s383
      %s385 = smul.u32 16, %s22
      %s386 = smul.u32 16, %s22
      %p387 = scmp.lt.s32.totalorder %s21, 1
      %s388 = scalar_select %p387, %s21, 1
      %p389 = scmp.lt.s32.totalorder %s386, 15
      %s390 = scalar_select %p389, %s386, 15
      %s391 = smul.addr %s388, 16
      %s392 = sadd.s32 %s390, %s391
      %s393 = smul.addr %s392, 2
      %s394 = scalar_lea.vmem %s5, %s393
      %s395 = smul.u32 16, %s22
      %v396 = vld [vmem:[%s344] sm:$0x3]
      %v397 = vld [vmem:[%s344 + $0x2] sm:$0x3]
      %v398 = vld [vmem:[%s344 + $0x4] sm:$0x3]
      %v399 = vld [vmem:[%s344 + $0x6] sm:$0x3]
      %v400 = vld [vmem:[%s344 + $0x8] sm:$0x3]
      %v401 = vld [vmem:[%s344 + $0xa] sm:$0x3]
      %v402 = vld [vmem:[%s344 + $0xc] sm:$0x3]
      %v403 = vld [vmem:[%s344 + $0xe] sm:$0x3]
      %v404 = vld [vmem:[%s344 + $0x10] sm:$0x3]
      %v405 = vld [vmem:[%s344 + $0x12] sm:$0x3]
      %v406 = vld [vmem:[%s344 + $0x14] sm:$0x3]
      %v407 = vld [vmem:[%s344 + $0x16] sm:$0x3]
      %v408 = vld [vmem:[%s344 + $0x18] sm:$0x3]
      %v409 = vld [vmem:[%s344 + $0x1a] sm:$0x3]
      %v410 = vld [vmem:[%s344 + $0x1c] sm:$0x3]
      %v411 = vld [vmem:[%s344 + $0x1e] sm:$0x3]
      %v412 = vld [vmem:[%s354] sm:$0x3]
      %v413 = vld [vmem:[%s354 + $0x2] sm:$0x3]
      %v414 = vld [vmem:[%s354 + $0x4] sm:$0x3]
      %v415 = vld [vmem:[%s354 + $0x6] sm:$0x3]
      %v416 = vld [vmem:[%s354 + $0x8] sm:$0x3]
      %v417 = vld [vmem:[%s354 + $0xa] sm:$0x3]
      %v418 = vld [vmem:[%s354 + $0xc] sm:$0x3]
      %v419 = vld [vmem:[%s354 + $0xe] sm:$0x3]
      %v420 = vld [vmem:[%s354 + $0x10] sm:$0x3]
      %v421 = vld [vmem:[%s354 + $0x12] sm:$0x3]
      %v422 = vld [vmem:[%s354 + $0x14] sm:$0x3]
      %v423 = vld [vmem:[%s354 + $0x16] sm:$0x3]
      %v424 = vld [vmem:[%s354 + $0x18] sm:$0x3]
      %v425 = vld [vmem:[%s354 + $0x1a] sm:$0x3]
      %v426 = vld [vmem:[%s354 + $0x1c] sm:$0x3]
      %v427 = vld [vmem:[%s354 + $0x1e] sm:$0x3]
      %v428 = vld [vmem:[%s364] sm:$0xf]
      %v429 = vld [vmem:[%s364 + $0x4] sm:$0xf]
      %v430 = vld [vmem:[%s364 + $0x8] sm:$0xf]
      %v431 = vld [vmem:[%s364 + $0xc] sm:$0xf]
      %v432 = vld [vmem:[%s364 + $0x10] sm:$0xf]
      %v433 = vld [vmem:[%s364 + $0x14] sm:$0xf]
      %v434 = vld [vmem:[%s364 + $0x18] sm:$0xf]
      %v435 = vld [vmem:[%s364 + $0x1c] sm:$0xf]
      %v436 = vld [vmem:[%s364 + $0x20] sm:$0xf]
      %v437 = vld [vmem:[%s364 + $0x24] sm:$0xf]
      %v438 = vld [vmem:[%s364 + $0x28] sm:$0xf]
      %v439 = vld [vmem:[%s364 + $0x2c] sm:$0xf]
      %v440 = vld [vmem:[%s364 + $0x30] sm:$0xf]
      %v441 = vld [vmem:[%s364 + $0x34] sm:$0xf]
      %v442 = vld [vmem:[%s364 + $0x38] sm:$0xf]
      %v443 = vld [vmem:[%s364 + $0x3c] sm:$0xf]
      %v444 = vld [vmem:[%s374] sm:$0xf]
      %v445 = vld [vmem:[%s374 + $0x4] sm:$0xf]
      %v446 = vld [vmem:[%s374 + $0x8] sm:$0xf]
      %v447 = vld [vmem:[%s374 + $0xc] sm:$0xf]
      %v448 = vld [vmem:[%s374 + $0x10] sm:$0xf]
      %v449 = vld [vmem:[%s374 + $0x14] sm:$0xf]
      %v450 = vld [vmem:[%s374 + $0x18] sm:$0xf]
      %v451 = vld [vmem:[%s374 + $0x1c] sm:$0xf]
      %v452 = vld [vmem:[%s374 + $0x20] sm:$0xf]
      %v453 = vld [vmem:[%s374 + $0x24] sm:$0xf]
      %v454 = vld [vmem:[%s374 + $0x28] sm:$0xf]
      %v455 = vld [vmem:[%s374 + $0x2c] sm:$0xf]
      %v456 = vld [vmem:[%s374 + $0x30] sm:$0xf]
      %v457 = vld [vmem:[%s374 + $0x34] sm:$0xf]
      %v458 = vld [vmem:[%s374 + $0x38] sm:$0xf]
      %v459 = vld [vmem:[%s374 + $0x3c] sm:$0xf]
      %v460 = vadd.f32 %v396, %v412
      %v461 = vadd.f32 %v397, %v413
      %v462 = vadd.f32 %v398, %v414
      %v463 = vadd.f32 %v399, %v415
      %v464 = vadd.f32 %v400, %v416
      %v465 = vadd.f32 %v401, %v417
      %v466 = vadd.f32 %v402, %v418
      %v467 = vadd.f32 %v403, %v419
      %v468 = vadd.f32 %v404, %v420
      %v469 = vadd.f32 %v405, %v421
      %v470 = vadd.f32 %v406, %v422
      %v471 = vadd.f32 %v407, %v423
      %v472 = vadd.f32 %v408, %v424
      %v473 = vadd.f32 %v409, %v425
      %v474 = vadd.f32 %v410, %v426
      %v475 = vadd.f32 %v411, %v427
      %vm476 = vcmask 31744
      %v478 = vsel %vm476, %v460, 0
      %vm480 = vcmask 1043456
      %v482 = vsel %vm480, %v428, 0
      %484 = vmatprep.subr.mxu0 0.0
      %485 = vmatpush1.msra.mxu0 %v482
      %486 = vmatprep.subr.mxu0 0.0
      %487 = vmatpush1.msra.mxu0 0.0
      %488 = vmatprep.subr.mxu0 0.0
      %489 = vmatpush1.msra.mxu0 0.0
      %490 = vmatprep.subr.mxu0 0.0
      %491 = vmatpush1.msra.mxu0 0.0
      %492 = vmatprep.subr.mxu0 0.0
      %493 = vmatpush1.msra.mxu0 0.0
      %494 = vmatprep.subr.mxu0 0.0
      %495 = vmatpush1.msra.mxu0 0.0
      %496 = vmatprep.subr.mxu0 0.0
      %497 = vmatpush1.msra.mxu0 0.0
      %498 = vmatprep.subr.mxu0 0.0
      %499 = vmatpush1.msra.mxu0 0.0
      %500 = vmatprep.subr.mxu0 0.0
      %501 = vmatpush1.msra.mxu0 0.0
      %502 = vmatprep.subr.mxu0 0.0
      %503 = vmatpush1.msra.mxu0 0.0
      %504 = vmatprep.subr.mxu0 0.0
      %505 = vmatpush1.msra.mxu0 0.0
      %506 = vmatprep.subr.mxu0 0.0
      %507 = vmatpush1.msra.mxu0 0.0
      %508 = vmatprep.subr.mxu0 0.0
      %509 = vmatpush1.msra.mxu0 0.0
      %510 = vmatprep.subr.mxu0 0.0
      %511 = vmatpush1.msra.mxu0 0.0
      %512 = vmatprep.subr.mxu0 0.0
      %513 = vmatpush1.msra.mxu0 0.0
      %514 = vmatprep.subr.mxu0 0.0
      %515 = vmatpush1.msra.mxu0 0.0
      %516 = vmatprep.subr.mxu0 0.0
      %517 = vmatpush1.msra.mxu0 0.0
      %518 = vmatprep.subr.mxu0 0.0
      %519 = vmatpush1.msra.mxu0 0.0
      %520 = vmatprep.subr.mxu0 0.0
      %521 = vmatpush1.msra.mxu0 0.0
      %522 = vmatprep.subr.mxu0 0.0
      %523 = vmatpush1.msra.mxu0 0.0
      %524 = vmatprep.subr.mxu0 0.0
      %525 = vmatpush1.msra.mxu0 0.0
      %526 = vmatprep.subr.mxu0 0.0
      %527 = vmatpush1.msra.mxu0 0.0
      %528 = vmatprep.subr.mxu0 0.0
      %529 = vmatpush1.msra.mxu0 0.0
      %530 = vmatprep.subr.mxu0 0.0
      %531 = vmatpush1.msra.mxu0 0.0
      %532 = vmatprep.subr.mxu0 0.0
      %533 = vmatpush1.msra.mxu0 0.0
      %534 = vmatprep.subr.mxu0 0.0
      %535 = vmatpush1.msra.mxu0 0.0
      %536 = vmatprep.subr.mxu0 0.0
      %537 = vmatpush1.msra.mxu0 0.0
      %538 = vmatprep.subr.mxu0 0.0
      %539 = vmatpush1.msra.mxu0 0.0
      %540 = vmatprep.subr.mxu0 0.0
      %541 = vmatpush1.msra.mxu0 0.0
      %542 = vmatprep.subr.mxu0 0.0
      %543 = vmatpush1.msra.mxu0 0.0
      %544 = vmatprep.subr.mxu0 0.0
      %545 = vmatpush1.msra.mxu0 0.0
      %546 = vmatprep.subr.mxu0 0.0
      %547 = vmatpush1.msra.mxu0 0.0
      %548 = vmatprep.mubr.f32.mxu0 0.0
      %549 = vmatmul.mubr.f32.gmra.mrb[0].mxu0 %v478
      %v550 = vpop.f32.mrb[0].mxu0
      %v551 = vadd.f32 0.0, %v550
      %v552 = vpop.f32.mrb[0].mxu0
      %553 = vdwg.mxu0
      %v555 = vsel %vm476, %v461, 0
      %v558 = vsel %vm480, %v429, 0
      %560 = vmatprep.subr.mxu0 0.0
      %561 = vmatpush1.msra.mxu0 %v558
      %562 = vmatprep.subr.mxu0 0.0
      %563 = vmatpush1.msra.mxu0 0.0
      %564 = vmatprep.subr.mxu0 0.0
      %565 = vmatpush1.msra.mxu0 0.0
      %566 = vmatprep.subr.mxu0 0.0
      %567 = vmatpush1.msra.mxu0 0.0
      %568 = vmatprep.subr.mxu0 0.0
      %569 = vmatpush1.msra.mxu0 0.0
      %570 = vmatprep.subr.mxu0 0.0
      %571 = vmatpush1.msra.mxu0 0.0
      %572 = vmatprep.subr.mxu0 0.0
      %573 = vmatpush1.msra.mxu0 0.0
      %574 = vmatprep.subr.mxu0 0.0
      %575 = vmatpush1.msra.mxu0 0.0
      %576 = vmatprep.subr.mxu0 0.0
      %577 = vmatpush1.msra.mxu0 0.0
      %578 = vmatprep.subr.mxu0 0.0
      %579 = vmatpush1.msra.mxu0 0.0
      %580 = vmatprep.subr.mxu0 0.0
      %581 = vmatpush1.msra.mxu0 0.0
      %582 = vmatprep.subr.mxu0 0.0
      %583 = vmatpush1.msra.mxu0 0.0
      %584 = vmatprep.subr.mxu0 0.0
      %585 = vmatpush1.msra.mxu0 0.0
      %586 = vmatprep.subr.mxu0 0.0
      %587 = vmatpush1.msra.mxu0 0.0
      %588 = vmatprep.subr.mxu0 0.0
      %589 = vmatpush1.msra.mxu0 0.0
      %590 = vmatprep.subr.mxu0 0.0
      %591 = vmatpush1.msra.mxu0 0.0
      %592 = vmatprep.subr.mxu0 0.0
      %593 = vmatpush1.msra.mxu0 0.0
      %594 = vmatprep.subr.mxu0 0.0
      %595 = vmatpush1.msra.mxu0 0.0
      %596 = vmatprep.subr.mxu0 0.0
      %597 = vmatpush1.msra.mxu0 0.0
      %598 = vmatprep.subr.mxu0 0.0
      %599 = vmatpush1.msra.mxu0 0.0
      %600 = vmatprep.subr.mxu0 0.0
      %601 = vmatpush1.msra.mxu0 0.0
      %602 = vmatprep.subr.mxu0 0.0
      %603 = vmatpush1.msra.mxu0 0.0
      %604 = vmatprep.subr.mxu0 0.0
      %605 = vmatpush1.msra.mxu0 0.0
      %606 = vmatprep.subr.mxu0 0.0
      %607 = vmatpush1.msra.mxu0 0.0
      %608 = vmatprep.subr.mxu0 0.0
      %609 = vmatpush1.msra.mxu0 0.0
      %610 = vmatprep.subr.mxu0 0.0
      %611 = vmatpush1.msra.mxu0 0.0
      %612 = vmatprep.subr.mxu0 0.0
      %613 = vmatpush1.msra.mxu0 0.0
      %614 = vmatprep.subr.mxu0 0.0
      %615 = vmatpush1.msra.mxu0 0.0
      %616 = vmatprep.subr.mxu0 0.0
      %617 = vmatpush1.msra.mxu0 0.0
      %618 = vmatprep.subr.mxu0 0.0
      %619 = vmatpush1.msra.mxu0 0.0
      %620 = vmatprep.subr.mxu0 0.0
      %621 = vmatpush1.msra.mxu0 0.0
      %622 = vmatprep.subr.mxu0 0.0
      %623 = vmatpush1.msra.mxu0 0.0
      %624 = vmatprep.mubr.f32.mxu0 0.0
      %625 = vmatmul.mubr.f32.gmra.mrb[0].mxu0 %v555
      %v626 = vpop.f32.mrb[0].mxu0
      %v627 = vadd.f32 0.0, %v626
      %v628 = vpop.f32.mrb[0].mxu0
      %629 = vdwg.mxu0
      %v631 = vsel %vm476, %v462, 0
      %v634 = vsel %vm480, %v430, 0
      %636 = vmatprep.subr.mxu0 0.0
      %637 = vmatpush1.msra.mxu0 %v634
      %638 = vmatprep.subr.mxu0 0.0
      %639 = vmatpush1.msra.mxu0 0.0
      %640 = vmatprep.subr.mxu0 0.0
      %641 = vmatpush1.msra.mxu0 0.0
      %642 = vmatprep.subr.mxu0 0.0
      %643 = vmatpush1.msra.mxu0 0.0
      %644 = vmatprep.subr.mxu0 0.0
      %645 = vmatpush1.msra.mxu0 0.0
      %646 = vmatprep.subr.mxu0 0.0
      %647 = vmatpush1.msra.mxu0 0.0
      %648 = vmatprep.subr.mxu0 0.0
      %649 = vmatpush1.msra.mxu0 0.0
      %650 = vmatprep.subr.mxu0 0.0
      %651 = vmatpush1.msra.mxu0 0.0
      %652 = vmatprep.subr.mxu0 0.0
      %653 = vmatpush1.msra.mxu0 0.0
      %654 = vmatprep.subr.mxu0 0.0
      %655 = vmatpush1.msra.mxu0 0.0
      %656 = vmatprep.subr.mxu0 0.0
      %657 = vmatpush1.msra.mxu0 0.0
      %658 = vmatprep.subr.mxu0 0.0
      %659 = vmatpush1.msra.mxu0 0.0
      %660 = vmatprep.subr.mxu0 0.0
      %661 = vmatpush1.msra.mxu0 0.0
      %662 = vmatprep.subr.mxu0 0.0
      %663 = vmatpush1.msra.mxu0 0.0
      %664 = vmatprep.subr.mxu0 0.0
      %665 = vmatpush1.msra.mxu0 0.0
      %666 = vmatprep.subr.mxu0 0.0
      %667 = vmatpush1.msra.mxu0 0.0
      %668 = vmatprep.subr.mxu0 0.0
      %669 = vmatpush1.msra.mxu0 0.0
      %670 = vmatprep.subr.mxu0 0.0
      %671 = vmatpush1.msra.mxu0 0.0
      %672 = vmatprep.subr.mxu0 0.0
      %673 = vmatpush1.msra.mxu0 0.0
      %674 = vmatprep.subr.mxu0 0.0
      %675 = vmatpush1.msra.mxu0 0.0
      %676 = vmatprep.subr.mxu0 0.0
      %677 = vmatpush1.msra.mxu0 0.0
      %678 = vmatprep.subr.mxu0 0.0
      %679 = vmatpush1.msra.mxu0 0.0
      %680 = vmatprep.subr.mxu0 0.0
      %681 = vmatpush1.msra.mxu0 0.0
      %682 = vmatprep.subr.mxu0 0.0
      %683 = vmatpush1.msra.mxu0 0.0
      %684 = vmatprep.subr.mxu0 0.0
      %685 = vmatpush1.msra.mxu0 0.0
      %686 = vmatprep.subr.mxu0 0.0
      %687 = vmatpush1.msra.mxu0 0.0
      %688 = vmatprep.subr.mxu0 0.0
      %689 = vmatpush1.msra.mxu0 0.0
      %690 = vmatprep.subr.mxu0 0.0
      %691 = vmatpush1.msra.mxu0 0.0
      %692 = vmatprep.subr.mxu0 0.0
      %693 = vmatpush1.msra.mxu0 0.0
      %694 = vmatprep.subr.mxu0 0.0
      %695 = vmatpush1.msra.mxu0 0.0
      %696 = vmatprep.subr.mxu0 0.0
      %697 = vmatpush1.msra.mxu0 0.0
      %698 = vmatprep.subr.mxu0 0.0
      %699 = vmatpush1.msra.mxu0 0.0
      %700 = vmatprep.mubr.f32.mxu0 0.0
      %701 = vmatmul.mubr.f32.gmra.mrb[0].mxu0 %v631
      %v702 = vpop.f32.mrb[0].mxu0
      %v703 = vadd.f32 0.0, %v702
      %v704 = vpop.f32.mrb[0].mxu0
      %705 = vdwg.mxu0
      %v707 = vsel %vm476, %v463, 0
      %v710 = vsel %vm480, %v431, 0
      %712 = vmatprep.subr.mxu0 0.0
      %713 = vmatpush1.msra.mxu0 %v710
      %714 = vmatprep.subr.mxu0 0.0
      %715 = vmatpush1.msra.mxu0 0.0
      %716 = vmatprep.subr.mxu0 0.0
      %717 = vmatpush1.msra.mxu0 0.0
      %718 = vmatprep.subr.mxu0 0.0
      %719 = vmatpush1.msra.mxu0 0.0
      %720 = vmatprep.subr.mxu0 0.0
      %721 = vmatpush1.msra.mxu0 0.0
      %722 = vmatprep.subr.mxu0 0.0
      %723 = vmatpush1.msra.mxu0 0.0
      %724 = vmatprep.subr.mxu0 0.0
      %725 = vmatpush1.msra.mxu0 0.0
      %726 = vmatprep.subr.mxu0 0.0
      %727 = vmatpush1.msra.mxu0 0.0
      %728 = vmatprep.subr.mxu0 0.0
      %729 = vmatpush1.msra.mxu0 0.0
      %730 = vmatprep.subr.mxu0 0.0
      %731 = vmatpush1.msra.mxu0 0.0
      %732 = vmatprep.subr.mxu0 0.0
      %733 = vmatpush1.msra.mxu0 0.0
      %734 = vmatprep.subr.mxu0 0.0
      %735 = vmatpush1.msra.mxu0 0.0
      %736 = vmatprep.subr.mxu0 0.0
      %737 = vmatpush1.msra.mxu0 0.0
      %738 = vmatprep.subr.mxu0 0.0
      %739 = vmatpush1.msra.mxu0 0.0
      %740 = vmatprep.subr.mxu0 0.0
      %741 = vmatpush1.msra.mxu0 0.0
      %742 = vmatprep.subr.mxu0 0.0
      %743 = vmatpush1.msra.mxu0 0.0
      %744 = vmatprep.subr.mxu0 0.0
      %745 = vmatpush1.msra.mxu0 0.0
      %746 = vmatprep.subr.mxu0 0.0
      %747 = vmatpush1.msra.mxu0 0.0
      %748 = vmatprep.subr.mxu0 0.0
      %749 = vmatpush1.msra.mxu0 0.0
      %750 = vmatprep.subr.mxu0 0.0
      %751 = vmatpush1.msra.mxu0 0.0
      %752 = vmatprep.subr.mxu0 0.0
      %753 = vmatpush1.msra.mxu0 0.0
      %754 = vmatprep.subr.mxu0 0.0
      %755 = vmatpush1.msra.mxu0 0.0
      %756 = vmatprep.subr.mxu0 0.0
      %757 = vmatpush1.msra.mxu0 0.0
      %758 = vmatprep.subr.mxu0 0.0
      %759 = vmatpush1.msra.mxu0 0.0
      %760 = vmatprep.subr.mxu0 0.0
      %761 = vmatpush1.msra.mxu0 0.0
      %762 = vmatprep.subr.mxu0 0.0
      %763 = vmatpush1.msra.mxu0 0.0
      %764 = vmatprep.subr.mxu0 0.0
      %765 = vmatpush1.msra.mxu0 0.0
      %766 = vmatprep.subr.mxu0 0.0
      %767 = vmatpush1.msra.mxu0 0.0
      %768 = vmatprep.subr.mxu0 0.0
      %769 = vmatpush1.msra.mxu0 0.0
      %770 = vmatprep.subr.mxu0 0.0
      %771 = vmatpush1.msra.mxu0 0.0
      %772 = vmatprep.subr.mxu0 0.0
      %773 = vmatpush1.msra.mxu0 0.0
      %774 = vmatprep.subr.mxu0 0.0
      %775 = vmatpush1.msra.mxu0 0.0
      %776 = vmatprep.mubr.f32.mxu0 0.0
      %777 = vmatmul.mubr.f32.gmra.mrb[0].mxu0 %v707
      %v778 = vpop.f32.mrb[0].mxu0
      %v779 = vadd.f32 0.0, %v778
      %v780 = vpop.f32.mrb[0].mxu0
      %781 = vdwg.mxu0
      %v783 = vsel %vm476, %v464, 0
      %v786 = vsel %vm480, %v432, 0
      %788 = vmatprep.subr.mxu0 0.0
      %789 = vmatpush1.msra.mxu0 %v786
      %790 = vmatprep.subr.mxu0 0.0
      %791 = vmatpush1.msra.mxu0 0.0
      %792 = vmatprep.subr.mxu0 0.0
      %793 = vmatpush1.msra.mxu0 0.0
      %794 = vmatprep.subr.mxu0 0.0
      %795 = vmatpush1.msra.mxu0 0.0
      %796 = vmatprep.subr.mxu0 0.0
      %797 = vmatpush1.msra.mxu0 0.0
      %798 = vmatprep.subr.mxu0 0.0
      %799 = vmatpush1.msra.mxu0 0.0
      %800 = vmatprep.subr.mxu0 0.0
      %801 = vmatpush1.msra.mxu0 0.0
      %802 = vmatprep.subr.mxu0 0.0
      %803 = vmatpush1.msra.mxu0 0.0
      %804 = vmatprep.subr.mxu0 0.0
      %805 = vmatpush1.msra.mxu0 0.0
      %806 = vmatprep.subr.mxu0 0.0
      %807 = vmatpush1.msra.mxu0 0.0
      %808 = vmatprep.subr.mxu0 0.0
      %809 = vmatpush1.msra.mxu0 0.0
      %810 = vmatprep.subr.mxu0 0.0
      %811 = vmatpush1.msra.mxu0 0.0
      %812 = vmatprep.subr.mxu0 0.0
      %813 = vmatpush1.msra.mxu0 0.0
      %814 = vmatprep.subr.mxu0 0.0
      %815 = vmatpush1.msra.mxu0 0.0
      %816 = vmatprep.subr.mxu0 0.0
      %817 = vmatpush1.msra.mxu0 0.0
      %818 = vmatprep.subr.mxu0 0.0
      %819 = vmatpush1.msra.mxu0 0.0
      %820 = vmatprep.subr.mxu0 0.0
      %821 = vmatpush1.msra.mxu0 0.0
      %822 = vmatprep.subr.mxu0 0.0
      %823 = vmatpush1.msra.mxu0 0.0
      %824 = vmatprep.subr.mxu0 0.0
      %825 = vmatpush1.msra.mxu0 0.0
      %826 = vmatprep.subr.mxu0 0.0
      %827 = vmatpush1.msra.mxu0 0.0
      %828 = vmatprep.subr.mxu0 0.0
      %829 = vmatpush1.msra.mxu0 0.0
      %830 = vmatprep.subr.mxu0 0.0
      %831 = vmatpush1.msra.mxu0 0.0
      %832 = vmatprep.subr.mxu0 0.0
      %833 = vmatpush1.msra.mxu0 0.0
      %834 = vmatprep.subr.mxu0 0.0
      %835 = vmatpush1.msra.mxu0 0.0
      %836 = vmatprep.subr.mxu0 0.0
      %837 = vmatpush1.msra.mxu0 0.0
      %838 = vmatprep.subr.mxu0 0.0
      %839 = vmatpush1.msra.mxu0 0.0
      %840 = vmatprep.subr.mxu0 0.0
      %841 = vmatpush1.msra.mxu0 0.0
      %842 = vmatprep.subr.mxu0 0.0
      %843 = vmatpush1.msra.mxu0 0.0
      %844 = vmatprep.subr.mxu0 0.0
      %845 = vmatpush1.msra.mxu0 0.0
      %846 = vmatprep.subr.mxu0 0.0
      %847 = vmatpush1.msra.mxu0 0.0
      %848 = vmatprep.subr.mxu0 0.0
      %849 = vmatpush1.msra.mxu0 0.0
      %850 = vmatprep.subr.mxu0 0.0
      %851 = vmatpush1.msra.mxu0 0.0
      %852 = vmatprep.mubr.f32.mxu0 0.0
      %853 = vmatmul.mubr.f32.gmra.mrb[0].mxu0 %v783
      %v854 = vpop.f32.mrb[0].mxu0
      %v855 = vadd.f32 0.0, %v854
      %v856 = vpop.f32.mrb[0].mxu0
      %857 = vdwg.mxu0
      %v859 = vsel %vm476, %v465, 0
      %v862 = vsel %vm480, %v433, 0
      %864 = vmatprep.subr.mxu0 0.0
      %865 = vmatpush1.msra.mxu0 %v862
      %866 = vmatprep.subr.mxu0 0.0
      %867 = vmatpush1.msra.mxu0 0.0
      %868 = vmatprep.subr.mxu0 0.0
      %869 = vmatpush1.msra.mxu0 0.0
      %870 = vmatprep.subr.mxu0 0.0
      %871 = vmatpush1.msra.mxu0 0.0
      %872 = vmatprep.subr.mxu0 0.0
      %873 = vmatpush1.msra.mxu0 0.0
      %874 = vmatprep.subr.mxu0 0.0
      %875 = vmatpush1.msra.mxu0 0.0
      %876 = vmatprep.subr.mxu0 0.0
      %877 = vmatpush1.msra.mxu0 0.0
      %878 = vmatprep.subr.mxu0 0.0
      %879 = vmatpush1.msra.mxu0 0.0
      %880 = vmatprep.subr.mxu0 0.0
      %881 = vmatpush1.msra.mxu0 0.0
      %882 = vmatprep.subr.mxu0 0.0
      %883 = vmatpush1.msra.mxu0 0.0
      %884 = vmatprep.subr.mxu0 0.0
      %885 = vmatpush1.msra.mxu0 0.0
      %886 = vmatprep.subr.mxu0 0.0
      %887 = vmatpush1.msra.mxu0 0.0
      %888 = vmatprep.subr.mxu0 0.0
      %889 = vmatpush1.msra.mxu0 0.0
      %890 = vmatprep.subr.mxu0 0.0
      %891 = vmatpush1.msra.mxu0 0.0
      %892 = vmatprep.subr.mxu0 0.0
      %893 = vmatpush1.msra.mxu0 0.0
      %894 = vmatprep.subr.mxu0 0.0
      %895 = vmatpush1.msra.mxu0 0.0
      %896 = vmatprep.subr.mxu0 0.0
      %897 = vmatpush1.msra.mxu0 0.0
      %898 = vmatprep.subr.mxu0 0.0
      %899 = vmatpush1.msra.mxu0 0.0
      %900 = vmatprep.subr.mxu0 0.0
      %901 = vmatpush1.msra.mxu0 0.0
      %902 = vmatprep.subr.mxu0 0.0
      %903 = vmatpush1.msra.mxu0 0.0
      %904 = vmatprep.subr.mxu0 0.0
      %905 = vmatpush1.msra.mxu0 0.0
      %906 = vmatprep.subr.mxu0 0.0
      %907 = vmatpush1.msra.mxu0 0.0
      %908 = vmatprep.subr.mxu0 0.0
      %909 = vmatpush1.msra.mxu0 0.0
      %910 = vmatprep.subr.mxu0 0.0
      %911 = vmatpush1.msra.mxu0 0.0
      %912 = vmatprep.subr.mxu0 0.0
      %913 = vmatpush1.msra.mxu0 0.0
      %914 = vmatprep.subr.mxu0 0.0
      %915 = vmatpush1.msra.mxu0 0.0
      %916 = vmatprep.subr.mxu0 0.0
      %917 = vmatpush1.msra.mxu0 0.0
      %918 = vmatprep.subr.mxu0 0.0
      %919 = vmatpush1.msra.mxu0 0.0
      %920 = vmatprep.subr.mxu0 0.0
      %921 = vmatpush1.msra.mxu0 0.0
      %922 = vmatprep.subr.mxu0 0.0
      %923 = vmatpush1.msra.mxu0 0.0
      %924 = vmatprep.subr.mxu0 0.0
      %925 = vmatpush1.msra.mxu0 0.0
      %926 = vmatprep.subr.mxu0 0.0
      %927 = vmatpush1.msra.mxu0 0.0
      %928 = vmatprep.mubr.f32.mxu0 0.0
      %929 = vmatmul.mubr.f32.gmra.mrb[0].mxu0 %v859
      %v930 = vpop.f32.mrb[0].mxu0
      %v931 = vadd.f32 0.0, %v930
      %v932 = vpop.f32.mrb[0].mxu0
      %933 = vdwg.mxu0
      %v935 = vsel %vm476, %v466, 0
      %v938 = vsel %vm480, %v434, 0
      %940 = vmatprep.subr.mxu0 0.0
      %941 = vmatpush1.msra.mxu0 %v938
      %942 = vmatprep.subr.mxu0 0.0
      %943 = vmatpush1.msra.mxu0 0.0
      %944 = vmatprep.subr.mxu0 0.0
      %945 = vmatpush1.msra.mxu0 0.0
      %946 = vmatprep.subr.mxu0 0.0
      %947 = vmatpush1.msra.mxu0 0.0
      %948 = vmatprep.subr.mxu0 0.0
      %949 = vmatpush1.msra.mxu0 0.0
      %950 = vmatprep.subr.mxu0 0.0
      %951 = vmatpush1.msra.mxu0 0.0
      %952 = vmatprep.subr.mxu0 0.0
      %953 = vmatpush1.msra.mxu0 0.0
      %954 = vmatprep.subr.mxu0 0.0
      %955 = vmatpush1.msra.mxu0 0.0
      %956 = vmatprep.subr.mxu0 0.0
      %957 = vmatpush1.msra.mxu0 0.0
      %958 = vmatprep.subr.mxu0 0.0
      %959 = vmatpush1.msra.mxu0 0.0
      %960 = vmatprep.subr.mxu0 0.0
      %961 = vmatpush1.msra.mxu0 0.0
      %962 = vmatprep.subr.mxu0 0.0
      %963 = vmatpush1.msra.mxu0 0.0
      %964 = vmatprep.subr.mxu0 0.0
      %965 = vmatpush1.msra.mxu0 0.0
      %966 = vmatprep.subr.mxu0 0.0
      %967 = vmatpush1.msra.mxu0 0.0
      %968 = vmatprep.subr.mxu0 0.0
      %969 = vmatpush1.msra.mxu0 0.0
      %970 = vmatprep.subr.mxu0 0.0
      %971 = vmatpush1.msra.mxu0 0.0
      %972 = vmatprep.subr.mxu0 0.0
      %973 = vmatpush1.msra.mxu0 0.0
      %974 = vmatprep.subr.mxu0 0.0
      %975 = vmatpush1.msra.mxu0 0.0
      %976 = vmatprep.subr.mxu0 0.0
      %977 = vmatpush1.msra.mxu0 0.0
      %978 = vmatprep.subr.mxu0 0.0
      %979 = vmatpush1.msra.mxu0 0.0
      %980 = vmatprep.subr.mxu0 0.0
      %981 = vmatpush1.msra.mxu0 0.0
      %982 = vmatprep.subr.mxu0 0.0
      %983 = vmatpush1.msra.mxu0 0.0
      %984 = vmatprep.subr.mxu0 0.0
      %985 = vmatpush1.msra.mxu0 0.0
      %986 = vmatprep.subr.mxu0 0.0
      %987 = vmatpush1.msra.mxu0 0.0
      %988 = vmatprep.subr.mxu0 0.0
      %989 = vmatpush1.msra.mxu0 0.0
      %990 = vmatprep.subr.mxu0 0.0
      %991 = vmatpush1.msra.mxu0 0.0
      %992 = vmatprep.subr.mxu0 0.0
      %993 = vmatpush1.msra.mxu0 0.0
      %994 = vmatprep.subr.mxu0 0.0
      %995 = vmatpush1.msra.mxu0 0.0
      %996 = vmatprep.subr.mxu0 0.0
      %997 = vmatpush1.msra.mxu0 0.0
      %998 = vmatprep.subr.mxu0 0.0
      %999 = vmatpush1.msra.mxu0 0.0
      %1000 = vmatprep.subr.mxu0 0.0
      %1001 = vmatpush1.msra.mxu0 0.0
      %1002 = vmatprep.subr.mxu0 0.0
      %1003 = vmatpush1.msra.mxu0 0.0
      %1004 = vmatprep.mubr.f32.mxu0 0.0
      %1005 = vmatmul.mubr.f32.gmra.mrb[0].mxu0 %v935
      %v1006 = vpop.f32.mrb[0].mxu0
      %v1007 = vadd.f32 0.0, %v1006
      %v1008 = vpop.f32.mrb[0].mxu0
      %1009 = vdwg.mxu0
      %v1011 = vsel %vm476, %v467, 0
      %v1014 = vsel %vm480, %v435, 0
      %1016 = vmatprep.subr.mxu0 0.0
      %1017 = vmatpush1.msra.mxu0 %v1014
      %1018 = vmatprep.subr.mxu0 0.0
      %1019 = vmatpush1.msra.mxu0 0.0
      %1020 = vmatprep.subr.mxu0 0.0
      %1021 = vmatpush1.msra.mxu0 0.0
      %1022 = vmatprep.subr.mxu0 0.0
      %1023 = vmatpush1.msra.mxu0 0.0
      %1024 = vmatprep.subr.mxu0 0.0
      %1025 = vmatpush1.msra.mxu0 0.0
      %1026 = vmatprep.subr.mxu0 0.0
      %1027 = vmatpush1.msra.mxu0 0.0
      %1028 = vmatprep.subr.mxu0 0.0
      %1029 = vmatpush1.msra.mxu0 0.0
      %1030 = vmatprep.subr.mxu0 0.0
      %1031 = vmatpush1.msra.mxu0 0.0
      %1032 = vmatprep.subr.mxu0 0.0
      %1033 = vmatpush1.msra.mxu0 0.0
      %1034 = vmatprep.subr.mxu0 0.0
      %1035 = vmatpush1.msra.mxu0 0.0
      %1036 = vmatprep.subr.mxu0 0.0
      %1037 = vmatpush1.msra.mxu0 0.0
      %1038 = vmatprep.subr.mxu0 0.0
      %1039 = vmatpush1.msra.mxu0 0.0
      %1040 = vmatprep.subr.mxu0 0.0
      %1041 = vmatpush1.msra.mxu0 0.0
      %1042 = vmatprep.subr.mxu0 0.0
      %1043 = vmatpush1.msra.mxu0 0.0
      %1044 = vmatprep.subr.mxu0 0.0
      %1045 = vmatpush1.msra.mxu0 0.0
      %1046 = vmatprep.subr.mxu0 0.0
      %1047 = vmatpush1.msra.mxu0 0.0
      %1048 = vmatprep.subr.mxu0 0.0
      %1049 = vmatpush1.msra.mxu0 0.0
      %1050 = vmatprep.subr.mxu0 0.0
      %1051 = vmatpush1.msra.mxu0 0.0
      %1052 = vmatprep.subr.mxu0 0.0
      %1053 = vmatpush1.msra.mxu0 0.0
      %1054 = vmatprep.subr.mxu0 0.0
      %1055 = vmatpush1.msra.mxu0 0.0
      %1056 = vmatprep.subr.mxu0 0.0
      %1057 = vmatpush1.msra.mxu0 0.0
      %1058 = vmatprep.subr.mxu0 0.0
      %1059 = vmatpush1.msra.mxu0 0.0
      %1060 = vmatprep.subr.mxu0 0.0
      %1061 = vmatpush1.msra.mxu0 0.0
      %1062 = vmatprep.subr.mxu0 0.0
      %1063 = vmatpush1.msra.mxu0 0.0
      %1064 = vmatprep.subr.mxu0 0.0
      %1065 = vmatpush1.msra.mxu0 0.0
      %1066 = vmatprep.subr.mxu0 0.0
      %1067 = vmatpush1.msra.mxu0 0.0
      %1068 = vmatprep.subr.mxu0 0.0
      %1069 = vmatpush1.msra.mxu0 0.0
      %1070 = vmatprep.subr.mxu0 0.0
      %1071 = vmatpush1.msra.mxu0 0.0
      %1072 = vmatprep.subr.mxu0 0.0
      %1073 = vmatpush1.msra.mxu0 0.0
      %1074 = vmatprep.subr.mxu0 0.0
      %1075 = vmatpush1.msra.mxu0 0.0
      %1076 = vmatprep.subr.mxu0 0.0
      %1077 = vmatpush1.msra.mxu0 0.0
      %1078 = vmatprep.subr.mxu0 0.0
      %1079 = vmatpush1.msra.mxu0 0.0
      %1080 = vmatprep.mubr.f32.mxu0 0.0
      %1081 = vmatmul.mubr.f32.gmra.mrb[0].mxu0 %v1011
      %v1082 = vpop.f32.mrb[0].mxu0
      %v1083 = vadd.f32 0.0, %v1082
      %v1084 = vpop.f32.mrb[0].mxu0
      %1085 = vdwg.mxu0
      %v1087 = vsel %vm476, %v468, 0
      %v1090 = vsel %vm480, %v436, 0
      %1092 = vmatprep.subr.mxu0 0.0
      %1093 = vmatpush1.msra.mxu0 %v1090
      %1094 = vmatprep.subr.mxu0 0.0
      %1095 = vmatpush1.msra.mxu0 0.0
      %1096 = vmatprep.subr.mxu0 0.0
      %1097 = vmatpush1.msra.mxu0 0.0
      %1098 = vmatprep.subr.mxu0 0.0
      %1099 = vmatpush1.msra.mxu0 0.0
      %1100 = vmatprep.subr.mxu0 0.0
      %1101 = vmatpush1.msra.mxu0 0.0
      %1102 = vmatprep.subr.mxu0 0.0
      %1103 = vmatpush1.msra.mxu0 0.0
      %1104 = vmatprep.subr.mxu0 0.0
      %1105 = vmatpush1.msra.mxu0 0.0
      %1106 = vmatprep.subr.mxu0 0.0
      %1107 = vmatpush1.msra.mxu0 0.0
      %1108 = vmatprep.subr.mxu0 0.0
      %1109 = vmatpush1.msra.mxu0 0.0
      %1110 = vmatprep.subr.mxu0 0.0
      %1111 = vmatpush1.msra.mxu0 0.0
      %1112 = vmatprep.subr.mxu0 0.0
      %1113 = vmatpush1.msra.mxu0 0.0
      %1114 = vmatprep.subr.mxu0 0.0
      %1115 = vmatpush1.msra.mxu0 0.0
      %1116 = vmatprep.subr.mxu0 0.0
      %1117 = vmatpush1.msra.mxu0 0.0
      %1118 = vmatprep.subr.mxu0 0.0
      %1119 = vmatpush1.msra.mxu0 0.0
      %1120 = vmatprep.subr.mxu0 0.0
      %1121 = vmatpush1.msra.mxu0 0.0
      %1122 = vmatprep.subr.mxu0 0.0
      %1123 = vmatpush1.msra.mxu0 0.0
      %1124 = vmatprep.subr.mxu0 0.0
      %1125 = vmatpush1.msra.mxu0 0.0
      %1126 = vmatprep.subr.mxu0 0.0
      %1127 = vmatpush1.msra.mxu0 0.0
      %1128 = vmatprep.subr.mxu0 0.0
      %1129 = vmatpush1.msra.mxu0 0.0
      %1130 = vmatprep.subr.mxu0 0.0
      %1131 = vmatpush1.msra.mxu0 0.0
      %1132 = vmatprep.subr.mxu0 0.0
      %1133 = vmatpush1.msra.mxu0 0.0
      %1134 = vmatprep.subr.mxu0 0.0
      %1135 = vmatpush1.msra.mxu0 0.0
      %1136 = vmatprep.subr.mxu0 0.0
      %1137 = vmatpush1.msra.mxu0 0.0
      %1138 = vmatprep.subr.mxu0 0.0
      %1139 = vmatpush1.msra.mxu0 0.0
      %1140 = vmatprep.subr.mxu0 0.0
      %1141 = vmatpush1.msra.mxu0 0.0
      %1142 = vmatprep.subr.mxu0 0.0
      %1143 = vmatpush1.msra.mxu0 0.0
      %1144 = vmatprep.subr.mxu0 0.0
      %1145 = vmatpush1.msra.mxu0 0.0
      %1146 = vmatprep.subr.mxu0 0.0
      %1147 = vmatpush1.msra.mxu0 0.0
      %1148 = vmatprep.subr.mxu0 0.0
      %1149 = vmatpush1.msra.mxu0 0.0
      %1150 = vmatprep.subr.mxu0 0.0
      %1151 = vmatpush1.msra.mxu0 0.0
      %1152 = vmatprep.subr.mxu0 0.0
      %1153 = vmatpush1.msra.mxu0 0.0
      %1154 = vmatprep.subr.mxu0 0.0
      %1155 = vmatpush1.msra.mxu0 0.0
      %1156 = vmatprep.mubr.f32.mxu0 0.0
      %1157 = vmatmul.mubr.f32.gmra.mrb[0].mxu0 %v1087
      %v1158 = vpop.f32.mrb[0].mxu0
      %v1159 = vadd.f32 0.0, %v1158
      %v1160 = vpop.f32.mrb[0].mxu0
      %1161 = vdwg.mxu0
      %v1163 = vsel %vm476, %v469, 0
      %v1166 = vsel %vm480, %v437, 0
      %1168 = vmatprep.subr.mxu0 0.0
      %1169 = vmatpush1.msra.mxu0 %v1166
      %1170 = vmatprep.subr.mxu0 0.0
      %1171 = vmatpush1.msra.mxu0 0.0
      %1172 = vmatprep.subr.mxu0 0.0
      %1173 = vmatpush1.msra.mxu0 0.0
      %1174 = vmatprep.subr.mxu0 0.0
      %1175 = vmatpush1.msra.mxu0 0.0
      %1176 = vmatprep.subr.mxu0 0.0
      %1177 = vmatpush1.msra.mxu0 0.0
      %1178 = vmatprep.subr.mxu0 0.0
      %1179 = vmatpush1.msra.mxu0 0.0
      %1180 = vmatprep.subr.mxu0 0.0
      %1181 = vmatpush1.msra.mxu0 0.0
      %1182 = vmatprep.subr.mxu0 0.0
      %1183 = vmatpush1.msra.mxu0 0.0
      %1184 = vmatprep.subr.mxu0 0.0
      %1185 = vmatpush1.msra.mxu0 0.0
      %1186 = vmatprep.subr.mxu0 0.0
      %1187 = vmatpush1.msra.mxu0 0.0
      %1188 = vmatprep.subr.mxu0 0.0
      %1189 = vmatpush1.msra.mxu0 0.0
      %1190 = vmatprep.subr.mxu0 0.0
      %1191 = vmatpush1.msra.mxu0 0.0
      %1192 = vmatprep.subr.mxu0 0.0
      %1193 = vmatpush1.msra.mxu0 0.0
      %1194 = vmatprep.subr.mxu0 0.0
      %1195 = vmatpush1.msra.mxu0 0.0
      %1196 = vmatprep.subr.mxu0 0.0
      %1197 = vmatpush1.msra.mxu0 0.0
      %1198 = vmatprep.subr.mxu0 0.0
      %1199 = vmatpush1.msra.mxu0 0.0
      %1200 = vmatprep.subr.mxu0 0.0
      %1201 = vmatpush1.msra.mxu0 0.0
      %1202 = vmatprep.subr.mxu0 0.0
      %1203 = vmatpush1.msra.mxu0 0.0
      %1204 = vmatprep.subr.mxu0 0.0
      %1205 = vmatpush1.msra.mxu0 0.0
      %1206 = vmatprep.subr.mxu0 0.0
      %1207 = vmatpush1.msra.mxu0 0.0
      %1208 = vmatprep.subr.mxu0 0.0
      %1209 = vmatpush1.msra.mxu0 0.0
      %1210 = vmatprep.subr.mxu0 0.0
      %1211 = vmatpush1.msra.mxu0 0.0
      %1212 = vmatprep.subr.mxu0 0.0
      %1213 = vmatpush1.msra.mxu0 0.0
      %1214 = vmatprep.subr.mxu0 0.0
      %1215 = vmatpush1.msra.mxu0 0.0
      %1216 = vmatprep.subr.mxu0 0.0
      %1217 = vmatpush1.msra.mxu0 0.0
      %1218 = vmatprep.subr.mxu0 0.0
      %1219 = vmatpush1.msra.mxu0 0.0
      %1220 = vmatprep.subr.mxu0 0.0
      %1221 = vmatpush1.msra.mxu0 0.0
      %1222 = vmatprep.subr.mxu0 0.0
      %1223 = vmatpush1.msra.mxu0 0.0
      %1224 = vmatprep.subr.mxu0 0.0
      %1225 = vmatpush1.msra.mxu0 0.0
      %1226 = vmatprep.subr.mxu0 0.0
      %1227 = vmatpush1.msra.mxu0 0.0
      %1228 = vmatprep.subr.mxu0 0.0
      %1229 = vmatpush1.msra.mxu0 0.0
      %1230 = vmatprep.subr.mxu0 0.0
      %1231 = vmatpush1.msra.mxu0 0.0
      %1232 = vmatprep.mubr.f32.mxu0 0.0
      %1233 = vmatmul.mubr.f32.gmra.mrb[0].mxu0 %v1163
      %v1234 = vpop.f32.mrb[0].mxu0
      %v1235 = vadd.f32 0.0, %v1234
      %v1236 = vpop.f32.mrb[0].mxu0
      %1237 = vdwg.mxu0
      %v1239 = vsel %vm476, %v470, 0
      %v1242 = vsel %vm480, %v438, 0
      %1244 = vmatprep.subr.mxu0 0.0
      %1245 = vmatpush1.msra.mxu0 %v1242
      %1246 = vmatprep.subr.mxu0 0.0
      %1247 = vmatpush1.msra.mxu0 0.0
      %1248 = vmatprep.subr.mxu0 0.0
      %1249 = vmatpush1.msra.mxu0 0.0
      %1250 = vmatprep.subr.mxu0 0.0
      %1251 = vmatpush1.msra.mxu0 0.0
      %1252 = vmatprep.subr.mxu0 0.0
      %1253 = vmatpush1.msra.mxu0 0.0
      %1254 = vmatprep.subr.mxu0 0.0
      %1255 = vmatpush1.msra.mxu0 0.0
      %1256 = vmatprep.subr.mxu0 0.0
      %1257 = vmatpush1.msra.mxu0 0.0
      %1258 = vmatprep.subr.mxu0 0.0
      %1259 = vmatpush1.msra.mxu0 0.0
      %1260 = vmatprep.subr.mxu0 0.0
      %1261 = vmatpush1.msra.mxu0 0.0
      %1262 = vmatprep.subr.mxu0 0.0
      %1263 = vmatpush1.msra.mxu0 0.0
      %1264 = vmatprep.subr.mxu0 0.0
      %1265 = vmatpush1.msra.mxu0 0.0
      %1266 = vmatprep.subr.mxu0 0.0
      %1267 = vmatpush1.msra.mxu0 0.0
      %1268 = vmatprep.subr.mxu0 0.0
      %1269 = vmatpush1.msra.mxu0 0.0
      %1270 = vmatprep.subr.mxu0 0.0
      %1271 = vmatpush1.msra.mxu0 0.0
      %1272 = vmatprep.subr.mxu0 0.0
      %1273 = vmatpush1.msra.mxu0 0.0
      %1274 = vmatprep.subr.mxu0 0.0
      %1275 = vmatpush1.msra.mxu0 0.0
      %1276 = vmatprep.subr.mxu0 0.0
      %1277 = vmatpush1.msra.mxu0 0.0
      %1278 = vmatprep.subr.mxu0 0.0
      %1279 = vmatpush1.msra.mxu0 0.0
      %1280 = vmatprep.subr.mxu0 0.0
      %1281 = vmatpush1.msra.mxu0 0.0
      %1282 = vmatprep.subr.mxu0 0.0
      %1283 = vmatpush1.msra.mxu0 0.0
      %1284 = vmatprep.subr.mxu0 0.0
      %1285 = vmatpush1.msra.mxu0 0.0
      %1286 = vmatprep.subr.mxu0 0.0
      %1287 = vmatpush1.msra.mxu0 0.0
      %1288 = vmatprep.subr.mxu0 0.0
      %1289 = vmatpush1.msra.mxu0 0.0
      %1290 = vmatprep.subr.mxu0 0.0
      %1291 = vmatpush1.msra.mxu0 0.0
      %1292 = vmatprep.subr.mxu0 0.0
      %1293 = vmatpush1.msra.mxu0 0.0
      %1294 = vmatprep.subr.mxu0 0.0
      %1295 = vmatpush1.msra.mxu0 0.0
      %1296 = vmatprep.subr.mxu0 0.0
      %1297 = vmatpush1.msra.mxu0 0.0
      %1298 = vmatprep.subr.mxu0 0.0
      %1299 = vmatpush1.msra.mxu0 0.0
      %1300 = vmatprep.subr.mxu0 0.0
      %1301 = vmatpush1.msra.mxu0 0.0
      %1302 = vmatprep.subr.mxu0 0.0
      %1303 = vmatpush1.msra.mxu0 0.0
      %1304 = vmatprep.subr.mxu0 0.0
      %1305 = vmatpush1.msra.mxu0 0.0
      %1306 = vmatprep.subr.mxu0 0.0
      %1307 = vmatpush1.msra.mxu0 0.0
      %1308 = vmatprep.mubr.f32.mxu0 0.0
      %1309 = vmatmul.mubr.f32.gmra.mrb[0].mxu0 %v1239
      %v1310 = vpop.f32.mrb[0].mxu0
      %v1311 = vadd.f32 0.0, %v1310
      %v1312 = vpop.f32.mrb[0].mxu0
      %1313 = vdwg.mxu0
      %v1315 = vsel %vm476, %v471, 0
      %v1318 = vsel %vm480, %v439, 0
      %1320 = vmatprep.subr.mxu0 0.0
      %1321 = vmatpush1.msra.mxu0 %v1318
      %1322 = vmatprep.subr.mxu0 0.0
      %1323 = vmatpush1.msra.mxu0 0.0
      %1324 = vmatprep.subr.mxu0 0.0
      %1325 = vmatpush1.msra.mxu0 0.0
      %1326 = vmatprep.subr.mxu0 0.0
      %1327 = vmatpush1.msra.mxu0 0.0
      %1328 = vmatprep.subr.mxu0 0.0
      %1329 = vmatpush1.msra.mxu0 0.0
      %1330 = vmatprep.subr.mxu0 0.0
      %1331 = vmatpush1.msra.mxu0 0.0
      %1332 = vmatprep.subr.mxu0 0.0
      %1333 = vmatpush1.msra.mxu0 0.0
      %1334 = vmatprep.subr.mxu0 0.0
      %1335 = vmatpush1.msra.mxu0 0.0
      %1336 = vmatprep.subr.mxu0 0.0
      %1337 = vmatpush1.msra.mxu0 0.0
      %1338 = vmatprep.subr.mxu0 0.0
      %1339 = vmatpush1.msra.mxu0 0.0
      %1340 = vmatprep.subr.mxu0 0.0
      %1341 = vmatpush1.msra.mxu0 0.0
      %1342 = vmatprep.subr.mxu0 0.0
      %1343 = vmatpush1.msra.mxu0 0.0
      %1344 = vmatprep.subr.mxu0 0.0
      %1345 = vmatpush1.msra.mxu0 0.0
      %1346 = vmatprep.subr.mxu0 0.0
      %1347 = vmatpush1.msra.mxu0 0.0
      %1348 = vmatprep.subr.mxu0 0.0
      %1349 = vmatpush1.msra.mxu0 0.0
      %1350 = vmatprep.subr.mxu0 0.0
      %1351 = vmatpush1.msra.mxu0 0.0
      %1352 = vmatprep.subr.mxu0 0.0
      %1353 = vmatpush1.msra.mxu0 0.0
      %1354 = vmatprep.subr.mxu0 0.0
      %1355 = vmatpush1.msra.mxu0 0.0
      %1356 = vmatprep.subr.mxu0 0.0
      %1357 = vmatpush1.msra.mxu0 0.0
      %1358 = vmatprep.subr.mxu0 0.0
      %1359 = vmatpush1.msra.mxu0 0.0
      %1360 = vmatprep.subr.mxu0 0.0
      %1361 = vmatpush1.msra.mxu0 0.0
      %1362 = vmatprep.subr.mxu0 0.0
      %1363 = vmatpush1.msra.mxu0 0.0
      %1364 = vmatprep.subr.mxu0 0.0
      %1365 = vmatpush1.msra.mxu0 0.0
      %1366 = vmatprep.subr.mxu0 0.0
      %1367 = vmatpush1.msra.mxu0 0.0
      %1368 = vmatprep.subr.mxu0 0.0
      %1369 = vmatpush1.msra.mxu0 0.0
      %1370 = vmatprep.subr.mxu0 0.0
      %1371 = vmatpush1.msra.mxu0 0.0
      %1372 = vmatprep.subr.mxu0 0.0
      %1373 = vmatpush1.msra.mxu0 0.0
      %1374 = vmatprep.subr.mxu0 0.0
      %1375 = vmatpush1.msra.mxu0 0.0
      %1376 = vmatprep.subr.mxu0 0.0
      %1377 = vmatpush1.msra.mxu0 0.0
      %1378 = vmatprep.subr.mxu0 0.0
      %1379 = vmatpush1.msra.mxu0 0.0
      %1380 = vmatprep.subr.mxu0 0.0
      %1381 = vmatpush1.msra.mxu0 0.0
      %1382 = vmatprep.subr.mxu0 0.0
      %1383 = vmatpush1.msra.mxu0 0.0
      %1384 = vmatprep.mubr.f32.mxu0 0.0
      %1385 = vmatmul.mubr.f32.gmra.mrb[0].mxu0 %v1315
      %v1386 = vpop.f32.mrb[0].mxu0
      %v1387 = vadd.f32 0.0, %v1386
      %v1388 = vpop.f32.mrb[0].mxu0
      %1389 = vdwg.mxu0
      %v1391 = vsel %vm476, %v472, 0
      %v1394 = vsel %vm480, %v440, 0
      %1396 = vmatprep.subr.mxu0 0.0
      %1397 = vmatpush1.msra.mxu0 %v1394
      %1398 = vmatprep.subr.mxu0 0.0
      %1399 = vmatpush1.msra.mxu0 0.0
      %1400 = vmatprep.subr.mxu0 0.0
      %1401 = vmatpush1.msra.mxu0 0.0
      %1402 = vmatprep.subr.mxu0 0.0
      %1403 = vmatpush1.msra.mxu0 0.0
      %1404 = vmatprep.subr.mxu0 0.0
      %1405 = vmatpush1.msra.mxu0 0.0
      %1406 = vmatprep.subr.mxu0 0.0
      %1407 = vmatpush1.msra.mxu0 0.0
      %1408 = vmatprep.subr.mxu0 0.0
      %1409 = vmatpush1.msra.mxu0 0.0
      %1410 = vmatprep.subr.mxu0 0.0
      %1411 = vmatpush1.msra.mxu0 0.0
      %1412 = vmatprep.subr.mxu0 0.0
      %1413 = vmatpush1.msra.mxu0 0.0
      %1414 = vmatprep.subr.mxu0 0.0
      %1415 = vmatpush1.msra.mxu0 0.0
      %1416 = vmatprep.subr.mxu0 0.0
      %1417 = vmatpush1.msra.mxu0 0.0
      %1418 = vmatprep.subr.mxu0 0.0
      %1419 = vmatpush1.msra.mxu0 0.0
      %1420 = vmatprep.subr.mxu0 0.0
      %1421 = vmatpush1.msra.mxu0 0.0
      %1422 = vmatprep.subr.mxu0 0.0
      %1423 = vmatpush1.msra.mxu0 0.0
      %1424 = vmatprep.subr.mxu0 0.0
      %1425 = vmatpush1.msra.mxu0 0.0
      %1426 = vmatprep.subr.mxu0 0.0
      %1427 = vmatpush1.msra.mxu0 0.0
      %1428 = vmatprep.subr.mxu0 0.0
      %1429 = vmatpush1.msra.mxu0 0.0
      %1430 = vmatprep.subr.mxu0 0.0
      %1431 = vmatpush1.msra.mxu0 0.0
      %1432 = vmatprep.subr.mxu0 0.0
      %1433 = vmatpush1.msra.mxu0 0.0
      %1434 = vmatprep.subr.mxu0 0.0
      %1435 = vmatpush1.msra.mxu0 0.0
      %1436 = vmatprep.subr.mxu0 0.0
      %1437 = vmatpush1.msra.mxu0 0.0
      %1438 = vmatprep.subr.mxu0 0.0
      %1439 = vmatpush1.msra.mxu0 0.0
      %1440 = vmatprep.subr.mxu0 0.0
      %1441 = vmatpush1.msra.mxu0 0.0
      %1442 = vmatprep.subr.mxu0 0.0
      %1443 = vmatpush1.msra.mxu0 0.0
      %1444 = vmatprep.subr.mxu0 0.0
      %1445 = vmatpush1.msra.mxu0 0.0
      %1446 = vmatprep.subr.mxu0 0.0
      %1447 = vmatpush1.msra.mxu0 0.0
      %1448 = vmatprep.subr.mxu0 0.0
      %1449 = vmatpush1.msra.mxu0 0.0
      %1450 = vmatprep.subr.mxu0 0.0
      %1451 = vmatpush1.msra.mxu0 0.0
      %1452 = vmatprep.subr.mxu0 0.0
      %1453 = vmatpush1.msra.mxu0 0.0
      %1454 = vmatprep.subr.mxu0 0.0
      %1455 = vmatpush1.msra.mxu0 0.0
      %1456 = vmatprep.subr.mxu0 0.0
      %1457 = vmatpush1.msra.mxu0 0.0
      %1458 = vmatprep.subr.mxu0 0.0
      %1459 = vmatpush1.msra.mxu0 0.0
      %1460 = vmatprep.mubr.f32.mxu0 0.0
      %1461 = vmatmul.mubr.f32.gmra.mrb[0].mxu0 %v1391
      %v1462 = vpop.f32.mrb[0].mxu0
      %v1463 = vadd.f32 0.0, %v1462
      %v1464 = vpop.f32.mrb[0].mxu0
      %1465 = vdwg.mxu0
      %v1467 = vsel %vm476, %v473, 0
      %v1470 = vsel %vm480, %v441, 0
      %1472 = vmatprep.subr.mxu0 0.0
      %1473 = vmatpush1.msra.mxu0 %v1470
      %1474 = vmatprep.subr.mxu0 0.0
      %1475 = vmatpush1.msra.mxu0 0.0
      %1476 = vmatprep.subr.mxu0 0.0
      %1477 = vmatpush1.msra.mxu0 0.0
      %1478 = vmatprep.subr.mxu0 0.0
      %1479 = vmatpush1.msra.mxu0 0.0
      %1480 = vmatprep.subr.mxu0 0.0
      %1481 = vmatpush1.msra.mxu0 0.0
      %1482 = vmatprep.subr.mxu0 0.0
      %1483 = vmatpush1.msra.mxu0 0.0
      %1484 = vmatprep.subr.mxu0 0.0
      %1485 = vmatpush1.msra.mxu0 0.0
      %1486 = vmatprep.subr.mxu0 0.0
      %1487 = vmatpush1.msra.mxu0 0.0
      %1488 = vmatprep.subr.mxu0 0.0
      %1489 = vmatpush1.msra.mxu0 0.0
      %1490 = vmatprep.subr.mxu0 0.0
      %1491 = vmatpush1.msra.mxu0 0.0
      %1492 = vmatprep.subr.mxu0 0.0
      %1493 = vmatpush1.msra.mxu0 0.0
      %1494 = vmatprep.subr.mxu0 0.0
      %1495 = vmatpush1.msra.mxu0 0.0
      %1496 = vmatprep.subr.mxu0 0.0
      %1497 = vmatpush1.msra.mxu0 0.0
      %1498 = vmatprep.subr.mxu0 0.0
      %1499 = vmatpush1.msra.mxu0 0.0
      %1500 = vmatprep.subr.mxu0 0.0
      %1501 = vmatpush1.msra.mxu0 0.0
      %1502 = vmatprep.subr.mxu0 0.0
      %1503 = vmatpush1.msra.mxu0 0.0
      %1504 = vmatprep.subr.mxu0 0.0
      %1505 = vmatpush1.msra.mxu0 0.0
      %1506 = vmatprep.subr.mxu0 0.0
      %1507 = vmatpush1.msra.mxu0 0.0
      %1508 = vmatprep.subr.mxu0 0.0
      %1509 = vmatpush1.msra.mxu0 0.0
      %1510 = vmatprep.subr.mxu0 0.0
      %1511 = vmatpush1.msra.mxu0 0.0
      %1512 = vmatprep.subr.mxu0 0.0
      %1513 = vmatpush1.msra.mxu0 0.0
      %1514 = vmatprep.subr.mxu0 0.0
      %1515 = vmatpush1.msra.mxu0 0.0
      %1516 = vmatprep.subr.mxu0 0.0
      %1517 = vmatpush1.msra.mxu0 0.0
      %1518 = vmatprep.subr.mxu0 0.0
      %1519 = vmatpush1.msra.mxu0 0.0
      %1520 = vmatprep.subr.mxu0 0.0
      %1521 = vmatpush1.msra.mxu0 0.0
      %1522 = vmatprep.subr.mxu0 0.0
      %1523 = vmatpush1.msra.mxu0 0.0
      %1524 = vmatprep.subr.mxu0 0.0
      %1525 = vmatpush1.msra.mxu0 0.0
      %1526 = vmatprep.subr.mxu0 0.0
      %1527 = vmatpush1.msra.mxu0 0.0
      %1528 = vmatprep.subr.mxu0 0.0
      %1529 = vmatpush1.msra.mxu0 0.0
      %1530 = vmatprep.subr.mxu0 0.0
      %1531 = vmatpush1.msra.mxu0 0.0
      %1532 = vmatprep.subr.mxu0 0.0
      %1533 = vmatpush1.msra.mxu0 0.0
      %1534 = vmatprep.subr.mxu0 0.0
      %1535 = vmatpush1.msra.mxu0 0.0
      %1536 = vmatprep.mubr.f32.mxu0 0.0
      %1537 = vmatmul.mubr.f32.gmra.mrb[0].mxu0 %v1467
      %v1538 = vpop.f32.mrb[0].mxu0
      %v1539 = vadd.f32 0.0, %v1538
      %v1540 = vpop.f32.mrb[0].mxu0
      %1541 = vdwg.mxu0
      %v1543 = vsel %vm476, %v474, 0
      %v1546 = vsel %vm480, %v442, 0
      %1548 = vmatprep.subr.mxu0 0.0
      %1549 = vmatpush1.msra.mxu0 %v1546
      %1550 = vmatprep.subr.mxu0 0.0
      %1551 = vmatpush1.msra.mxu0 0.0
      %1552 = vmatprep.subr.mxu0 0.0
      %1553 = vmatpush1.msra.mxu0 0.0
      %1554 = vmatprep.subr.mxu0 0.0
      %1555 = vmatpush1.msra.mxu0 0.0
      %1556 = vmatprep.subr.mxu0 0.0
      %1557 = vmatpush1.msra.mxu0 0.0
      %1558 = vmatprep.subr.mxu0 0.0
      %1559 = vmatpush1.msra.mxu0 0.0
      %1560 = vmatprep.subr.mxu0 0.0
      %1561 = vmatpush1.msra.mxu0 0.0
      %1562 = vmatprep.subr.mxu0 0.0
      %1563 = vmatpush1.msra.mxu0 0.0
      %1564 = vmatprep.subr.mxu0 0.0
      %1565 = vmatpush1.msra.mxu0 0.0
      %1566 = vmatprep.subr.mxu0 0.0
      %1567 = vmatpush1.msra.mxu0 0.0
      %1568 = vmatprep.subr.mxu0 0.0
      %1569 = vmatpush1.msra.mxu0 0.0
      %1570 = vmatprep.subr.mxu0 0.0
      %1571 = vmatpush1.msra.mxu0 0.0
      %1572 = vmatprep.subr.mxu0 0.0
      %1573 = vmatpush1.msra.mxu0 0.0
      %1574 = vmatprep.subr.mxu0 0.0
      %1575 = vmatpush1.msra.mxu0 0.0
      %1576 = vmatprep.subr.mxu0 0.0
      %1577 = vmatpush1.msra.mxu0 0.0
      %1578 = vmatprep.subr.mxu0 0.0
      %1579 = vmatpush1.msra.mxu0 0.0
      %1580 = vmatprep.subr.mxu0 0.0
      %1581 = vmatpush1.msra.mxu0 0.0
      %1582 = vmatprep.subr.mxu0 0.0
      %1583 = vmatpush1.msra.mxu0 0.0
      %1584 = vmatprep.subr.mxu0 0.0
      %1585 = vmatpush1.msra.mxu0 0.0
      %1586 = vmatprep.subr.mxu0 0.0
      %1587 = vmatpush1.msra.mxu0 0.0
      %1588 = vmatprep.subr.mxu0 0.0
      %1589 = vmatpush1.msra.mxu0 0.0
      %1590 = vmatprep.subr.mxu0 0.0
      %1591 = vmatpush1.msra.mxu0 0.0
      %1592 = vmatprep.subr.mxu0 0.0
      %1593 = vmatpush1.msra.mxu0 0.0
      %1594 = vmatprep.subr.mxu0 0.0
      %1595 = vmatpush1.msra.mxu0 0.0
      %1596 = vmatprep.subr.mxu0 0.0
      %1597 = vmatpush1.msra.mxu0 0.0
      %1598 = vmatprep.subr.mxu0 0.0
      %1599 = vmatpush1.msra.mxu0 0.0
      %1600 = vmatprep.subr.mxu0 0.0
      %1601 = vmatpush1.msra.mxu0 0.0
      %1602 = vmatprep.subr.mxu0 0.0
      %1603 = vmatpush1.msra.mxu0 0.0
      %1604 = vmatprep.subr.mxu0 0.0
      %1605 = vmatpush1.msra.mxu0 0.0
      %1606 = vmatprep.subr.mxu0 0.0
      %1607 = vmatpush1.msra.mxu0 0.0
      %1608 = vmatprep.subr.mxu0 0.0
      %1609 = vmatpush1.msra.mxu0 0.0
      %1610 = vmatprep.subr.mxu0 0.0
      %1611 = vmatpush1.msra.mxu0 0.0
      %1612 = vmatprep.mubr.f32.mxu0 0.0
      %1613 = vmatmul.mubr.f32.gmra.mrb[0].mxu0 %v1543
      %v1614 = vpop.f32.mrb[0].mxu0
      %v1615 = vadd.f32 0.0, %v1614
      %v1616 = vpop.f32.mrb[0].mxu0
      %1617 = vdwg.mxu0
      %v1619 = vsel %vm476, %v475, 0
      %v1622 = vsel %vm480, %v443, 0
      %1624 = vmatprep.subr.mxu0 0.0
      %1625 = vmatpush1.msra.mxu0 %v1622
      %1626 = vmatprep.subr.mxu0 0.0
      %1627 = vmatpush1.msra.mxu0 0.0
      %1628 = vmatprep.subr.mxu0 0.0
      %1629 = vmatpush1.msra.mxu0 0.0
      %1630 = vmatprep.subr.mxu0 0.0
      %1631 = vmatpush1.msra.mxu0 0.0
      %1632 = vmatprep.subr.mxu0 0.0
      %1633 = vmatpush1.msra.mxu0 0.0
      %1634 = vmatprep.subr.mxu0 0.0
      %1635 = vmatpush1.msra.mxu0 0.0
      %1636 = vmatprep.subr.mxu0 0.0
      %1637 = vmatpush1.msra.mxu0 0.0
      %1638 = vmatprep.subr.mxu0 0.0
      %1639 = vmatpush1.msra.mxu0 0.0
      %1640 = vmatprep.subr.mxu0 0.0
      %1641 = vmatpush1.msra.mxu0 0.0
      %1642 = vmatprep.subr.mxu0 0.0
      %1643 = vmatpush1.msra.mxu0 0.0
      %1644 = vmatprep.subr.mxu0 0.0
      %1645 = vmatpush1.msra.mxu0 0.0
      %1646 = vmatprep.subr.mxu0 0.0
      %1647 = vmatpush1.msra.mxu0 0.0
      %1648 = vmatprep.subr.mxu0 0.0
      %1649 = vmatpush1.msra.mxu0 0.0
      %1650 = vmatprep.subr.mxu0 0.0
      %1651 = vmatpush1.msra.mxu0 0.0
      %1652 = vmatprep.subr.mxu0 0.0
      %1653 = vmatpush1.msra.mxu0 0.0
      %1654 = vmatprep.subr.mxu0 0.0
      %1655 = vmatpush1.msra.mxu0 0.0
      %1656 = vmatprep.subr.mxu0 0.0
      %1657 = vmatpush1.msra.mxu0 0.0
      %1658 = vmatprep.subr.mxu0 0.0
      %1659 = vmatpush1.msra.mxu0 0.0
      %1660 = vmatprep.subr.mxu0 0.0
      %1661 = vmatpush1.msra.mxu0 0.0
      %1662 = vmatprep.subr.mxu0 0.0
      %1663 = vmatpush1.msra.mxu0 0.0
      %1664 = vmatprep.subr.mxu0 0.0
      %1665 = vmatpush1.msra.mxu0 0.0
      %1666 = vmatprep.subr.mxu0 0.0
      %1667 = vmatpush1.msra.mxu0 0.0
      %1668 = vmatprep.subr.mxu0 0.0
      %1669 = vmatpush1.msra.mxu0 0.0
      %1670 = vmatprep.subr.mxu0 0.0
      %1671 = vmatpush1.msra.mxu0 0.0
      %1672 = vmatprep.subr.mxu0 0.0
      %1673 = vmatpush1.msra.mxu0 0.0
      %1674 = vmatprep.subr.mxu0 0.0
      %1675 = vmatpush1.msra.mxu0 0.0
      %1676 = vmatprep.subr.mxu0 0.0
      %1677 = vmatpush1.msra.mxu0 0.0
      %1678 = vmatprep.subr.mxu0 0.0
      %1679 = vmatpush1.msra.mxu0 0.0
      %1680 = vmatprep.subr.mxu0 0.0
      %1681 = vmatpush1.msra.mxu0 0.0
      %1682 = vmatprep.subr.mxu0 0.0
      %1683 = vmatpush1.msra.mxu0 0.0
      %1684 = vmatprep.subr.mxu0 0.0
      %1685 = vmatpush1.msra.mxu0 0.0
      %1686 = vmatprep.subr.mxu0 0.0
      %1687 = vmatpush1.msra.mxu0 0.0
      %1688 = vmatprep.mubr.f32.mxu0 0.0
      %1689 = vmatmul.mubr.f32.gmra.mrb[0].mxu0 %v1619
      %v1690 = vpop.f32.mrb[0].mxu0
      %v1691 = vadd.f32 0.0, %v1690
      %v1692 = vpop.f32.mrb[0].mxu0
      %1693 = vdwg.mxu0
      %v1694 = vsub.f32 %v444, %v428
      %v1695 = vsub.f32 %v445, %v429
      %v1696 = vsub.f32 %v446, %v430
      %v1697 = vsub.f32 %v447, %v431
      %v1698 = vsub.f32 %v448, %v432
      %v1699 = vsub.f32 %v449, %v433
      %v1700 = vsub.f32 %v450, %v434
      %v1701 = vsub.f32 %v451, %v435
      %v1702 = vsub.f32 %v452, %v436
      %v1703 = vsub.f32 %v453, %v437
      %v1704 = vsub.f32 %v454, %v438
      %v1705 = vsub.f32 %v455, %v439
      %v1706 = vsub.f32 %v456, %v440
      %v1707 = vsub.f32 %v457, %v441
      %v1708 = vsub.f32 %v458, %v442
      %v1709 = vsub.f32 %v459, %v443
      %v1711 = vsel %vm476, %v396, 0
      %v1714 = vsel %vm480, %v1694, 0
      %1716 = vmatprep.subr.mxu0 0.0
      %1717 = vmatpush1.msra.mxu0 %v1714
      %1718 = vmatprep.subr.mxu0 0.0
      %1719 = vmatpush1.msra.mxu0 0.0
      %1720 = vmatprep.subr.mxu0 0.0
      %1721 = vmatpush1.msra.mxu0 0.0
      %1722 = vmatprep.subr.mxu0 0.0
      %1723 = vmatpush1.msra.mxu0 0.0
      %1724 = vmatprep.subr.mxu0 0.0
      %1725 = vmatpush1.msra.mxu0 0.0
      %1726 = vmatprep.subr.mxu0 0.0
      %1727 = vmatpush1.msra.mxu0 0.0
      %1728 = vmatprep.subr.mxu0 0.0
      %1729 = vmatpush1.msra.mxu0 0.0
      %1730 = vmatprep.subr.mxu0 0.0
      %1731 = vmatpush1.msra.mxu0 0.0
      %1732 = vmatprep.subr.mxu0 0.0
      %1733 = vmatpush1.msra.mxu0 0.0
      %1734 = vmatprep.subr.mxu0 0.0
      %1735 = vmatpush1.msra.mxu0 0.0
      %1736 = vmatprep.subr.mxu0 0.0
      %1737 = vmatpush1.msra.mxu0 0.0
      %1738 = vmatprep.subr.mxu0 0.0
      %1739 = vmatpush1.msra.mxu0 0.0
      %1740 = vmatprep.subr.mxu0 0.0
      %1741 = vmatpush1.msra.mxu0 0.0
      %1742 = vmatprep.subr.mxu0 0.0
      %1743 = vmatpush1.msra.mxu0 0.0
      %1744 = vmatprep.subr.mxu0 0.0
      %1745 = vmatpush1.msra.mxu0 0.0
      %1746 = vmatprep.subr.mxu0 0.0
      %1747 = vmatpush1.msra.mxu0 0.0
      %1748 = vmatprep.subr.mxu0 0.0
      %1749 = vmatpush1.msra.mxu0 0.0
      %1750 = vmatprep.subr.mxu0 0.0
      %1751 = vmatpush1.msra.mxu0 0.0
      %1752 = vmatprep.subr.mxu0 0.0
      %1753 = vmatpush1.msra.mxu0 0.0
      %1754 = vmatprep.subr.mxu0 0.0
      %1755 = vmatpush1.msra.mxu0 0.0
      %1756 = vmatprep.subr.mxu0 0.0
      %1757 = vmatpush1.msra.mxu0 0.0
      %1758 = vmatprep.subr.mxu0 0.0
      %1759 = vmatpush1.msra.mxu0 0.0
      %1760 = vmatprep.subr.mxu0 0.0
      %1761 = vmatpush1.msra.mxu0 0.0
      %1762 = vmatprep.subr.mxu0 0.0
      %1763 = vmatpush1.msra.mxu0 0.0
      %1764 = vmatprep.subr.mxu0 0.0
      %1765 = vmatpush1.msra.mxu0 0.0
      %1766 = vmatprep.subr.mxu0 0.0
      %1767 = vmatpush1.msra.mxu0 0.0
      %1768 = vmatprep.subr.mxu0 0.0
      %1769 = vmatpush1.msra.mxu0 0.0
      %1770 = vmatprep.subr.mxu0 0.0
      %1771 = vmatpush1.msra.mxu0 0.0
      %1772 = vmatprep.subr.mxu0 0.0
      %1773 = vmatpush1.msra.mxu0 0.0
      %1774 = vmatprep.subr.mxu0 0.0
      %1775 = vmatpush1.msra.mxu0 0.0
      %1776 = vmatprep.subr.mxu0 0.0
      %1777 = vmatpush1.msra.mxu0 0.0
      %1778 = vmatprep.subr.mxu0 0.0
      %1779 = vmatpush1.msra.mxu0 0.0
      %1780 = vmatprep.mubr.f32.mxu0 0.0
      %1781 = vmatmul.mubr.f32.gmra.mrb[0].mxu0 %v1711
      %v1782 = vpop.f32.mrb[0].mxu0
      %v1783 = vadd.f32 0.0, %v1782
      %v1784 = vpop.f32.mrb[0].mxu0
      %1785 = vdwg.mxu0
      %v1787 = vsel %vm476, %v397, 0
      %v1790 = vsel %vm480, %v1695, 0
      %1792 = vmatprep.subr.mxu0 0.0
      %1793 = vmatpush1.msra.mxu0 %v1790
      %1794 = vmatprep.subr.mxu0 0.0
      %1795 = vmatpush1.msra.mxu0 0.0
      %1796 = vmatprep.subr.mxu0 0.0
      %1797 = vmatpush1.msra.mxu0 0.0
      %1798 = vmatprep.subr.mxu0 0.0
      %1799 = vmatpush1.msra.mxu0 0.0
      %1800 = vmatprep.subr.mxu0 0.0
      %1801 = vmatpush1.msra.mxu0 0.0
      %1802 = vmatprep.subr.mxu0 0.0
      %1803 = vmatpush1.msra.mxu0 0.0
      %1804 = vmatprep.subr.mxu0 0.0
      %1805 = vmatpush1.msra.mxu0 0.0
      %1806 = vmatprep.subr.mxu0 0.0
      %1807 = vmatpush1.msra.mxu0 0.0
      %1808 = vmatprep.subr.mxu0 0.0
      %1809 = vmatpush1.msra.mxu0 0.0
      %1810 = vmatprep.subr.mxu0 0.0
      %1811 = vmatpush1.msra.mxu0 0.0
      %1812 = vmatprep.subr.mxu0 0.0
      %1813 = vmatpush1.msra.mxu0 0.0
      %1814 = vmatprep.subr.mxu0 0.0
      %1815 = vmatpush1.msra.mxu0 0.0
      %1816 = vmatprep.subr.mxu0 0.0
      %1817 = vmatpush1.msra.mxu0 0.0
      %1818 = vmatprep.subr.mxu0 0.0
      %1819 = vmatpush1.msra.mxu0 0.0
      %1820 = vmatprep.subr.mxu0 0.0
      %1821 = vmatpush1.msra.mxu0 0.0
      %1822 = vmatprep.subr.mxu0 0.0
      %1823 = vmatpush1.msra.mxu0 0.0
      %1824 = vmatprep.subr.mxu0 0.0
      %1825 = vmatpush1.msra.mxu0 0.0
      %1826 = vmatprep.subr.mxu0 0.0
      %1827 = vmatpush1.msra.mxu0 0.0
      %1828 = vmatprep.subr.mxu0 0.0
      %1829 = vmatpush1.msra.mxu0 0.0
      %1830 = vmatprep.subr.mxu0 0.0
      %1831 = vmatpush1.msra.mxu0 0.0
      %1832 = vmatprep.subr.mxu0 0.0
      %1833 = vmatpush1.msra.mxu0 0.0
      %1834 = vmatprep.subr.mxu0 0.0
      %1835 = vmatpush1.msra.mxu0 0.0
      %1836 = vmatprep.subr.mxu0 0.0
      %1837 = vmatpush1.msra.mxu0 0.0
      %1838 = vmatprep.subr.mxu0 0.0
      %1839 = vmatpush1.msra.mxu0 0.0
      %1840 = vmatprep.subr.mxu0 0.0
      %1841 = vmatpush1.msra.mxu0 0.0
      %1842 = vmatprep.subr.mxu0 0.0
      %1843 = vmatpush1.msra.mxu0 0.0
      %1844 = vmatprep.subr.mxu0 0.0
      %1845 = vmatpush1.msra.mxu0 0.0
      %1846 = vmatprep.subr.mxu0 0.0
      %1847 = vmatpush1.msra.mxu0 0.0
      %1848 = vmatprep.subr.mxu0 0.0
      %1849 = vmatpush1.msra.mxu0 0.0
      %1850 = vmatprep.subr.mxu0 0.0
      %1851 = vmatpush1.msra.mxu0 0.0
      %1852 = vmatprep.subr.mxu0 0.0
      %1853 = vmatpush1.msra.mxu0 0.0
      %1854 = vmatprep.subr.mxu0 0.0
      %1855 = vmatpush1.msra.mxu0 0.0
      %1856 = vmatprep.mubr.f32.mxu0 0.0
      %1857 = vmatmul.mubr.f32.gmra.mrb[0].mxu0 %v1787
      %v1858 = vpop.f32.mrb[0].mxu0
      %v1859 = vadd.f32 0.0, %v1858
      %v1860 = vpop.f32.mrb[0].mxu0
      %1861 = vdwg.mxu0
      %v1863 = vsel %vm476, %v398, 0
      %v1866 = vsel %vm480, %v1696, 0
      %1868 = vmatprep.subr.mxu0 0.0
      %1869 = vmatpush1.msra.mxu0 %v1866
      %1870 = vmatprep.subr.mxu0 0.0
      %1871 = vmatpush1.msra.mxu0 0.0
      %1872 = vmatprep.subr.mxu0 0.0
      %1873 = vmatpush1.msra.mxu0 0.0
      %1874 = vmatprep.subr.mxu0 0.0
      %1875 = vmatpush1.msra.mxu0 0.0
      %1876 = vmatprep.subr.mxu0 0.0
      %1877 = vmatpush1.msra.mxu0 0.0
      %1878 = vmatprep.subr.mxu0 0.0
      %1879 = vmatpush1.msra.mxu0 0.0
      %1880 = vmatprep.subr.mxu0 0.0
      %1881 = vmatpush1.msra.mxu0 0.0
      %1882 = vmatprep.subr.mxu0 0.0
      %1883 = vmatpush1.msra.mxu0 0.0
      %1884 = vmatprep.subr.mxu0 0.0
      %1885 = vmatpush1.msra.mxu0 0.0
      %1886 = vmatprep.subr.mxu0 0.0
      %1887 = vmatpush1.msra.mxu0 0.0
      %1888 = vmatprep.subr.mxu0 0.0
      %1889 = vmatpush1.msra.mxu0 0.0
      %1890 = vmatprep.subr.mxu0 0.0
      %1891 = vmatpush1.msra.mxu0 0.0
      %1892 = vmatprep.subr.mxu0 0.0
      %1893 = vmatpush1.msra.mxu0 0.0
      %1894 = vmatprep.subr.mxu0 0.0
      %1895 = vmatpush1.msra.mxu0 0.0
      %1896 = vmatprep.subr.mxu0 0.0
      %1897 = vmatpush1.msra.mxu0 0.0
      %1898 = vmatprep.subr.mxu0 0.0
      %1899 = vmatpush1.msra.mxu0 0.0
      %1900 = vmatprep.subr.mxu0 0.0
      %1901 = vmatpush1.msra.mxu0 0.0
      %1902 = vmatprep.subr.mxu0 0.0
      %1903 = vmatpush1.msra.mxu0 0.0
      %1904 = vmatprep.subr.mxu0 0.0
      %1905 = vmatpush1.msra.mxu0 0.0
      %1906 = vmatprep.subr.mxu0 0.0
      %1907 = vmatpush1.msra.mxu0 0.0
      %1908 = vmatprep.subr.mxu0 0.0
      %1909 = vmatpush1.msra.mxu0 0.0
      %1910 = vmatprep.subr.mxu0 0.0
      %1911 = vmatpush1.msra.mxu0 0.0
      %1912 = vmatprep.subr.mxu0 0.0
      %1913 = vmatpush1.msra.mxu0 0.0
      %1914 = vmatprep.subr.mxu0 0.0
      %1915 = vmatpush1.msra.mxu0 0.0
      %1916 = vmatprep.subr.mxu0 0.0
      %1917 = vmatpush1.msra.mxu0 0.0
      %1918 = vmatprep.subr.mxu0 0.0
      %1919 = vmatpush1.msra.mxu0 0.0
      %1920 = vmatprep.subr.mxu0 0.0
      %1921 = vmatpush1.msra.mxu0 0.0
      %1922 = vmatprep.subr.mxu0 0.0
      %1923 = vmatpush1.msra.mxu0 0.0
      %1924 = vmatprep.subr.mxu0 0.0
      %1925 = vmatpush1.msra.mxu0 0.0
      %1926 = vmatprep.subr.mxu0 0.0
      %1927 = vmatpush1.msra.mxu0 0.0
      %1928 = vmatprep.subr.mxu0 0.0
      %1929 = vmatpush1.msra.mxu0 0.0
      %1930 = vmatprep.subr.mxu0 0.0
      %1931 = vmatpush1.msra.mxu0 0.0
      %1932 = vmatprep.mubr.f32.mxu0 0.0
      %1933 = vmatmul.mubr.f32.gmra.mrb[0].mxu0 %v1863
      %v1934 = vpop.f32.mrb[0].mxu0
      %v1935 = vadd.f32 0.0, %v1934
      %v1936 = vpop.f32.mrb[0].mxu0
      %1937 = vdwg.mxu0
      %v1939 = vsel %vm476, %v399, 0
      %v1942 = vsel %vm480, %v1697, 0
      %1944 = vmatprep.subr.mxu0 0.0
      %1945 = vmatpush1.msra.mxu0 %v1942
      %1946 = vmatprep.subr.mxu0 0.0
      %1947 = vmatpush1.msra.mxu0 0.0
      %1948 = vmatprep.subr.mxu0 0.0
      %1949 = vmatpush1.msra.mxu0 0.0
      %1950 = vmatprep.subr.mxu0 0.0
      %1951 = vmatpush1.msra.mxu0 0.0
      %1952 = vmatprep.subr.mxu0 0.0
      %1953 = vmatpush1.msra.mxu0 0.0
      %1954 = vmatprep.subr.mxu0 0.0
      %1955 = vmatpush1.msra.mxu0 0.0
      %1956 = vmatprep.subr.mxu0 0.0
      %1957 = vmatpush1.msra.mxu0 0.0
      %1958 = vmatprep.subr.mxu0 0.0
      %1959 = vmatpush1.msra.mxu0 0.0
      %1960 = vmatprep.subr.mxu0 0.0
      %1961 = vmatpush1.msra.mxu0 0.0
      %1962 = vmatprep.subr.mxu0 0.0
      %1963 = vmatpush1.msra.mxu0 0.0
      %1964 = vmatprep.subr.mxu0 0.0
      %1965 = vmatpush1.msra.mxu0 0.0
      %1966 = vmatprep.subr.mxu0 0.0
      %1967 = vmatpush1.msra.mxu0 0.0
      %1968 = vmatprep.subr.mxu0 0.0
      %1969 = vmatpush1.msra.mxu0 0.0
      %1970 = vmatprep.subr.mxu0 0.0
      %1971 = vmatpush1.msra.mxu0 0.0
      %1972 = vmatprep.subr.mxu0 0.0
      %1973 = vmatpush1.msra.mxu0 0.0
      %1974 = vmatprep.subr.mxu0 0.0
      %1975 = vmatpush1.msra.mxu0 0.0
      %1976 = vmatprep.subr.mxu0 0.0
      %1977 = vmatpush1.msra.mxu0 0.0
      %1978 = vmatprep.subr.mxu0 0.0
      %1979 = vmatpush1.msra.mxu0 0.0
      %1980 = vmatprep.subr.mxu0 0.0
      %1981 = vmatpush1.msra.mxu0 0.0
      %1982 = vmatprep.subr.mxu0 0.0
      %1983 = vmatpush1.msra.mxu0 0.0
      %1984 = vmatprep.subr.mxu0 0.0
      %1985 = vmatpush1.msra.mxu0 0.0
      %1986 = vmatprep.subr.mxu0 0.0
      %1987 = vmatpush1.msra.mxu0 0.0
      %1988 = vmatprep.subr.mxu0 0.0
      %1989 = vmatpush1.msra.mxu0 0.0
      %1990 = vmatprep.subr.mxu0 0.0
      %1991 = vmatpush1.msra.mxu0 0.0
      %1992 = vmatprep.subr.mxu0 0.0
      %1993 = vmatpush1.msra.mxu0 0.0
      %1994 = vmatprep.subr.mxu0 0.0
      %1995 = vmatpush1.msra.mxu0 0.0
      %1996 = vmatprep.subr.mxu0 0.0
      %1997 = vmatpush1.msra.mxu0 0.0
      %1998 = vmatprep.subr.mxu0 0.0
      %1999 = vmatpush1.msra.mxu0 0.0
      %2000 = vmatprep.subr.mxu0 0.0
      %2001 = vmatpush1.msra.mxu0 0.0
      %2002 = vmatprep.subr.mxu0 0.0
      %2003 = vmatpush1.msra.mxu0 0.0
      %2004 = vmatprep.subr.mxu0 0.0
      %2005 = vmatpush1.msra.mxu0 0.0
      %2006 = vmatprep.subr.mxu0 0.0
      %2007 = vmatpush1.msra.mxu0 0.0
      %2008 = vmatprep.mubr.f32.mxu0 0.0
      %2009 = vmatmul.mubr.f32.gmra.mrb[0].mxu0 %v1939
      %v2010 = vpop.f32.mrb[0].mxu0
      %v2011 = vadd.f32 0.0, %v2010
      %v2012 = vpop.f32.mrb[0].mxu0
      %2013 = vdwg.mxu0
      %v2015 = vsel %vm476, %v400, 0
      %v2018 = vsel %vm480, %v1698, 0
      %2020 = vmatprep.subr.mxu0 0.0
      %2021 = vmatpush1.msra.mxu0 %v2018
      %2022 = vmatprep.subr.mxu0 0.0
      %2023 = vmatpush1.msra.mxu0 0.0
      %2024 = vmatprep.subr.mxu0 0.0
      %2025 = vmatpush1.msra.mxu0 0.0
      %2026 = vmatprep.subr.mxu0 0.0
      %2027 = vmatpush1.msra.mxu0 0.0
      %2028 = vmatprep.subr.mxu0 0.0
      %2029 = vmatpush1.msra.mxu0 0.0
      %2030 = vmatprep.subr.mxu0 0.0
      %2031 = vmatpush1.msra.mxu0 0.0
      %2032 = vmatprep.subr.mxu0 0.0
      %2033 = vmatpush1.msra.mxu0 0.0
      %2034 = vmatprep.subr.mxu0 0.0
      %2035 = vmatpush1.msra.mxu0 0.0
      %2036 = vmatprep.subr.mxu0 0.0
      %2037 = vmatpush1.msra.mxu0 0.0
      %2038 = vmatprep.subr.mxu0 0.0
      %2039 = vmatpush1.msra.mxu0 0.0
      %2040 = vmatprep.subr.mxu0 0.0
      %2041 = vmatpush1.msra.mxu0 0.0
      %2042 = vmatprep.subr.mxu0 0.0
      %2043 = vmatpush1.msra.mxu0 0.0
      %2044 = vmatprep.subr.mxu0 0.0
      %2045 = vmatpush1.msra.mxu0 0.0
      %2046 = vmatprep.subr.mxu0 0.0
      %2047 = vmatpush1.msra.mxu0 0.0
      %2048 = vmatprep.subr.mxu0 0.0
      %2049 = vmatpush1.msra.mxu0 0.0
      %2050 = vmatprep.subr.mxu0 0.0
      %2051 = vmatpush1.msra.mxu0 0.0
      %2052 = vmatprep.subr.mxu0 0.0
      %2053 = vmatpush1.msra.mxu0 0.0
      %2054 = vmatprep.subr.mxu0 0.0
      %2055 = vmatpush1.msra.mxu0 0.0
      %2056 = vmatprep.subr.mxu0 0.0
      %2057 = vmatpush1.msra.mxu0 0.0
      %2058 = vmatprep.subr.mxu0 0.0
      %2059 = vmatpush1.msra.mxu0 0.0
      %2060 = vmatprep.subr.mxu0 0.0
      %2061 = vmatpush1.msra.mxu0 0.0
      %2062 = vmatprep.subr.mxu0 0.0
      %2063 = vmatpush1.msra.mxu0 0.0
      %2064 = vmatprep.subr.mxu0 0.0
      %2065 = vmatpush1.msra.mxu0 0.0
      %2066 = vmatprep.subr.mxu0 0.0
      %2067 = vmatpush1.msra.mxu0 0.0
      %2068 = vmatprep.subr.mxu0 0.0
      %2069 = vmatpush1.msra.mxu0 0.0
      %2070 = vmatprep.subr.mxu0 0.0
      %2071 = vmatpush1.msra.mxu0 0.0
      %2072 = vmatprep.subr.mxu0 0.0
      %2073 = vmatpush1.msra.mxu0 0.0
      %2074 = vmatprep.subr.mxu0 0.0
      %2075 = vmatpush1.msra.mxu0 0.0
      %2076 = vmatprep.subr.mxu0 0.0
      %2077 = vmatpush1.msra.mxu0 0.0
      %2078 = vmatprep.subr.mxu0 0.0
      %2079 = vmatpush1.msra.mxu0 0.0
      %2080 = vmatprep.subr.mxu0 0.0
      %2081 = vmatpush1.msra.mxu0 0.0
      %2082 = vmatprep.subr.mxu0 0.0
      %2083 = vmatpush1.msra.mxu0 0.0
      %2084 = vmatprep.mubr.f32.mxu0 0.0
      %2085 = vmatmul.mubr.f32.gmra.mrb[0].mxu0 %v2015
      %v2086 = vpop.f32.mrb[0].mxu0
      %v2087 = vadd.f32 0.0, %v2086
      %v2088 = vpop.f32.mrb[0].mxu0
      %2089 = vdwg.mxu0
      %v2091 = vsel %vm476, %v401, 0
      %v2094 = vsel %vm480, %v1699, 0
      %2096 = vmatprep.subr.mxu0 0.0
      %2097 = vmatpush1.msra.mxu0 %v2094
      %2098 = vmatprep.subr.mxu0 0.0
      %2099 = vmatpush1.msra.mxu0 0.0
      %2100 = vmatprep.subr.mxu0 0.0
      %2101 = vmatpush1.msra.mxu0 0.0
      %2102 = vmatprep.subr.mxu0 0.0
      %2103 = vmatpush1.msra.mxu0 0.0
      %2104 = vmatprep.subr.mxu0 0.0
      %2105 = vmatpush1.msra.mxu0 0.0
      %2106 = vmatprep.subr.mxu0 0.0
      %2107 = vmatpush1.msra.mxu0 0.0
      %2108 = vmatprep.subr.mxu0 0.0
      %2109 = vmatpush1.msra.mxu0 0.0
      %2110 = vmatprep.subr.mxu0 0.0
      %2111 = vmatpush1.msra.mxu0 0.0
      %2112 = vmatprep.subr.mxu0 0.0
      %2113 = vmatpush1.msra.mxu0 0.0
      %2114 = vmatprep.subr.mxu0 0.0
      %2115 = vmatpush1.msra.mxu0 0.0
      %2116 = vmatprep.subr.mxu0 0.0
      %2117 = vmatpush1.msra.mxu0 0.0
      %2118 = vmatprep.subr.mxu0 0.0
      %2119 = vmatpush1.msra.mxu0 0.0
      %2120 = vmatprep.subr.mxu0 0.0
      %2121 = vmatpush1.msra.mxu0 0.0
      %2122 = vmatprep.subr.mxu0 0.0
      %2123 = vmatpush1.msra.mxu0 0.0
      %2124 = vmatprep.subr.mxu0 0.0
      %2125 = vmatpush1.msra.mxu0 0.0
      %2126 = vmatprep.subr.mxu0 0.0
      %2127 = vmatpush1.msra.mxu0 0.0
      %2128 = vmatprep.subr.mxu0 0.0
      %2129 = vmatpush1.msra.mxu0 0.0
      %2130 = vmatprep.subr.mxu0 0.0
      %2131 = vmatpush1.msra.mxu0 0.0
      %2132 = vmatprep.subr.mxu0 0.0
      %2133 = vmatpush1.msra.mxu0 0.0
      %2134 = vmatprep.subr.mxu0 0.0
      %2135 = vmatpush1.msra.mxu0 0.0
      %2136 = vmatprep.subr.mxu0 0.0
      %2137 = vmatpush1.msra.mxu0 0.0
      %2138 = vmatprep.subr.mxu0 0.0
      %2139 = vmatpush1.msra.mxu0 0.0
      %2140 = vmatprep.subr.mxu0 0.0
      %2141 = vmatpush1.msra.mxu0 0.0
      %2142 = vmatprep.subr.mxu0 0.0
      %2143 = vmatpush1.msra.mxu0 0.0
      %2144 = vmatprep.subr.mxu0 0.0
      %2145 = vmatpush1.msra.mxu0 0.0
      %2146 = vmatprep.subr.mxu0 0.0
      %2147 = vmatpush1.msra.mxu0 0.0
      %2148 = vmatprep.subr.mxu0 0.0
      %2149 = vmatpush1.msra.mxu0 0.0
      %2150 = vmatprep.subr.mxu0 0.0
      %2151 = vmatpush1.msra.mxu0 0.0
      %2152 = vmatprep.subr.mxu0 0.0
      %2153 = vmatpush1.msra.mxu0 0.0
      %2154 = vmatprep.subr.mxu0 0.0
      %2155 = vmatpush1.msra.mxu0 0.0
      %2156 = vmatprep.subr.mxu0 0.0
      %2157 = vmatpush1.msra.mxu0 0.0
      %2158 = vmatprep.subr.mxu0 0.0
      %2159 = vmatpush1.msra.mxu0 0.0
      %2160 = vmatprep.mubr.f32.mxu0 0.0
      %2161 = vmatmul.mubr.f32.gmra.mrb[0].mxu0 %v2091
      %v2162 = vpop.f32.mrb[0].mxu0
      %v2163 = vadd.f32 0.0, %v2162
      %v2164 = vpop.f32.mrb[0].mxu0
      %2165 = vdwg.mxu0
      %v2167 = vsel %vm476, %v402, 0
      %v2170 = vsel %vm480, %v1700, 0
      %2172 = vmatprep.subr.mxu0 0.0
      %2173 = vmatpush1.msra.mxu0 %v2170
      %2174 = vmatprep.subr.mxu0 0.0
      %2175 = vmatpush1.msra.mxu0 0.0
      %2176 = vmatprep.subr.mxu0 0.0
      %2177 = vmatpush1.msra.mxu0 0.0
      %2178 = vmatprep.subr.mxu0 0.0
      %2179 = vmatpush1.msra.mxu0 0.0
      %2180 = vmatprep.subr.mxu0 0.0
      %2181 = vmatpush1.msra.mxu0 0.0
      %2182 = vmatprep.subr.mxu0 0.0
      %2183 = vmatpush1.msra.mxu0 0.0
      %2184 = vmatprep.subr.mxu0 0.0
      %2185 = vmatpush1.msra.mxu0 0.0
      %2186 = vmatprep.subr.mxu0 0.0
      %2187 = vmatpush1.msra.mxu0 0.0
      %2188 = vmatprep.subr.mxu0 0.0
      %2189 = vmatpush1.msra.mxu0 0.0
      %2190 = vmatprep.subr.mxu0 0.0
      %2191 = vmatpush1.msra.mxu0 0.0
      %2192 = vmatprep.subr.mxu0 0.0
      %2193 = vmatpush1.msra.mxu0 0.0
      %2194 = vmatprep.subr.mxu0 0.0
      %2195 = vmatpush1.msra.mxu0 0.0
      %2196 = vmatprep.subr.mxu0 0.0
      %2197 = vmatpush1.msra.mxu0 0.0
      %2198 = vmatprep.subr.mxu0 0.0
      %2199 = vmatpush1.msra.mxu0 0.0
      %2200 = vmatprep.subr.mxu0 0.0
      %2201 = vmatpush1.msra.mxu0 0.0
      %2202 = vmatprep.subr.mxu0 0.0
      %2203 = vmatpush1.msra.mxu0 0.0
      %2204 = vmatprep.subr.mxu0 0.0
      %2205 = vmatpush1.msra.mxu0 0.0
      %2206 = vmatprep.subr.mxu0 0.0
      %2207 = vmatpush1.msra.mxu0 0.0
      %2208 = vmatprep.subr.mxu0 0.0
      %2209 = vmatpush1.msra.mxu0 0.0
      %2210 = vmatprep.subr.mxu0 0.0
      %2211 = vmatpush1.msra.mxu0 0.0
      %2212 = vmatprep.subr.mxu0 0.0
      %2213 = vmatpush1.msra.mxu0 0.0
      %2214 = vmatprep.subr.mxu0 0.0
      %2215 = vmatpush1.msra.mxu0 0.0
      %2216 = vmatprep.subr.mxu0 0.0
      %2217 = vmatpush1.msra.mxu0 0.0
      %2218 = vmatprep.subr.mxu0 0.0
      %2219 = vmatpush1.msra.mxu0 0.0
      %2220 = vmatprep.subr.mxu0 0.0
      %2221 = vmatpush1.msra.mxu0 0.0
      %2222 = vmatprep.subr.mxu0 0.0
      %2223 = vmatpush1.msra.mxu0 0.0
      %2224 = vmatprep.subr.mxu0 0.0
      %2225 = vmatpush1.msra.mxu0 0.0
      %2226 = vmatprep.subr.mxu0 0.0
      %2227 = vmatpush1.msra.mxu0 0.0
      %2228 = vmatprep.subr.mxu0 0.0
      %2229 = vmatpush1.msra.mxu0 0.0
      %2230 = vmatprep.subr.mxu0 0.0
      %2231 = vmatpush1.msra.mxu0 0.0
      %2232 = vmatprep.subr.mxu0 0.0
      %2233 = vmatpush1.msra.mxu0 0.0
      %2234 = vmatprep.subr.mxu0 0.0
      %2235 = vmatpush1.msra.mxu0 0.0
      %2236 = vmatprep.mubr.f32.mxu0 0.0
      %2237 = vmatmul.mubr.f32.gmra.mrb[0].mxu0 %v2167
      %v2238 = vpop.f32.mrb[0].mxu0
      %v2239 = vadd.f32 0.0, %v2238
      %v2240 = vpop.f32.mrb[0].mxu0
      %2241 = vdwg.mxu0
      %v2243 = vsel %vm476, %v403, 0
      %v2246 = vsel %vm480, %v1701, 0
      %2248 = vmatprep.subr.mxu0 0.0
      %2249 = vmatpush1.msra.mxu0 %v2246
      %2250 = vmatprep.subr.mxu0 0.0
      %2251 = vmatpush1.msra.mxu0 0.0
      %2252 = vmatprep.subr.mxu0 0.0
      %2253 = vmatpush1.msra.mxu0 0.0
      %2254 = vmatprep.subr.mxu0 0.0
      %2255 = vmatpush1.msra.mxu0 0.0
      %2256 = vmatprep.subr.mxu0 0.0
      %2257 = vmatpush1.msra.mxu0 0.0
      %2258 = vmatprep.subr.mxu0 0.0
      %2259 = vmatpush1.msra.mxu0 0.0
      %2260 = vmatprep.subr.mxu0 0.0
      %2261 = vmatpush1.msra.mxu0 0.0
      %2262 = vmatprep.subr.mxu0 0.0
      %2263 = vmatpush1.msra.mxu0 0.0
      %2264 = vmatprep.subr.mxu0 0.0
      %2265 = vmatpush1.msra.mxu0 0.0
      %2266 = vmatprep.subr.mxu0 0.0
      %2267 = vmatpush1.msra.mxu0 0.0
      %2268 = vmatprep.subr.mxu0 0.0
      %2269 = vmatpush1.msra.mxu0 0.0
      %2270 = vmatprep.subr.mxu0 0.0
      %2271 = vmatpush1.msra.mxu0 0.0
      %2272 = vmatprep.subr.mxu0 0.0
      %2273 = vmatpush1.msra.mxu0 0.0
      %2274 = vmatprep.subr.mxu0 0.0
      %2275 = vmatpush1.msra.mxu0 0.0
      %2276 = vmatprep.subr.mxu0 0.0
      %2277 = vmatpush1.msra.mxu0 0.0
      %2278 = vmatprep.subr.mxu0 0.0
      %2279 = vmatpush1.msra.mxu0 0.0
      %2280 = vmatprep.subr.mxu0 0.0
      %2281 = vmatpush1.msra.mxu0 0.0
      %2282 = vmatprep.subr.mxu0 0.0
      %2283 = vmatpush1.msra.mxu0 0.0
      %2284 = vmatprep.subr.mxu0 0.0
      %2285 = vmatpush1.msra.mxu0 0.0
      %2286 = vmatprep.subr.mxu0 0.0
      %2287 = vmatpush1.msra.mxu0 0.0
      %2288 = vmatprep.subr.mxu0 0.0
      %2289 = vmatpush1.msra.mxu0 0.0
      %2290 = vmatprep.subr.mxu0 0.0
      %2291 = vmatpush1.msra.mxu0 0.0
      %2292 = vmatprep.subr.mxu0 0.0
      %2293 = vmatpush1.msra.mxu0 0.0
      %2294 = vmatprep.subr.mxu0 0.0
      %2295 = vmatpush1.msra.mxu0 0.0
      %2296 = vmatprep.subr.mxu0 0.0
      %2297 = vmatpush1.msra.mxu0 0.0
      %2298 = vmatprep.subr.mxu0 0.0
      %2299 = vmatpush1.msra.mxu0 0.0
      %2300 = vmatprep.subr.mxu0 0.0
      %2301 = vmatpush1.msra.mxu0 0.0
      %2302 = vmatprep.subr.mxu0 0.0
      %2303 = vmatpush1.msra.mxu0 0.0
      %2304 = vmatprep.subr.mxu0 0.0
      %2305 = vmatpush1.msra.mxu0 0.0
      %2306 = vmatprep.subr.mxu0 0.0
      %2307 = vmatpush1.msra.mxu0 0.0
      %2308 = vmatprep.subr.mxu0 0.0
      %2309 = vmatpush1.msra.mxu0 0.0
      %2310 = vmatprep.subr.mxu0 0.0
      %2311 = vmatpush1.msra.mxu0 0.0
      %2312 = vmatprep.mubr.f32.mxu0 0.0
      %2313 = vmatmul.mubr.f32.gmra.mrb[0].mxu0 %v2243
      %v2314 = vpop.f32.mrb[0].mxu0
      %v2315 = vadd.f32 0.0, %v2314
      %v2316 = vpop.f32.mrb[0].mxu0
      %2317 = vdwg.mxu0
      %v2319 = vsel %vm476, %v404, 0
      %v2322 = vsel %vm480, %v1702, 0
      %2324 = vmatprep.subr.mxu0 0.0
      %2325 = vmatpush1.msra.mxu0 %v2322
      %2326 = vmatprep.subr.mxu0 0.0
      %2327 = vmatpush1.msra.mxu0 0.0
      %2328 = vmatprep.subr.mxu0 0.0
      %2329 = vmatpush1.msra.mxu0 0.0
      %2330 = vmatprep.subr.mxu0 0.0
      %2331 = vmatpush1.msra.mxu0 0.0
      %2332 = vmatprep.subr.mxu0 0.0
      %2333 = vmatpush1.msra.mxu0 0.0
      %2334 = vmatprep.subr.mxu0 0.0
      %2335 = vmatpush1.msra.mxu0 0.0
      %2336 = vmatprep.subr.mxu0 0.0
      %2337 = vmatpush1.msra.mxu0 0.0
      %2338 = vmatprep.subr.mxu0 0.0
      %2339 = vmatpush1.msra.mxu0 0.0
      %2340 = vmatprep.subr.mxu0 0.0
      %2341 = vmatpush1.msra.mxu0 0.0
      %2342 = vmatprep.subr.mxu0 0.0
      %2343 = vmatpush1.msra.mxu0 0.0
      %2344 = vmatprep.subr.mxu0 0.0
      %2345 = vmatpush1.msra.mxu0 0.0
      %2346 = vmatprep.subr.mxu0 0.0
      %2347 = vmatpush1.msra.mxu0 0.0
      %2348 = vmatprep.subr.mxu0 0.0
      %2349 = vmatpush1.msra.mxu0 0.0
      %2350 = vmatprep.subr.mxu0 0.0
      %2351 = vmatpush1.msra.mxu0 0.0
      %2352 = vmatprep.subr.mxu0 0.0
      %2353 = vmatpush1.msra.mxu0 0.0
      %2354 = vmatprep.subr.mxu0 0.0
      %2355 = vmatpush1.msra.mxu0 0.0
      %2356 = vmatprep.subr.mxu0 0.0
      %2357 = vmatpush1.msra.mxu0 0.0
      %2358 = vmatprep.subr.mxu0 0.0
      %2359 = vmatpush1.msra.mxu0 0.0
      %2360 = vmatprep.subr.mxu0 0.0
      %2361 = vmatpush1.msra.mxu0 0.0
      %2362 = vmatprep.subr.mxu0 0.0
      %2363 = vmatpush1.msra.mxu0 0.0
      %2364 = vmatprep.subr.mxu0 0.0
      %2365 = vmatpush1.msra.mxu0 0.0
      %2366 = vmatprep.subr.mxu0 0.0
      %2367 = vmatpush1.msra.mxu0 0.0
      %2368 = vmatprep.subr.mxu0 0.0
      %2369 = vmatpush1.msra.mxu0 0.0
      %2370 = vmatprep.subr.mxu0 0.0
      %2371 = vmatpush1.msra.mxu0 0.0
      %2372 = vmatprep.subr.mxu0 0.0
      %2373 = vmatpush1.msra.mxu0 0.0
      %2374 = vmatprep.subr.mxu0 0.0
      %2375 = vmatpush1.msra.mxu0 0.0
      %2376 = vmatprep.subr.mxu0 0.0
      %2377 = vmatpush1.msra.mxu0 0.0
      %2378 = vmatprep.subr.mxu0 0.0
      %2379 = vmatpush1.msra.mxu0 0.0
      %2380 = vmatprep.subr.mxu0 0.0
      %2381 = vmatpush1.msra.mxu0 0.0
      %2382 = vmatprep.subr.mxu0 0.0
      %2383 = vmatpush1.msra.mxu0 0.0
      %2384 = vmatprep.subr.mxu0 0.0
      %2385 = vmatpush1.msra.mxu0 0.0
      %2386 = vmatprep.subr.mxu0 0.0
      %2387 = vmatpush1.msra.mxu0 0.0
      %2388 = vmatprep.mubr.f32.mxu0 0.0
      %2389 = vmatmul.mubr.f32.gmra.mrb[0].mxu0 %v2319
      %v2390 = vpop.f32.mrb[0].mxu0
      %v2391 = vadd.f32 0.0, %v2390
      %v2392 = vpop.f32.mrb[0].mxu0
      %2393 = vdwg.mxu0
      %v2395 = vsel %vm476, %v405, 0
      %v2398 = vsel %vm480, %v1703, 0
      %2400 = vmatprep.subr.mxu0 0.0
      %2401 = vmatpush1.msra.mxu0 %v2398
      %2402 = vmatprep.subr.mxu0 0.0
      %2403 = vmatpush1.msra.mxu0 0.0
      %2404 = vmatprep.subr.mxu0 0.0
      %2405 = vmatpush1.msra.mxu0 0.0
      %2406 = vmatprep.subr.mxu0 0.0
      %2407 = vmatpush1.msra.mxu0 0.0
      %2408 = vmatprep.subr.mxu0 0.0
      %2409 = vmatpush1.msra.mxu0 0.0
      %2410 = vmatprep.subr.mxu0 0.0
      %2411 = vmatpush1.msra.mxu0 0.0
      %2412 = vmatprep.subr.mxu0 0.0
      %2413 = vmatpush1.msra.mxu0 0.0
      %2414 = vmatprep.subr.mxu0 0.0
      %2415 = vmatpush1.msra.mxu0 0.0
      %2416 = vmatprep.subr.mxu0 0.0
      %2417 = vmatpush1.msra.mxu0 0.0
      %2418 = vmatprep.subr.mxu0 0.0
      %2419 = vmatpush1.msra.mxu0 0.0
      %2420 = vmatprep.subr.mxu0 0.0
      %2421 = vmatpush1.msra.mxu0 0.0
      %2422 = vmatprep.subr.mxu0 0.0
      %2423 = vmatpush1.msra.mxu0 0.0
      %2424 = vmatprep.subr.mxu0 0.0
      %2425 = vmatpush1.msra.mxu0 0.0
      %2426 = vmatprep.subr.mxu0 0.0
      %2427 = vmatpush1.msra.mxu0 0.0
      %2428 = vmatprep.subr.mxu0 0.0
      %2429 = vmatpush1.msra.mxu0 0.0
      %2430 = vmatprep.subr.mxu0 0.0
      %2431 = vmatpush1.msra.mxu0 0.0
      %2432 = vmatprep.subr.mxu0 0.0
      %2433 = vmatpush1.msra.mxu0 0.0
      %2434 = vmatprep.subr.mxu0 0.0
      %2435 = vmatpush1.msra.mxu0 0.0
      %2436 = vmatprep.subr.mxu0 0.0
      %2437 = vmatpush1.msra.mxu0 0.0
      %2438 = vmatprep.subr.mxu0 0.0
      %2439 = vmatpush1.msra.mxu0 0.0
      %2440 = vmatprep.subr.mxu0 0.0
      %2441 = vmatpush1.msra.mxu0 0.0
      %2442 = vmatprep.subr.mxu0 0.0
      %2443 = vmatpush1.msra.mxu0 0.0
      %2444 = vmatprep.subr.mxu0 0.0
      %2445 = vmatpush1.msra.mxu0 0.0
      %2446 = vmatprep.subr.mxu0 0.0
      %2447 = vmatpush1.msra.mxu0 0.0
      %2448 = vmatprep.subr.mxu0 0.0
      %2449 = vmatpush1.msra.mxu0 0.0
      %2450 = vmatprep.subr.mxu0 0.0
      %2451 = vmatpush1.msra.mxu0 0.0
      %2452 = vmatprep.subr.mxu0 0.0
      %2453 = vmatpush1.msra.mxu0 0.0
      %2454 = vmatprep.subr.mxu0 0.0
      %2455 = vmatpush1.msra.mxu0 0.0
      %2456 = vmatprep.subr.mxu0 0.0
      %2457 = vmatpush1.msra.mxu0 0.0
      %2458 = vmatprep.subr.mxu0 0.0
      %2459 = vmatpush1.msra.mxu0 0.0
      %2460 = vmatprep.subr.mxu0 0.0
      %2461 = vmatpush1.msra.mxu0 0.0
      %2462 = vmatprep.subr.mxu0 0.0
      %2463 = vmatpush1.msra.mxu0 0.0
      %2464 = vmatprep.mubr.f32.mxu0 0.0
      %2465 = vmatmul.mubr.f32.gmra.mrb[0].mxu0 %v2395
      %v2466 = vpop.f32.mrb[0].mxu0
      %v2467 = vadd.f32 0.0, %v2466
      %v2468 = vpop.f32.mrb[0].mxu0
      %2469 = vdwg.mxu0
      %v2471 = vsel %vm476, %v406, 0
      %v2474 = vsel %vm480, %v1704, 0
      %2476 = vmatprep.subr.mxu0 0.0
      %2477 = vmatpush1.msra.mxu0 %v2474
      %2478 = vmatprep.subr.mxu0 0.0
      %2479 = vmatpush1.msra.mxu0 0.0
      %2480 = vmatprep.subr.mxu0 0.0
      %2481 = vmatpush1.msra.mxu0 0.0
      %2482 = vmatprep.subr.mxu0 0.0
      %2483 = vmatpush1.msra.mxu0 0.0
      %2484 = vmatprep.subr.mxu0 0.0
      %2485 = vmatpush1.msra.mxu0 0.0
      %2486 = vmatprep.subr.mxu0 0.0
      %2487 = vmatpush1.msra.mxu0 0.0
      %2488 = vmatprep.subr.mxu0 0.0
      %2489 = vmatpush1.msra.mxu0 0.0
      %2490 = vmatprep.subr.mxu0 0.0
      %2491 = vmatpush1.msra.mxu0 0.0
      %2492 = vmatprep.subr.mxu0 0.0
      %2493 = vmatpush1.msra.mxu0 0.0
      %2494 = vmatprep.subr.mxu0 0.0
      %2495 = vmatpush1.msra.mxu0 0.0
      %2496 = vmatprep.subr.mxu0 0.0
      %2497 = vmatpush1.msra.mxu0 0.0
      %2498 = vmatprep.subr.mxu0 0.0
      %2499 = vmatpush1.msra.mxu0 0.0
      %2500 = vmatprep.subr.mxu0 0.0
      %2501 = vmatpush1.msra.mxu0 0.0
      %2502 = vmatprep.subr.mxu0 0.0
      %2503 = vmatpush1.msra.mxu0 0.0
      %2504 = vmatprep.subr.mxu0 0.0
      %2505 = vmatpush1.msra.mxu0 0.0
      %2506 = vmatprep.subr.mxu0 0.0
      %2507 = vmatpush1.msra.mxu0 0.0
      %2508 = vmatprep.subr.mxu0 0.0
      %2509 = vmatpush1.msra.mxu0 0.0
      %2510 = vmatprep.subr.mxu0 0.0
      %2511 = vmatpush1.msra.mxu0 0.0
      %2512 = vmatprep.subr.mxu0 0.0
      %2513 = vmatpush1.msra.mxu0 0.0
      %2514 = vmatprep.subr.mxu0 0.0
      %2515 = vmatpush1.msra.mxu0 0.0
      %2516 = vmatprep.subr.mxu0 0.0
      %2517 = vmatpush1.msra.mxu0 0.0
      %2518 = vmatprep.subr.mxu0 0.0
      %2519 = vmatpush1.msra.mxu0 0.0
      %2520 = vmatprep.subr.mxu0 0.0
      %2521 = vmatpush1.msra.mxu0 0.0
      %2522 = vmatprep.subr.mxu0 0.0
      %2523 = vmatpush1.msra.mxu0 0.0
      %2524 = vmatprep.subr.mxu0 0.0
      %2525 = vmatpush1.msra.mxu0 0.0
      %2526 = vmatprep.subr.mxu0 0.0
      %2527 = vmatpush1.msra.mxu0 0.0
      %2528 = vmatprep.subr.mxu0 0.0
      %2529 = vmatpush1.msra.mxu0 0.0
      %2530 = vmatprep.subr.mxu0 0.0
      %2531 = vmatpush1.msra.mxu0 0.0
      %2532 = vmatprep.subr.mxu0 0.0
      %2533 = vmatpush1.msra.mxu0 0.0
      %2534 = vmatprep.subr.mxu0 0.0
      %2535 = vmatpush1.msra.mxu0 0.0
      %2536 = vmatprep.subr.mxu0 0.0
      %2537 = vmatpush1.msra.mxu0 0.0
      %2538 = vmatprep.subr.mxu0 0.0
      %2539 = vmatpush1.msra.mxu0 0.0
      %2540 = vmatprep.mubr.f32.mxu0 0.0
      %2541 = vmatmul.mubr.f32.gmra.mrb[0].mxu0 %v2471
      %v2542 = vpop.f32.mrb[0].mxu0
      %v2543 = vadd.f32 0.0, %v2542
      %v2544 = vpop.f32.mrb[0].mxu0
      %2545 = vdwg.mxu0
      %v2547 = vsel %vm476, %v407, 0
      %v2550 = vsel %vm480, %v1705, 0
      %2552 = vmatprep.subr.mxu0 0.0
      %2553 = vmatpush1.msra.mxu0 %v2550
      %2554 = vmatprep.subr.mxu0 0.0
      %2555 = vmatpush1.msra.mxu0 0.0
      %2556 = vmatprep.subr.mxu0 0.0
      %2557 = vmatpush1.msra.mxu0 0.0
      %2558 = vmatprep.subr.mxu0 0.0
      %2559 = vmatpush1.msra.mxu0 0.0
      %2560 = vmatprep.subr.mxu0 0.0
      %2561 = vmatpush1.msra.mxu0 0.0
      %2562 = vmatprep.subr.mxu0 0.0
      %2563 = vmatpush1.msra.mxu0 0.0
      %2564 = vmatprep.subr.mxu0 0.0
      %2565 = vmatpush1.msra.mxu0 0.0
      %2566 = vmatprep.subr.mxu0 0.0
      %2567 = vmatpush1.msra.mxu0 0.0
      %2568 = vmatprep.subr.mxu0 0.0
      %2569 = vmatpush1.msra.mxu0 0.0
      %2570 = vmatprep.subr.mxu0 0.0
      %2571 = vmatpush1.msra.mxu0 0.0
      %2572 = vmatprep.subr.mxu0 0.0
      %2573 = vmatpush1.msra.mxu0 0.0
      %2574 = vmatprep.subr.mxu0 0.0
      %2575 = vmatpush1.msra.mxu0 0.0
      %2576 = vmatprep.subr.mxu0 0.0
      %2577 = vmatpush1.msra.mxu0 0.0
      %2578 = vmatprep.subr.mxu0 0.0
      %2579 = vmatpush1.msra.mxu0 0.0
      %2580 = vmatprep.subr.mxu0 0.0
      %2581 = vmatpush1.msra.mxu0 0.0
      %2582 = vmatprep.subr.mxu0 0.0
      %2583 = vmatpush1.msra.mxu0 0.0
      %2584 = vmatprep.subr.mxu0 0.0
      %2585 = vmatpush1.msra.mxu0 0.0
      %2586 = vmatprep.subr.mxu0 0.0
      %2587 = vmatpush1.msra.mxu0 0.0
      %2588 = vmatprep.subr.mxu0 0.0
      %2589 = vmatpush1.msra.mxu0 0.0
      %2590 = vmatprep.subr.mxu0 0.0
      %2591 = vmatpush1.msra.mxu0 0.0
      %2592 = vmatprep.subr.mxu0 0.0
      %2593 = vmatpush1.msra.mxu0 0.0
      %2594 = vmatprep.subr.mxu0 0.0
      %2595 = vmatpush1.msra.mxu0 0.0
      %2596 = vmatprep.subr.mxu0 0.0
      %2597 = vmatpush1.msra.mxu0 0.0
      %2598 = vmatprep.subr.mxu0 0.0
      %2599 = vmatpush1.msra.mxu0 0.0
      %2600 = vmatprep.subr.mxu0 0.0
      %2601 = vmatpush1.msra.mxu0 0.0
      %2602 = vmatprep.subr.mxu0 0.0
      %2603 = vmatpush1.msra.mxu0 0.0
      %2604 = vmatprep.subr.mxu0 0.0
      %2605 = vmatpush1.msra.mxu0 0.0
      %2606 = vmatprep.subr.mxu0 0.0
      %2607 = vmatpush1.msra.mxu0 0.0
      %2608 = vmatprep.subr.mxu0 0.0
      %2609 = vmatpush1.msra.mxu0 0.0
      %2610 = vmatprep.subr.mxu0 0.0
      %2611 = vmatpush1.msra.mxu0 0.0
      %2612 = vmatprep.subr.mxu0 0.0
      %2613 = vmatpush1.msra.mxu0 0.0
      %2614 = vmatprep.subr.mxu0 0.0
      %2615 = vmatpush1.msra.mxu0 0.0
      %2616 = vmatprep.mubr.f32.mxu0 0.0
      %2617 = vmatmul.mubr.f32.gmra.mrb[0].mxu0 %v2547
      %v2618 = vpop.f32.mrb[0].mxu0
      %v2619 = vadd.f32 0.0, %v2618
      %v2620 = vpop.f32.mrb[0].mxu0
      %2621 = vdwg.mxu0
      %v2623 = vsel %vm476, %v408, 0
      %v2626 = vsel %vm480, %v1706, 0
      %2628 = vmatprep.subr.mxu0 0.0
      %2629 = vmatpush1.msra.mxu0 %v2626
      %2630 = vmatprep.subr.mxu0 0.0
      %2631 = vmatpush1.msra.mxu0 0.0
      %2632 = vmatprep.subr.mxu0 0.0
      %2633 = vmatpush1.msra.mxu0 0.0
      %2634 = vmatprep.subr.mxu0 0.0
      %2635 = vmatpush1.msra.mxu0 0.0
      %2636 = vmatprep.subr.mxu0 0.0
      %2637 = vmatpush1.msra.mxu0 0.0
      %2638 = vmatprep.subr.mxu0 0.0
      %2639 = vmatpush1.msra.mxu0 0.0
      %2640 = vmatprep.subr.mxu0 0.0
      %2641 = vmatpush1.msra.mxu0 0.0
      %2642 = vmatprep.subr.mxu0 0.0
      %2643 = vmatpush1.msra.mxu0 0.0
      %2644 = vmatprep.subr.mxu0 0.0
      %2645 = vmatpush1.msra.mxu0 0.0
      %2646 = vmatprep.subr.mxu0 0.0
      %2647 = vmatpush1.msra.mxu0 0.0
      %2648 = vmatprep.subr.mxu0 0.0
      %2649 = vmatpush1.msra.mxu0 0.0
      %2650 = vmatprep.subr.mxu0 0.0
      %2651 = vmatpush1.msra.mxu0 0.0
      %2652 = vmatprep.subr.mxu0 0.0
      %2653 = vmatpush1.msra.mxu0 0.0
      %2654 = vmatprep.subr.mxu0 0.0
      %2655 = vmatpush1.msra.mxu0 0.0
      %2656 = vmatprep.subr.mxu0 0.0
      %2657 = vmatpush1.msra.mxu0 0.0
      %2658 = vmatprep.subr.mxu0 0.0
      %2659 = vmatpush1.msra.mxu0 0.0
      %2660 = vmatprep.subr.mxu0 0.0
      %2661 = vmatpush1.msra.mxu0 0.0
      %2662 = vmatprep.subr.mxu0 0.0
      %2663 = vmatpush1.msra.mxu0 0.0
      %2664 = vmatprep.subr.mxu0 0.0
      %2665 = vmatpush1.msra.mxu0 0.0
      %2666 = vmatprep.subr.mxu0 0.0
      %2667 = vmatpush1.msra.mxu0 0.0
      %2668 = vmatprep.subr.mxu0 0.0
      %2669 = vmatpush1.msra.mxu0 0.0
      %2670 = vmatprep.subr.mxu0 0.0
      %2671 = vmatpush1.msra.mxu0 0.0
      %2672 = vmatprep.subr.mxu0 0.0
      %2673 = vmatpush1.msra.mxu0 0.0
      %2674 = vmatprep.subr.mxu0 0.0
      %2675 = vmatpush1.msra.mxu0 0.0
      %2676 = vmatprep.subr.mxu0 0.0
      %2677 = vmatpush1.msra.mxu0 0.0
      %2678 = vmatprep.subr.mxu0 0.0
      %2679 = vmatpush1.msra.mxu0 0.0
      %2680 = vmatprep.subr.mxu0 0.0
      %2681 = vmatpush1.msra.mxu0 0.0
      %2682 = vmatprep.subr.mxu0 0.0
      %2683 = vmatpush1.msra.mxu0 0.0
      %2684 = vmatprep.subr.mxu0 0.0
      %2685 = vmatpush1.msra.mxu0 0.0
      %2686 = vmatprep.subr.mxu0 0.0
      %2687 = vmatpush1.msra.mxu0 0.0
      %2688 = vmatprep.subr.mxu0 0.0
      %2689 = vmatpush1.msra.mxu0 0.0
      %2690 = vmatprep.subr.mxu0 0.0
      %2691 = vmatpush1.msra.mxu0 0.0
      %2692 = vmatprep.mubr.f32.mxu0 0.0
      %2693 = vmatmul.mubr.f32.gmra.mrb[0].mxu0 %v2623
      %v2694 = vpop.f32.mrb[0].mxu0
      %v2695 = vadd.f32 0.0, %v2694
      %v2696 = vpop.f32.mrb[0].mxu0
      %2697 = vdwg.mxu0
      %v2699 = vsel %vm476, %v409, 0
      %v2702 = vsel %vm480, %v1707, 0
      %2704 = vmatprep.subr.mxu0 0.0
      %2705 = vmatpush1.msra.mxu0 %v2702
      %2706 = vmatprep.subr.mxu0 0.0
      %2707 = vmatpush1.msra.mxu0 0.0
      %2708 = vmatprep.subr.mxu0 0.0
      %2709 = vmatpush1.msra.mxu0 0.0
      %2710 = vmatprep.subr.mxu0 0.0
      %2711 = vmatpush1.msra.mxu0 0.0
      %2712 = vmatprep.subr.mxu0 0.0
      %2713 = vmatpush1.msra.mxu0 0.0
      %2714 = vmatprep.subr.mxu0 0.0
      %2715 = vmatpush1.msra.mxu0 0.0
      %2716 = vmatprep.subr.mxu0 0.0
      %2717 = vmatpush1.msra.mxu0 0.0
      %2718 = vmatprep.subr.mxu0 0.0
      %2719 = vmatpush1.msra.mxu0 0.0
      %2720 = vmatprep.subr.mxu0 0.0
      %2721 = vmatpush1.msra.mxu0 0.0
      %2722 = vmatprep.subr.mxu0 0.0
      %2723 = vmatpush1.msra.mxu0 0.0
      %2724 = vmatprep.subr.mxu0 0.0
      %2725 = vmatpush1.msra.mxu0 0.0
      %2726 = vmatprep.subr.mxu0 0.0
      %2727 = vmatpush1.msra.mxu0 0.0
      %2728 = vmatprep.subr.mxu0 0.0
      %2729 = vmatpush1.msra.mxu0 0.0
      %2730 = vmatprep.subr.mxu0 0.0
      %2731 = vmatpush1.msra.mxu0 0.0
      %2732 = vmatprep.subr.mxu0 0.0
      %2733 = vmatpush1.msra.mxu0 0.0
      %2734 = vmatprep.subr.mxu0 0.0
      %2735 = vmatpush1.msra.mxu0 0.0
      %2736 = vmatprep.subr.mxu0 0.0
      %2737 = vmatpush1.msra.mxu0 0.0
      %2738 = vmatprep.subr.mxu0 0.0
      %2739 = vmatpush1.msra.mxu0 0.0
      %2740 = vmatprep.subr.mxu0 0.0
      %2741 = vmatpush1.msra.mxu0 0.0
      %2742 = vmatprep.subr.mxu0 0.0
      %2743 = vmatpush1.msra.mxu0 0.0
      %2744 = vmatprep.subr.mxu0 0.0
      %2745 = vmatpush1.msra.mxu0 0.0
      %2746 = vmatprep.subr.mxu0 0.0
      %2747 = vmatpush1.msra.mxu0 0.0
      %2748 = vmatprep.subr.mxu0 0.0
      %2749 = vmatpush1.msra.mxu0 0.0
      %2750 = vmatprep.subr.mxu0 0.0
      %2751 = vmatpush1.msra.mxu0 0.0
      %2752 = vmatprep.subr.mxu0 0.0
      %2753 = vmatpush1.msra.mxu0 0.0
      %2754 = vmatprep.subr.mxu0 0.0
      %2755 = vmatpush1.msra.mxu0 0.0
      %2756 = vmatprep.subr.mxu0 0.0
      %2757 = vmatpush1.msra.mxu0 0.0
      %2758 = vmatprep.subr.mxu0 0.0
      %2759 = vmatpush1.msra.mxu0 0.0
      %2760 = vmatprep.subr.mxu0 0.0
      %2761 = vmatpush1.msra.mxu0 0.0
      %2762 = vmatprep.subr.mxu0 0.0
      %2763 = vmatpush1.msra.mxu0 0.0
      %2764 = vmatprep.subr.mxu0 0.0
      %2765 = vmatpush1.msra.mxu0 0.0
      %2766 = vmatprep.subr.mxu0 0.0
      %2767 = vmatpush1.msra.mxu0 0.0
      %2768 = vmatprep.mubr.f32.mxu0 0.0
      %2769 = vmatmul.mubr.f32.gmra.mrb[0].mxu0 %v2699
      %v2770 = vpop.f32.mrb[0].mxu0
      %v2771 = vadd.f32 0.0, %v2770
      %v2772 = vpop.f32.mrb[0].mxu0
      %2773 = vdwg.mxu0
      %v2775 = vsel %vm476, %v410, 0
      %v2778 = vsel %vm480, %v1708, 0
      %2780 = vmatprep.subr.mxu0 0.0
      %2781 = vmatpush1.msra.mxu0 %v2778
      %2782 = vmatprep.subr.mxu0 0.0
      %2783 = vmatpush1.msra.mxu0 0.0
      %2784 = vmatprep.subr.mxu0 0.0
      %2785 = vmatpush1.msra.mxu0 0.0
      %2786 = vmatprep.subr.mxu0 0.0
      %2787 = vmatpush1.msra.mxu0 0.0
      %2788 = vmatprep.subr.mxu0 0.0
      %2789 = vmatpush1.msra.mxu0 0.0
      %2790 = vmatprep.subr.mxu0 0.0
      %2791 = vmatpush1.msra.mxu0 0.0
      %2792 = vmatprep.subr.mxu0 0.0
      %2793 = vmatpush1.msra.mxu0 0.0
      %2794 = vmatprep.subr.mxu0 0.0
      %2795 = vmatpush1.msra.mxu0 0.0
      %2796 = vmatprep.subr.mxu0 0.0
      %2797 = vmatpush1.msra.mxu0 0.0
      %2798 = vmatprep.subr.mxu0 0.0
      %2799 = vmatpush1.msra.mxu0 0.0
      %2800 = vmatprep.subr.mxu0 0.0
      %2801 = vmatpush1.msra.mxu0 0.0
      %2802 = vmatprep.subr.mxu0 0.0
      %2803 = vmatpush1.msra.mxu0 0.0
      %2804 = vmatprep.subr.mxu0 0.0
      %2805 = vmatpush1.msra.mxu0 0.0
      %2806 = vmatprep.subr.mxu0 0.0
      %2807 = vmatpush1.msra.mxu0 0.0
      %2808 = vmatprep.subr.mxu0 0.0
      %2809 = vmatpush1.msra.mxu0 0.0
      %2810 = vmatprep.subr.mxu0 0.0
      %2811 = vmatpush1.msra.mxu0 0.0
      %2812 = vmatprep.subr.mxu0 0.0
      %2813 = vmatpush1.msra.mxu0 0.0
      %2814 = vmatprep.subr.mxu0 0.0
      %2815 = vmatpush1.msra.mxu0 0.0
      %2816 = vmatprep.subr.mxu0 0.0
      %2817 = vmatpush1.msra.mxu0 0.0
      %2818 = vmatprep.subr.mxu0 0.0
      %2819 = vmatpush1.msra.mxu0 0.0
      %2820 = vmatprep.subr.mxu0 0.0
      %2821 = vmatpush1.msra.mxu0 0.0
      %2822 = vmatprep.subr.mxu0 0.0
      %2823 = vmatpush1.msra.mxu0 0.0
      %2824 = vmatprep.subr.mxu0 0.0
      %2825 = vmatpush1.msra.mxu0 0.0
      %2826 = vmatprep.subr.mxu0 0.0
      %2827 = vmatpush1.msra.mxu0 0.0
      %2828 = vmatprep.subr.mxu0 0.0
      %2829 = vmatpush1.msra.mxu0 0.0
      %2830 = vmatprep.subr.mxu0 0.0
      %2831 = vmatpush1.msra.mxu0 0.0
      %2832 = vmatprep.subr.mxu0 0.0
      %2833 = vmatpush1.msra.mxu0 0.0
      %2834 = vmatprep.subr.mxu0 0.0
      %2835 = vmatpush1.msra.mxu0 0.0
      %2836 = vmatprep.subr.mxu0 0.0
      %2837 = vmatpush1.msra.mxu0 0.0
      %2838 = vmatprep.subr.mxu0 0.0
      %2839 = vmatpush1.msra.mxu0 0.0
      %2840 = vmatprep.subr.mxu0 0.0
      %2841 = vmatpush1.msra.mxu0 0.0
      %2842 = vmatprep.subr.mxu0 0.0
      %2843 = vmatpush1.msra.mxu0 0.0
      %2844 = vmatprep.mubr.f32.mxu0 0.0
      %2845 = vmatmul.mubr.f32.gmra.mrb[0].mxu0 %v2775
      %v2846 = vpop.f32.mrb[0].mxu0
      %v2847 = vadd.f32 0.0, %v2846
      %v2848 = vpop.f32.mrb[0].mxu0
      %2849 = vdwg.mxu0
      %v2851 = vsel %vm476, %v411, 0
      %v2854 = vsel %vm480, %v1709, 0
      %2856 = vmatprep.subr.mxu0 0.0
      %2857 = vmatpush1.msra.mxu0 %v2854
      %2858 = vmatprep.subr.mxu0 0.0
      %2859 = vmatpush1.msra.mxu0 0.0
      %2860 = vmatprep.subr.mxu0 0.0
      %2861 = vmatpush1.msra.mxu0 0.0
      %2862 = vmatprep.subr.mxu0 0.0
      %2863 = vmatpush1.msra.mxu0 0.0
      %2864 = vmatprep.subr.mxu0 0.0
      %2865 = vmatpush1.msra.mxu0 0.0
      %2866 = vmatprep.subr.mxu0 0.0
      %2867 = vmatpush1.msra.mxu0 0.0
      %2868 = vmatprep.subr.mxu0 0.0
      %2869 = vmatpush1.msra.mxu0 0.0
      %2870 = vmatprep.subr.mxu0 0.0
      %2871 = vmatpush1.msra.mxu0 0.0
      %2872 = vmatprep.subr.mxu0 0.0
      %2873 = vmatpush1.msra.mxu0 0.0
      %2874 = vmatprep.subr.mxu0 0.0
      %2875 = vmatpush1.msra.mxu0 0.0
      %2876 = vmatprep.subr.mxu0 0.0
      %2877 = vmatpush1.msra.mxu0 0.0
      %2878 = vmatprep.subr.mxu0 0.0
      %2879 = vmatpush1.msra.mxu0 0.0
      %2880 = vmatprep.subr.mxu0 0.0
      %2881 = vmatpush1.msra.mxu0 0.0
      %2882 = vmatprep.subr.mxu0 0.0
      %2883 = vmatpush1.msra.mxu0 0.0
      %2884 = vmatprep.subr.mxu0 0.0
      %2885 = vmatpush1.msra.mxu0 0.0
      %2886 = vmatprep.subr.mxu0 0.0
      %2887 = vmatpush1.msra.mxu0 0.0
      %2888 = vmatprep.subr.mxu0 0.0
      %2889 = vmatpush1.msra.mxu0 0.0
      %2890 = vmatprep.subr.mxu0 0.0
      %2891 = vmatpush1.msra.mxu0 0.0
      %2892 = vmatprep.subr.mxu0 0.0
      %2893 = vmatpush1.msra.mxu0 0.0
      %2894 = vmatprep.subr.mxu0 0.0
      %2895 = vmatpush1.msra.mxu0 0.0
      %2896 = vmatprep.subr.mxu0 0.0
      %2897 = vmatpush1.msra.mxu0 0.0
      %2898 = vmatprep.subr.mxu0 0.0
      %2899 = vmatpush1.msra.mxu0 0.0
      %2900 = vmatprep.subr.mxu0 0.0
      %2901 = vmatpush1.msra.mxu0 0.0
      %2902 = vmatprep.subr.mxu0 0.0
      %2903 = vmatpush1.msra.mxu0 0.0
      %2904 = vmatprep.subr.mxu0 0.0
      %2905 = vmatpush1.msra.mxu0 0.0
      %2906 = vmatprep.subr.mxu0 0.0
      %2907 = vmatpush1.msra.mxu0 0.0
      %2908 = vmatprep.subr.mxu0 0.0
      %2909 = vmatpush1.msra.mxu0 0.0
      %2910 = vmatprep.subr.mxu0 0.0
      %2911 = vmatpush1.msra.mxu0 0.0
      %2912 = vmatprep.subr.mxu0 0.0
      %2913 = vmatpush1.msra.mxu0 0.0
      %2914 = vmatprep.subr.mxu0 0.0
      %2915 = vmatpush1.msra.mxu0 0.0
      %2916 = vmatprep.subr.mxu0 0.0
      %2917 = vmatpush1.msra.mxu0 0.0
      %2918 = vmatprep.subr.mxu0 0.0
      %2919 = vmatpush1.msra.mxu0 0.0
      %2920 = vmatprep.mubr.f32.mxu0 0.0
      %2921 = vmatmul.mubr.f32.gmra.mrb[0].mxu0 %v2851
      %v2922 = vpop.f32.mrb[0].mxu0
      %v2923 = vadd.f32 0.0, %v2922
      %v2924 = vpop.f32.mrb[0].mxu0
      %2925 = vdwg.mxu0
      %v2926 = vadd.f32 %v428, %v444
      %v2927 = vadd.f32 %v429, %v445
      %v2928 = vadd.f32 %v430, %v446
      %v2929 = vadd.f32 %v431, %v447
      %v2930 = vadd.f32 %v432, %v448
      %v2931 = vadd.f32 %v433, %v449
      %v2932 = vadd.f32 %v434, %v450
      %v2933 = vadd.f32 %v435, %v451
      %v2934 = vadd.f32 %v436, %v452
      %v2935 = vadd.f32 %v437, %v453
      %v2936 = vadd.f32 %v438, %v454
      %v2937 = vadd.f32 %v439, %v455
      %v2938 = vadd.f32 %v440, %v456
      %v2939 = vadd.f32 %v441, %v457
      %v2940 = vadd.f32 %v442, %v458
      %v2941 = vadd.f32 %v443, %v459
      %v2943 = vsel %vm476, %v412, 0
      %v2946 = vsel %vm480, %v2926, 0
      %2948 = vmatprep.subr.mxu0 0.0
      %2949 = vmatpush1.msra.mxu0 %v2946
      %2950 = vmatprep.subr.mxu0 0.0
      %2951 = vmatpush1.msra.mxu0 0.0
      %2952 = vmatprep.subr.mxu0 0.0
      %2953 = vmatpush1.msra.mxu0 0.0
      %2954 = vmatprep.subr.mxu0 0.0
      %2955 = vmatpush1.msra.mxu0 0.0
      %2956 = vmatprep.subr.mxu0 0.0
      %2957 = vmatpush1.msra.mxu0 0.0
      %2958 = vmatprep.subr.mxu0 0.0
      %2959 = vmatpush1.msra.mxu0 0.0
      %2960 = vmatprep.subr.mxu0 0.0
      %2961 = vmatpush1.msra.mxu0 0.0
      %2962 = vmatprep.subr.mxu0 0.0
      %2963 = vmatpush1.msra.mxu0 0.0
      %2964 = vmatprep.subr.mxu0 0.0
      %2965 = vmatpush1.msra.mxu0 0.0
      %2966 = vmatprep.subr.mxu0 0.0
      %2967 = vmatpush1.msra.mxu0 0.0
      %2968 = vmatprep.subr.mxu0 0.0
      %2969 = vmatpush1.msra.mxu0 0.0
      %2970 = vmatprep.subr.mxu0 0.0
      %2971 = vmatpush1.msra.mxu0 0.0
      %2972 = vmatprep.subr.mxu0 0.0
      %2973 = vmatpush1.msra.mxu0 0.0
      %2974 = vmatprep.subr.mxu0 0.0
      %2975 = vmatpush1.msra.mxu0 0.0
      %2976 = vmatprep.subr.mxu0 0.0
      %2977 = vmatpush1.msra.mxu0 0.0
      %2978 = vmatprep.subr.mxu0 0.0
      %2979 = vmatpush1.msra.mxu0 0.0
      %2980 = vmatprep.subr.mxu0 0.0
      %2981 = vmatpush1.msra.mxu0 0.0
      %2982 = vmatprep.subr.mxu0 0.0
      %2983 = vmatpush1.msra.mxu0 0.0
      %2984 = vmatprep.subr.mxu0 0.0
      %2985 = vmatpush1.msra.mxu0 0.0
      %2986 = vmatprep.subr.mxu0 0.0
      %2987 = vmatpush1.msra.mxu0 0.0
      %2988 = vmatprep.subr.mxu0 0.0
      %2989 = vmatpush1.msra.mxu0 0.0
      %2990 = vmatprep.subr.mxu0 0.0
      %2991 = vmatpush1.msra.mxu0 0.0
      %2992 = vmatprep.subr.mxu0 0.0
      %2993 = vmatpush1.msra.mxu0 0.0
      %2994 = vmatprep.subr.mxu0 0.0
      %2995 = vmatpush1.msra.mxu0 0.0
      %2996 = vmatprep.subr.mxu0 0.0
      %2997 = vmatpush1.msra.mxu0 0.0
      %2998 = vmatprep.subr.mxu0 0.0
      %2999 = vmatpush1.msra.mxu0 0.0
      %3000 = vmatprep.subr.mxu0 0.0
      %3001 = vmatpush1.msra.mxu0 0.0
      %3002 = vmatprep.subr.mxu0 0.0
      %3003 = vmatpush1.msra.mxu0 0.0
      %3004 = vmatprep.subr.mxu0 0.0
      %3005 = vmatpush1.msra.mxu0 0.0
      %3006 = vmatprep.subr.mxu0 0.0
      %3007 = vmatpush1.msra.mxu0 0.0
      %3008 = vmatprep.subr.mxu0 0.0
      %3009 = vmatpush1.msra.mxu0 0.0
      %3010 = vmatprep.subr.mxu0 0.0
      %3011 = vmatpush1.msra.mxu0 0.0
      %3012 = vmatprep.mubr.f32.mxu0 0.0
      %3013 = vmatmul.mubr.f32.gmra.mrb[0].mxu0 %v2943
      %v3014 = vpop.f32.mrb[0].mxu0
      %v3015 = vadd.f32 0.0, %v3014
      %v3016 = vpop.f32.mrb[0].mxu0
      %3017 = vdwg.mxu0
      %v3019 = vsel %vm476, %v413, 0
      %v3022 = vsel %vm480, %v2927, 0
      %3024 = vmatprep.subr.mxu0 0.0
      %3025 = vmatpush1.msra.mxu0 %v3022
      %3026 = vmatprep.subr.mxu0 0.0
      %3027 = vmatpush1.msra.mxu0 0.0
      %3028 = vmatprep.subr.mxu0 0.0
      %3029 = vmatpush1.msra.mxu0 0.0
      %3030 = vmatprep.subr.mxu0 0.0
      %3031 = vmatpush1.msra.mxu0 0.0
      %3032 = vmatprep.subr.mxu0 0.0
      %3033 = vmatpush1.msra.mxu0 0.0
      %3034 = vmatprep.subr.mxu0 0.0
      %3035 = vmatpush1.msra.mxu0 0.0
      %3036 = vmatprep.subr.mxu0 0.0
      %3037 = vmatpush1.msra.mxu0 0.0
      %3038 = vmatprep.subr.mxu0 0.0
      %3039 = vmatpush1.msra.mxu0 0.0
      %3040 = vmatprep.subr.mxu0 0.0
      %3041 = vmatpush1.msra.mxu0 0.0
      %3042 = vmatprep.subr.mxu0 0.0
      %3043 = vmatpush1.msra.mxu0 0.0
      %3044 = vmatprep.subr.mxu0 0.0
      %3045 = vmatpush1.msra.mxu0 0.0
      %3046 = vmatprep.subr.mxu0 0.0
      %3047 = vmatpush1.msra.mxu0 0.0
      %3048 = vmatprep.subr.mxu0 0.0
      %3049 = vmatpush1.msra.mxu0 0.0
      %3050 = vmatprep.subr.mxu0 0.0
      %3051 = vmatpush1.msra.mxu0 0.0
      %3052 = vmatprep.subr.mxu0 0.0
      %3053 = vmatpush1.msra.mxu0 0.0
      %3054 = vmatprep.subr.mxu0 0.0
      %3055 = vmatpush1.msra.mxu0 0.0
      %3056 = vmatprep.subr.mxu0 0.0
      %3057 = vmatpush1.msra.mxu0 0.0
      %3058 = vmatprep.subr.mxu0 0.0
      %3059 = vmatpush1.msra.mxu0 0.0
      %3060 = vmatprep.subr.mxu0 0.0
      %3061 = vmatpush1.msra.mxu0 0.0
      %3062 = vmatprep.subr.mxu0 0.0
      %3063 = vmatpush1.msra.mxu0 0.0
      %3064 = vmatprep.subr.mxu0 0.0
      %3065 = vmatpush1.msra.mxu0 0.0
      %3066 = vmatprep.subr.mxu0 0.0
      %3067 = vmatpush1.msra.mxu0 0.0
      %3068 = vmatprep.subr.mxu0 0.0
      %3069 = vmatpush1.msra.mxu0 0.0
      %3070 = vmatprep.subr.mxu0 0.0
      %3071 = vmatpush1.msra.mxu0 0.0
      %3072 = vmatprep.subr.mxu0 0.0
      %3073 = vmatpush1.msra.mxu0 0.0
      %3074 = vmatprep.subr.mxu0 0.0
      %3075 = vmatpush1.msra.mxu0 0.0
      %3076 = vmatprep.subr.mxu0 0.0
      %3077 = vmatpush1.msra.mxu0 0.0
      %3078 = vmatprep.subr.mxu0 0.0
      %3079 = vmatpush1.msra.mxu0 0.0
      %3080 = vmatprep.subr.mxu0 0.0
      %3081 = vmatpush1.msra.mxu0 0.0
      %3082 = vmatprep.subr.mxu0 0.0
      %3083 = vmatpush1.msra.mxu0 0.0
      %3084 = vmatprep.subr.mxu0 0.0
      %3085 = vmatpush1.msra.mxu0 0.0
      %3086 = vmatprep.subr.mxu0 0.0
      %3087 = vmatpush1.msra.mxu0 0.0
      %3088 = vmatprep.mubr.f32.mxu0 0.0
      %3089 = vmatmul.mubr.f32.gmra.mrb[0].mxu0 %v3019
      %v3090 = vpop.f32.mrb[0].mxu0
      %v3091 = vadd.f32 0.0, %v3090
      %v3092 = vpop.f32.mrb[0].mxu0
      %3093 = vdwg.mxu0
      %v3095 = vsel %vm476, %v414, 0
      %v3098 = vsel %vm480, %v2928, 0
      %3100 = vmatprep.subr.mxu0 0.0
      %3101 = vmatpush1.msra.mxu0 %v3098
      %3102 = vmatprep.subr.mxu0 0.0
      %3103 = vmatpush1.msra.mxu0 0.0
      %3104 = vmatprep.subr.mxu0 0.0
      %3105 = vmatpush1.msra.mxu0 0.0
      %3106 = vmatprep.subr.mxu0 0.0
      %3107 = vmatpush1.msra.mxu0 0.0
      %3108 = vmatprep.subr.mxu0 0.0
      %3109 = vmatpush1.msra.mxu0 0.0
      %3110 = vmatprep.subr.mxu0 0.0
      %3111 = vmatpush1.msra.mxu0 0.0
      %3112 = vmatprep.subr.mxu0 0.0
      %3113 = vmatpush1.msra.mxu0 0.0
      %3114 = vmatprep.subr.mxu0 0.0
      %3115 = vmatpush1.msra.mxu0 0.0
      %3116 = vmatprep.subr.mxu0 0.0
      %3117 = vmatpush1.msra.mxu0 0.0
      %3118 = vmatprep.subr.mxu0 0.0
      %3119 = vmatpush1.msra.mxu0 0.0
      %3120 = vmatprep.subr.mxu0 0.0
      %3121 = vmatpush1.msra.mxu0 0.0
      %3122 = vmatprep.subr.mxu0 0.0
      %3123 = vmatpush1.msra.mxu0 0.0
      %3124 = vmatprep.subr.mxu0 0.0
      %3125 = vmatpush1.msra.mxu0 0.0
      %3126 = vmatprep.subr.mxu0 0.0
      %3127 = vmatpush1.msra.mxu0 0.0
      %3128 = vmatprep.subr.mxu0 0.0
      %3129 = vmatpush1.msra.mxu0 0.0
      %3130 = vmatprep.subr.mxu0 0.0
      %3131 = vmatpush1.msra.mxu0 0.0
      %3132 = vmatprep.subr.mxu0 0.0
      %3133 = vmatpush1.msra.mxu0 0.0
      %3134 = vmatprep.subr.mxu0 0.0
      %3135 = vmatpush1.msra.mxu0 0.0
      %3136 = vmatprep.subr.mxu0 0.0
      %3137 = vmatpush1.msra.mxu0 0.0
      %3138 = vmatprep.subr.mxu0 0.0
      %3139 = vmatpush1.msra.mxu0 0.0
      %3140 = vmatprep.subr.mxu0 0.0
      %3141 = vmatpush1.msra.mxu0 0.0
      %3142 = vmatprep.subr.mxu0 0.0
      %3143 = vmatpush1.msra.mxu0 0.0
      %3144 = vmatprep.subr.mxu0 0.0
      %3145 = vmatpush1.msra.mxu0 0.0
      %3146 = vmatprep.subr.mxu0 0.0
      %3147 = vmatpush1.msra.mxu0 0.0
      %3148 = vmatprep.subr.mxu0 0.0
      %3149 = vmatpush1.msra.mxu0 0.0
      %3150 = vmatprep.subr.mxu0 0.0
      %3151 = vmatpush1.msra.mxu0 0.0
      %3152 = vmatprep.subr.mxu0 0.0
      %3153 = vmatpush1.msra.mxu0 0.0
      %3154 = vmatprep.subr.mxu0 0.0
      %3155 = vmatpush1.msra.mxu0 0.0
      %3156 = vmatprep.subr.mxu0 0.0
      %3157 = vmatpush1.msra.mxu0 0.0
      %3158 = vmatprep.subr.mxu0 0.0
      %3159 = vmatpush1.msra.mxu0 0.0
      %3160 = vmatprep.subr.mxu0 0.0
      %3161 = vmatpush1.msra.mxu0 0.0
      %3162 = vmatprep.subr.mxu0 0.0
      %3163 = vmatpush1.msra.mxu0 0.0
      %3164 = vmatprep.mubr.f32.mxu0 0.0
      %3165 = vmatmul.mubr.f32.gmra.mrb[0].mxu0 %v3095
      %v3166 = vpop.f32.mrb[0].mxu0
      %v3167 = vadd.f32 0.0, %v3166
      %v3168 = vpop.f32.mrb[0].mxu0
      %3169 = vdwg.mxu0
      %v3171 = vsel %vm476, %v415, 0
      %v3174 = vsel %vm480, %v2929, 0
      %3176 = vmatprep.subr.mxu0 0.0
      %3177 = vmatpush1.msra.mxu0 %v3174
      %3178 = vmatprep.subr.mxu0 0.0
      %3179 = vmatpush1.msra.mxu0 0.0
      %3180 = vmatprep.subr.mxu0 0.0
      %3181 = vmatpush1.msra.mxu0 0.0
      %3182 = vmatprep.subr.mxu0 0.0
      %3183 = vmatpush1.msra.mxu0 0.0
      %3184 = vmatprep.subr.mxu0 0.0
      %3185 = vmatpush1.msra.mxu0 0.0
      %3186 = vmatprep.subr.mxu0 0.0
      %3187 = vmatpush1.msra.mxu0 0.0
      %3188 = vmatprep.subr.mxu0 0.0
      %3189 = vmatpush1.msra.mxu0 0.0
      %3190 = vmatprep.subr.mxu0 0.0
      %3191 = vmatpush1.msra.mxu0 0.0
      %3192 = vmatprep.subr.mxu0 0.0
      %3193 = vmatpush1.msra.mxu0 0.0
      %3194 = vmatprep.subr.mxu0 0.0
      %3195 = vmatpush1.msra.mxu0 0.0
      %3196 = vmatprep.subr.mxu0 0.0
      %3197 = vmatpush1.msra.mxu0 0.0
      %3198 = vmatprep.subr.mxu0 0.0
      %3199 = vmatpush1.msra.mxu0 0.0
      %3200 = vmatprep.subr.mxu0 0.0
      %3201 = vmatpush1.msra.mxu0 0.0
      %3202 = vmatprep.subr.mxu0 0.0
      %3203 = vmatpush1.msra.mxu0 0.0
      %3204 = vmatprep.subr.mxu0 0.0
      %3205 = vmatpush1.msra.mxu0 0.0
      %3206 = vmatprep.subr.mxu0 0.0
      %3207 = vmatpush1.msra.mxu0 0.0
      %3208 = vmatprep.subr.mxu0 0.0
      %3209 = vmatpush1.msra.mxu0 0.0
      %3210 = vmatprep.subr.mxu0 0.0
      %3211 = vmatpush1.msra.mxu0 0.0
      %3212 = vmatprep.subr.mxu0 0.0
      %3213 = vmatpush1.msra.mxu0 0.0
      %3214 = vmatprep.subr.mxu0 0.0
      %3215 = vmatpush1.msra.mxu0 0.0
      %3216 = vmatprep.subr.mxu0 0.0
      %3217 = vmatpush1.msra.mxu0 0.0
      %3218 = vmatprep.subr.mxu0 0.0
      %3219 = vmatpush1.msra.mxu0 0.0
      %3220 = vmatprep.subr.mxu0 0.0
      %3221 = vmatpush1.msra.mxu0 0.0
      %3222 = vmatprep.subr.mxu0 0.0
      %3223 = vmatpush1.msra.mxu0 0.0
      %3224 = vmatprep.subr.mxu0 0.0
      %3225 = vmatpush1.msra.mxu0 0.0
      %3226 = vmatprep.subr.mxu0 0.0
      %3227 = vmatpush1.msra.mxu0 0.0
      %3228 = vmatprep.subr.mxu0 0.0
      %3229 = vmatpush1.msra.mxu0 0.0
      %3230 = vmatprep.subr.mxu0 0.0
      %3231 = vmatpush1.msra.mxu0 0.0
      %3232 = vmatprep.subr.mxu0 0.0
      %3233 = vmatpush1.msra.mxu0 0.0
      %3234 = vmatprep.subr.mxu0 0.0
      %3235 = vmatpush1.msra.mxu0 0.0
      %3236 = vmatprep.subr.mxu0 0.0
      %3237 = vmatpush1.msra.mxu0 0.0
      %3238 = vmatprep.subr.mxu0 0.0
      %3239 = vmatpush1.msra.mxu0 0.0
      %3240 = vmatprep.mubr.f32.mxu0 0.0
      %3241 = vmatmul.mubr.f32.gmra.mrb[0].mxu0 %v3171
      %v3242 = vpop.f32.mrb[0].mxu0
      %v3243 = vadd.f32 0.0, %v3242
      %v3244 = vpop.f32.mrb[0].mxu0
      %3245 = vdwg.mxu0
      %v3247 = vsel %vm476, %v416, 0
      %v3250 = vsel %vm480, %v2930, 0
      %3252 = vmatprep.subr.mxu0 0.0
      %3253 = vmatpush1.msra.mxu0 %v3250
      %3254 = vmatprep.subr.mxu0 0.0
      %3255 = vmatpush1.msra.mxu0 0.0
      %3256 = vmatprep.subr.mxu0 0.0
      %3257 = vmatpush1.msra.mxu0 0.0
      %3258 = vmatprep.subr.mxu0 0.0
      %3259 = vmatpush1.msra.mxu0 0.0
      %3260 = vmatprep.subr.mxu0 0.0
      %3261 = vmatpush1.msra.mxu0 0.0
      %3262 = vmatprep.subr.mxu0 0.0
      %3263 = vmatpush1.msra.mxu0 0.0
      %3264 = vmatprep.subr.mxu0 0.0
      %3265 = vmatpush1.msra.mxu0 0.0
      %3266 = vmatprep.subr.mxu0 0.0
      %3267 = vmatpush1.msra.mxu0 0.0
      %3268 = vmatprep.subr.mxu0 0.0
      %3269 = vmatpush1.msra.mxu0 0.0
      %3270 = vmatprep.subr.mxu0 0.0
      %3271 = vmatpush1.msra.mxu0 0.0
      %3272 = vmatprep.subr.mxu0 0.0
      %3273 = vmatpush1.msra.mxu0 0.0
      %3274 = vmatprep.subr.mxu0 0.0
      %3275 = vmatpush1.msra.mxu0 0.0
      %3276 = vmatprep.subr.mxu0 0.0
      %3277 = vmatpush1.msra.mxu0 0.0
      %3278 = vmatprep.subr.mxu0 0.0
      %3279 = vmatpush1.msra.mxu0 0.0
      %3280 = vmatprep.subr.mxu0 0.0
      %3281 = vmatpush1.msra.mxu0 0.0
      %3282 = vmatprep.subr.mxu0 0.0
      %3283 = vmatpush1.msra.mxu0 0.0
      %3284 = vmatprep.subr.mxu0 0.0
      %3285 = vmatpush1.msra.mxu0 0.0
      %3286 = vmatprep.subr.mxu0 0.0
      %3287 = vmatpush1.msra.mxu0 0.0
      %3288 = vmatprep.subr.mxu0 0.0
      %3289 = vmatpush1.msra.mxu0 0.0
      %3290 = vmatprep.subr.mxu0 0.0
      %3291 = vmatpush1.msra.mxu0 0.0
      %3292 = vmatprep.subr.mxu0 0.0
      %3293 = vmatpush1.msra.mxu0 0.0
      %3294 = vmatprep.subr.mxu0 0.0
      %3295 = vmatpush1.msra.mxu0 0.0
      %3296 = vmatprep.subr.mxu0 0.0
      %3297 = vmatpush1.msra.mxu0 0.0
      %3298 = vmatprep.subr.mxu0 0.0
      %3299 = vmatpush1.msra.mxu0 0.0
      %3300 = vmatprep.subr.mxu0 0.0
      %3301 = vmatpush1.msra.mxu0 0.0
      %3302 = vmatprep.subr.mxu0 0.0
      %3303 = vmatpush1.msra.mxu0 0.0
      %3304 = vmatprep.subr.mxu0 0.0
      %3305 = vmatpush1.msra.mxu0 0.0
      %3306 = vmatprep.subr.mxu0 0.0
      %3307 = vmatpush1.msra.mxu0 0.0
      %3308 = vmatprep.subr.mxu0 0.0
      %3309 = vmatpush1.msra.mxu0 0.0
      %3310 = vmatprep.subr.mxu0 0.0
      %3311 = vmatpush1.msra.mxu0 0.0
      %3312 = vmatprep.subr.mxu0 0.0
      %3313 = vmatpush1.msra.mxu0 0.0
      %3314 = vmatprep.subr.mxu0 0.0
      %3315 = vmatpush1.msra.mxu0 0.0
      %3316 = vmatprep.mubr.f32.mxu0 0.0
      %3317 = vmatmul.mubr.f32.gmra.mrb[0].mxu0 %v3247
      %v3318 = vpop.f32.mrb[0].mxu0
      %v3319 = vadd.f32 0.0, %v3318
      %v3320 = vpop.f32.mrb[0].mxu0
      %3321 = vdwg.mxu0
      %v3323 = vsel %vm476, %v417, 0
      %v3326 = vsel %vm480, %v2931, 0
      %3328 = vmatprep.subr.mxu0 0.0
      %3329 = vmatpush1.msra.mxu0 %v3326
      %3330 = vmatprep.subr.mxu0 0.0
      %3331 = vmatpush1.msra.mxu0 0.0
      %3332 = vmatprep.subr.mxu0 0.0
      %3333 = vmatpush1.msra.mxu0 0.0
      %3334 = vmatprep.subr.mxu0 0.0
      %3335 = vmatpush1.msra.mxu0 0.0
      %3336 = vmatprep.subr.mxu0 0.0
      %3337 = vmatpush1.msra.mxu0 0.0
      %3338 = vmatprep.subr.mxu0 0.0
      %3339 = vmatpush1.msra.mxu0 0.0
      %3340 = vmatprep.subr.mxu0 0.0
      %3341 = vmatpush1.msra.mxu0 0.0
      %3342 = vmatprep.subr.mxu0 0.0
      %3343 = vmatpush1.msra.mxu0 0.0
      %3344 = vmatprep.subr.mxu0 0.0
      %3345 = vmatpush1.msra.mxu0 0.0
      %3346 = vmatprep.subr.mxu0 0.0
      %3347 = vmatpush1.msra.mxu0 0.0
      %3348 = vmatprep.subr.mxu0 0.0
      %3349 = vmatpush1.msra.mxu0 0.0
      %3350 = vmatprep.subr.mxu0 0.0
      %3351 = vmatpush1.msra.mxu0 0.0
      %3352 = vmatprep.subr.mxu0 0.0
      %3353 = vmatpush1.msra.mxu0 0.0
      %3354 = vmatprep.subr.mxu0 0.0
      %3355 = vmatpush1.msra.mxu0 0.0
      %3356 = vmatprep.subr.mxu0 0.0
      %3357 = vmatpush1.msra.mxu0 0.0
      %3358 = vmatprep.subr.mxu0 0.0
      %3359 = vmatpush1.msra.mxu0 0.0
      %3360 = vmatprep.subr.mxu0 0.0
      %3361 = vmatpush1.msra.mxu0 0.0
      %3362 = vmatprep.subr.mxu0 0.0
      %3363 = vmatpush1.msra.mxu0 0.0
      %3364 = vmatprep.subr.mxu0 0.0
      %3365 = vmatpush1.msra.mxu0 0.0
      %3366 = vmatprep.subr.mxu0 0.0
      %3367 = vmatpush1.msra.mxu0 0.0
      %3368 = vmatprep.subr.mxu0 0.0
      %3369 = vmatpush1.msra.mxu0 0.0
      %3370 = vmatprep.subr.mxu0 0.0
      %3371 = vmatpush1.msra.mxu0 0.0
      %3372 = vmatprep.subr.mxu0 0.0
      %3373 = vmatpush1.msra.mxu0 0.0
      %3374 = vmatprep.subr.mxu0 0.0
      %3375 = vmatpush1.msra.mxu0 0.0
      %3376 = vmatprep.subr.mxu0 0.0
      %3377 = vmatpush1.msra.mxu0 0.0
      %3378 = vmatprep.subr.mxu0 0.0
      %3379 = vmatpush1.msra.mxu0 0.0
      %3380 = vmatprep.subr.mxu0 0.0
      %3381 = vmatpush1.msra.mxu0 0.0
      %3382 = vmatprep.subr.mxu0 0.0
      %3383 = vmatpush1.msra.mxu0 0.0
      %3384 = vmatprep.subr.mxu0 0.0
      %3385 = vmatpush1.msra.mxu0 0.0
      %3386 = vmatprep.subr.mxu0 0.0
      %3387 = vmatpush1.msra.mxu0 0.0
      %3388 = vmatprep.subr.mxu0 0.0
      %3389 = vmatpush1.msra.mxu0 0.0
      %3390 = vmatprep.subr.mxu0 0.0
      %3391 = vmatpush1.msra.mxu0 0.0
      %3392 = vmatprep.mubr.f32.mxu0 0.0
      %3393 = vmatmul.mubr.f32.gmra.mrb[0].mxu0 %v3323
      %v3394 = vpop.f32.mrb[0].mxu0
      %v3395 = vadd.f32 0.0, %v3394
      %v3396 = vpop.f32.mrb[0].mxu0
      %3397 = vdwg.mxu0
      %v3399 = vsel %vm476, %v418, 0
      %v3402 = vsel %vm480, %v2932, 0
      %3404 = vmatprep.subr.mxu0 0.0
      %3405 = vmatpush1.msra.mxu0 %v3402
      %3406 = vmatprep.subr.mxu0 0.0
      %3407 = vmatpush1.msra.mxu0 0.0
      %3408 = vmatprep.subr.mxu0 0.0
      %3409 = vmatpush1.msra.mxu0 0.0
      %3410 = vmatprep.subr.mxu0 0.0
      %3411 = vmatpush1.msra.mxu0 0.0
      %3412 = vmatprep.subr.mxu0 0.0
      %3413 = vmatpush1.msra.mxu0 0.0
      %3414 = vmatprep.subr.mxu0 0.0
      %3415 = vmatpush1.msra.mxu0 0.0
      %3416 = vmatprep.subr.mxu0 0.0
      %3417 = vmatpush1.msra.mxu0 0.0
      %3418 = vmatprep.subr.mxu0 0.0
      %3419 = vmatpush1.msra.mxu0 0.0
      %3420 = vmatprep.subr.mxu0 0.0
      %3421 = vmatpush1.msra.mxu0 0.0
      %3422 = vmatprep.subr.mxu0 0.0
      %3423 = vmatpush1.msra.mxu0 0.0
      %3424 = vmatprep.subr.mxu0 0.0
      %3425 = vmatpush1.msra.mxu0 0.0
      %3426 = vmatprep.subr.mxu0 0.0
      %3427 = vmatpush1.msra.mxu0 0.0
      %3428 = vmatprep.subr.mxu0 0.0
      %3429 = vmatpush1.msra.mxu0 0.0
      %3430 = vmatprep.subr.mxu0 0.0
      %3431 = vmatpush1.msra.mxu0 0.0
      %3432 = vmatprep.subr.mxu0 0.0
      %3433 = vmatpush1.msra.mxu0 0.0
      %3434 = vmatprep.subr.mxu0 0.0
      %3435 = vmatpush1.msra.mxu0 0.0
      %3436 = vmatprep.subr.mxu0 0.0
      %3437 = vmatpush1.msra.mxu0 0.0
      %3438 = vmatprep.subr.mxu0 0.0
      %3439 = vmatpush1.msra.mxu0 0.0
      %3440 = vmatprep.subr.mxu0 0.0
      %3441 = vmatpush1.msra.mxu0 0.0
      %3442 = vmatprep.subr.mxu0 0.0
      %3443 = vmatpush1.msra.mxu0 0.0
      %3444 = vmatprep.subr.mxu0 0.0
      %3445 = vmatpush1.msra.mxu0 0.0
      %3446 = vmatprep.subr.mxu0 0.0
      %3447 = vmatpush1.msra.mxu0 0.0
      %3448 = vmatprep.subr.mxu0 0.0
      %3449 = vmatpush1.msra.mxu0 0.0
      %3450 = vmatprep.subr.mxu0 0.0
      %3451 = vmatpush1.msra.mxu0 0.0
      %3452 = vmatprep.subr.mxu0 0.0
      %3453 = vmatpush1.msra.mxu0 0.0
      %3454 = vmatprep.subr.mxu0 0.0
      %3455 = vmatpush1.msra.mxu0 0.0
      %3456 = vmatprep.subr.mxu0 0.0
      %3457 = vmatpush1.msra.mxu0 0.0
      %3458 = vmatprep.subr.mxu0 0.0
      %3459 = vmatpush1.msra.mxu0 0.0
      %3460 = vmatprep.subr.mxu0 0.0
      %3461 = vmatpush1.msra.mxu0 0.0
      %3462 = vmatprep.subr.mxu0 0.0
      %3463 = vmatpush1.msra.mxu0 0.0
      %3464 = vmatprep.subr.mxu0 0.0
      %3465 = vmatpush1.msra.mxu0 0.0
      %3466 = vmatprep.subr.mxu0 0.0
      %3467 = vmatpush1.msra.mxu0 0.0
      %3468 = vmatprep.mubr.f32.mxu0 0.0
      %3469 = vmatmul.mubr.f32.gmra.mrb[0].mxu0 %v3399
      %v3470 = vpop.f32.mrb[0].mxu0
      %v3471 = vadd.f32 0.0, %v3470
      %v3472 = vpop.f32.mrb[0].mxu0
      %3473 = vdwg.mxu0
      %v3475 = vsel %vm476, %v419, 0
      %v3478 = vsel %vm480, %v2933, 0
      %3480 = vmatprep.subr.mxu0 0.0
      %3481 = vmatpush1.msra.mxu0 %v3478
      %3482 = vmatprep.subr.mxu0 0.0
      %3483 = vmatpush1.msra.mxu0 0.0
      %3484 = vmatprep.subr.mxu0 0.0
      %3485 = vmatpush1.msra.mxu0 0.0
      %3486 = vmatprep.subr.mxu0 0.0
      %3487 = vmatpush1.msra.mxu0 0.0
      %3488 = vmatprep.subr.mxu0 0.0
      %3489 = vmatpush1.msra.mxu0 0.0
      %3490 = vmatprep.subr.mxu0 0.0
      %3491 = vmatpush1.msra.mxu0 0.0
      %3492 = vmatprep.subr.mxu0 0.0
      %3493 = vmatpush1.msra.mxu0 0.0
      %3494 = vmatprep.subr.mxu0 0.0
      %3495 = vmatpush1.msra.mxu0 0.0
      %3496 = vmatprep.subr.mxu0 0.0
      %3497 = vmatpush1.msra.mxu0 0.0
      %3498 = vmatprep.subr.mxu0 0.0
      %3499 = vmatpush1.msra.mxu0 0.0
      %3500 = vmatprep.subr.mxu0 0.0
      %3501 = vmatpush1.msra.mxu0 0.0
      %3502 = vmatprep.subr.mxu0 0.0
      %3503 = vmatpush1.msra.mxu0 0.0
      %3504 = vmatprep.subr.mxu0 0.0
      %3505 = vmatpush1.msra.mxu0 0.0
      %3506 = vmatprep.subr.mxu0 0.0
      %3507 = vmatpush1.msra.mxu0 0.0
      %3508 = vmatprep.subr.mxu0 0.0
      %3509 = vmatpush1.msra.mxu0 0.0
      %3510 = vmatprep.subr.mxu0 0.0
      %3511 = vmatpush1.msra.mxu0 0.0
      %3512 = vmatprep.subr.mxu0 0.0
      %3513 = vmatpush1.msra.mxu0 0.0
      %3514 = vmatprep.subr.mxu0 0.0
      %3515 = vmatpush1.msra.mxu0 0.0
      %3516 = vmatprep.subr.mxu0 0.0
      %3517 = vmatpush1.msra.mxu0 0.0
      %3518 = vmatprep.subr.mxu0 0.0
      %3519 = vmatpush1.msra.mxu0 0.0
      %3520 = vmatprep.subr.mxu0 0.0
      %3521 = vmatpush1.msra.mxu0 0.0
      %3522 = vmatprep.subr.mxu0 0.0
      %3523 = vmatpush1.msra.mxu0 0.0
      %3524 = vmatprep.subr.mxu0 0.0
      %3525 = vmatpush1.msra.mxu0 0.0
      %3526 = vmatprep.subr.mxu0 0.0
      %3527 = vmatpush1.msra.mxu0 0.0
      %3528 = vmatprep.subr.mxu0 0.0
      %3529 = vmatpush1.msra.mxu0 0.0
      %3530 = vmatprep.subr.mxu0 0.0
      %3531 = vmatpush1.msra.mxu0 0.0
      %3532 = vmatprep.subr.mxu0 0.0
      %3533 = vmatpush1.msra.mxu0 0.0
      %3534 = vmatprep.subr.mxu0 0.0
      %3535 = vmatpush1.msra.mxu0 0.0
      %3536 = vmatprep.subr.mxu0 0.0
      %3537 = vmatpush1.msra.mxu0 0.0
      %3538 = vmatprep.subr.mxu0 0.0
      %3539 = vmatpush1.msra.mxu0 0.0
      %3540 = vmatprep.subr.mxu0 0.0
      %3541 = vmatpush1.msra.mxu0 0.0
      %3542 = vmatprep.subr.mxu0 0.0
      %3543 = vmatpush1.msra.mxu0 0.0
      %3544 = vmatprep.mubr.f32.mxu0 0.0
      %3545 = vmatmul.mubr.f32.gmra.mrb[0].mxu0 %v3475
      %v3546 = vpop.f32.mrb[0].mxu0
      %v3547 = vadd.f32 0.0, %v3546
      %v3548 = vpop.f32.mrb[0].mxu0
      %3549 = vdwg.mxu0
      %v3551 = vsel %vm476, %v420, 0
      %v3554 = vsel %vm480, %v2934, 0
      %3556 = vmatprep.subr.mxu0 0.0
      %3557 = vmatpush1.msra.mxu0 %v3554
      %3558 = vmatprep.subr.mxu0 0.0
      %3559 = vmatpush1.msra.mxu0 0.0
      %3560 = vmatprep.subr.mxu0 0.0
      %3561 = vmatpush1.msra.mxu0 0.0
      %3562 = vmatprep.subr.mxu0 0.0
      %3563 = vmatpush1.msra.mxu0 0.0
      %3564 = vmatprep.subr.mxu0 0.0
      %3565 = vmatpush1.msra.mxu0 0.0
      %3566 = vmatprep.subr.mxu0 0.0
      %3567 = vmatpush1.msra.mxu0 0.0
      %3568 = vmatprep.subr.mxu0 0.0
      %3569 = vmatpush1.msra.mxu0 0.0
      %3570 = vmatprep.subr.mxu0 0.0
      %3571 = vmatpush1.msra.mxu0 0.0
      %3572 = vmatprep.subr.mxu0 0.0
      %3573 = vmatpush1.msra.mxu0 0.0
      %3574 = vmatprep.subr.mxu0 0.0
      %3575 = vmatpush1.msra.mxu0 0.0
      %3576 = vmatprep.subr.mxu0 0.0
      %3577 = vmatpush1.msra.mxu0 0.0
      %3578 = vmatprep.subr.mxu0 0.0
      %3579 = vmatpush1.msra.mxu0 0.0
      %3580 = vmatprep.subr.mxu0 0.0
      %3581 = vmatpush1.msra.mxu0 0.0
      %3582 = vmatprep.subr.mxu0 0.0
      %3583 = vmatpush1.msra.mxu0 0.0
      %3584 = vmatprep.subr.mxu0 0.0
      %3585 = vmatpush1.msra.mxu0 0.0
      %3586 = vmatprep.subr.mxu0 0.0
      %3587 = vmatpush1.msra.mxu0 0.0
      %3588 = vmatprep.subr.mxu0 0.0
      %3589 = vmatpush1.msra.mxu0 0.0
      %3590 = vmatprep.subr.mxu0 0.0
      %3591 = vmatpush1.msra.mxu0 0.0
      %3592 = vmatprep.subr.mxu0 0.0
      %3593 = vmatpush1.msra.mxu0 0.0
      %3594 = vmatprep.subr.mxu0 0.0
      %3595 = vmatpush1.msra.mxu0 0.0
      %3596 = vmatprep.subr.mxu0 0.0
      %3597 = vmatpush1.msra.mxu0 0.0
      %3598 = vmatprep.subr.mxu0 0.0
      %3599 = vmatpush1.msra.mxu0 0.0
      %3600 = vmatprep.subr.mxu0 0.0
      %3601 = vmatpush1.msra.mxu0 0.0
      %3602 = vmatprep.subr.mxu0 0.0
      %3603 = vmatpush1.msra.mxu0 0.0
      %3604 = vmatprep.subr.mxu0 0.0
      %3605 = vmatpush1.msra.mxu0 0.0
      %3606 = vmatprep.subr.mxu0 0.0
      %3607 = vmatpush1.msra.mxu0 0.0
      %3608 = vmatprep.subr.mxu0 0.0
      %3609 = vmatpush1.msra.mxu0 0.0
      %3610 = vmatprep.subr.mxu0 0.0
      %3611 = vmatpush1.msra.mxu0 0.0
      %3612 = vmatprep.subr.mxu0 0.0
      %3613 = vmatpush1.msra.mxu0 0.0
      %3614 = vmatprep.subr.mxu0 0.0
      %3615 = vmatpush1.msra.mxu0 0.0
      %3616 = vmatprep.subr.mxu0 0.0
      %3617 = vmatpush1.msra.mxu0 0.0
      %3618 = vmatprep.subr.mxu0 0.0
      %3619 = vmatpush1.msra.mxu0 0.0
      %3620 = vmatprep.mubr.f32.mxu0 0.0
      %3621 = vmatmul.mubr.f32.gmra.mrb[0].mxu0 %v3551
      %v3622 = vpop.f32.mrb[0].mxu0
      %v3623 = vadd.f32 0.0, %v3622
      %v3624 = vpop.f32.mrb[0].mxu0
      %3625 = vdwg.mxu0
      %v3627 = vsel %vm476, %v421, 0
      %v3630 = vsel %vm480, %v2935, 0
      %3632 = vmatprep.subr.mxu0 0.0
      %3633 = vmatpush1.msra.mxu0 %v3630
      %3634 = vmatprep.subr.mxu0 0.0
      %3635 = vmatpush1.msra.mxu0 0.0
      %3636 = vmatprep.subr.mxu0 0.0
      %3637 = vmatpush1.msra.mxu0 0.0
      %3638 = vmatprep.subr.mxu0 0.0
      %3639 = vmatpush1.msra.mxu0 0.0
      %3640 = vmatprep.subr.mxu0 0.0
      %3641 = vmatpush1.msra.mxu0 0.0
      %3642 = vmatprep.subr.mxu0 0.0
      %3643 = vmatpush1.msra.mxu0 0.0
      %3644 = vmatprep.subr.mxu0 0.0
      %3645 = vmatpush1.msra.mxu0 0.0
      %3646 = vmatprep.subr.mxu0 0.0
      %3647 = vmatpush1.msra.mxu0 0.0
      %3648 = vmatprep.subr.mxu0 0.0
      %3649 = vmatpush1.msra.mxu0 0.0
      %3650 = vmatprep.subr.mxu0 0.0
      %3651 = vmatpush1.msra.mxu0 0.0
      %3652 = vmatprep.subr.mxu0 0.0
      %3653 = vmatpush1.msra.mxu0 0.0
      %3654 = vmatprep.subr.mxu0 0.0
      %3655 = vmatpush1.msra.mxu0 0.0
      %3656 = vmatprep.subr.mxu0 0.0
      %3657 = vmatpush1.msra.mxu0 0.0
      %3658 = vmatprep.subr.mxu0 0.0
      %3659 = vmatpush1.msra.mxu0 0.0
      %3660 = vmatprep.subr.mxu0 0.0
      %3661 = vmatpush1.msra.mxu0 0.0
      %3662 = vmatprep.subr.mxu0 0.0
      %3663 = vmatpush1.msra.mxu0 0.0
      %3664 = vmatprep.subr.mxu0 0.0
      %3665 = vmatpush1.msra.mxu0 0.0
      %3666 = vmatprep.subr.mxu0 0.0
      %3667 = vmatpush1.msra.mxu0 0.0
      %3668 = vmatprep.subr.mxu0 0.0
      %3669 = vmatpush1.msra.mxu0 0.0
      %3670 = vmatprep.subr.mxu0 0.0
      %3671 = vmatpush1.msra.mxu0 0.0
      %3672 = vmatprep.subr.mxu0 0.0
      %3673 = vmatpush1.msra.mxu0 0.0
      %3674 = vmatprep.subr.mxu0 0.0
      %3675 = vmatpush1.msra.mxu0 0.0
      %3676 = vmatprep.subr.mxu0 0.0
      %3677 = vmatpush1.msra.mxu0 0.0
      %3678 = vmatprep.subr.mxu0 0.0
      %3679 = vmatpush1.msra.mxu0 0.0
      %3680 = vmatprep.subr.mxu0 0.0
      %3681 = vmatpush1.msra.mxu0 0.0
      %3682 = vmatprep.subr.mxu0 0.0
      %3683 = vmatpush1.msra.mxu0 0.0
      %3684 = vmatprep.subr.mxu0 0.0
      %3685 = vmatpush1.msra.mxu0 0.0
      %3686 = vmatprep.subr.mxu0 0.0
      %3687 = vmatpush1.msra.mxu0 0.0
      %3688 = vmatprep.subr.mxu0 0.0
      %3689 = vmatpush1.msra.mxu0 0.0
      %3690 = vmatprep.subr.mxu0 0.0
      %3691 = vmatpush1.msra.mxu0 0.0
      %3692 = vmatprep.subr.mxu0 0.0
      %3693 = vmatpush1.msra.mxu0 0.0
      %3694 = vmatprep.subr.mxu0 0.0
      %3695 = vmatpush1.msra.mxu0 0.0
      %3696 = vmatprep.mubr.f32.mxu0 0.0
      %3697 = vmatmul.mubr.f32.gmra.mrb[0].mxu0 %v3627
      %v3698 = vpop.f32.mrb[0].mxu0
      %v3699 = vadd.f32 0.0, %v3698
      %v3700 = vpop.f32.mrb[0].mxu0
      %3701 = vdwg.mxu0
      %v3703 = vsel %vm476, %v422, 0
      %v3706 = vsel %vm480, %v2936, 0
      %3708 = vmatprep.subr.mxu0 0.0
      %3709 = vmatpush1.msra.mxu0 %v3706
      %3710 = vmatprep.subr.mxu0 0.0
      %3711 = vmatpush1.msra.mxu0 0.0
      %3712 = vmatprep.subr.mxu0 0.0
      %3713 = vmatpush1.msra.mxu0 0.0
      %3714 = vmatprep.subr.mxu0 0.0
      %3715 = vmatpush1.msra.mxu0 0.0
      %3716 = vmatprep.subr.mxu0 0.0
      %3717 = vmatpush1.msra.mxu0 0.0
      %3718 = vmatprep.subr.mxu0 0.0
      %3719 = vmatpush1.msra.mxu0 0.0
      %3720 = vmatprep.subr.mxu0 0.0
      %3721 = vmatpush1.msra.mxu0 0.0
      %3722 = vmatprep.subr.mxu0 0.0
      %3723 = vmatpush1.msra.mxu0 0.0
      %3724 = vmatprep.subr.mxu0 0.0
      %3725 = vmatpush1.msra.mxu0 0.0
      %3726 = vmatprep.subr.mxu0 0.0
      %3727 = vmatpush1.msra.mxu0 0.0
      %3728 = vmatprep.subr.mxu0 0.0
      %3729 = vmatpush1.msra.mxu0 0.0
      %3730 = vmatprep.subr.mxu0 0.0
      %3731 = vmatpush1.msra.mxu0 0.0
      %3732 = vmatprep.subr.mxu0 0.0
      %3733 = vmatpush1.msra.mxu0 0.0
      %3734 = vmatprep.subr.mxu0 0.0
      %3735 = vmatpush1.msra.mxu0 0.0
      %3736 = vmatprep.subr.mxu0 0.0
      %3737 = vmatpush1.msra.mxu0 0.0
      %3738 = vmatprep.subr.mxu0 0.0
      %3739 = vmatpush1.msra.mxu0 0.0
      %3740 = vmatprep.subr.mxu0 0.0
      %3741 = vmatpush1.msra.mxu0 0.0
      %3742 = vmatprep.subr.mxu0 0.0
      %3743 = vmatpush1.msra.mxu0 0.0
      %3744 = vmatprep.subr.mxu0 0.0
      %3745 = vmatpush1.msra.mxu0 0.0
      %3746 = vmatprep.subr.mxu0 0.0
      %3747 = vmatpush1.msra.mxu0 0.0
      %3748 = vmatprep.subr.mxu0 0.0
      %3749 = vmatpush1.msra.mxu0 0.0
      %3750 = vmatprep.subr.mxu0 0.0
      %3751 = vmatpush1.msra.mxu0 0.0
      %3752 = vmatprep.subr.mxu0 0.0
      %3753 = vmatpush1.msra.mxu0 0.0
      %3754 = vmatprep.subr.mxu0 0.0
      %3755 = vmatpush1.msra.mxu0 0.0
      %3756 = vmatprep.subr.mxu0 0.0
      %3757 = vmatpush1.msra.mxu0 0.0
      %3758 = vmatprep.subr.mxu0 0.0
      %3759 = vmatpush1.msra.mxu0 0.0
      %3760 = vmatprep.subr.mxu0 0.0
      %3761 = vmatpush1.msra.mxu0 0.0
      %3762 = vmatprep.subr.mxu0 0.0
      %3763 = vmatpush1.msra.mxu0 0.0
      %3764 = vmatprep.subr.mxu0 0.0
      %3765 = vmatpush1.msra.mxu0 0.0
      %3766 = vmatprep.subr.mxu0 0.0
      %3767 = vmatpush1.msra.mxu0 0.0
      %3768 = vmatprep.subr.mxu0 0.0
      %3769 = vmatpush1.msra.mxu0 0.0
      %3770 = vmatprep.subr.mxu0 0.0
      %3771 = vmatpush1.msra.mxu0 0.0
      %3772 = vmatprep.mubr.f32.mxu0 0.0
      %3773 = vmatmul.mubr.f32.gmra.mrb[0].mxu0 %v3703
      %v3774 = vpop.f32.mrb[0].mxu0
      %v3775 = vadd.f32 0.0, %v3774
      %v3776 = vpop.f32.mrb[0].mxu0
      %3777 = vdwg.mxu0
      %v3779 = vsel %vm476, %v423, 0
      %v3782 = vsel %vm480, %v2937, 0
      %3784 = vmatprep.subr.mxu0 0.0
      %3785 = vmatpush1.msra.mxu0 %v3782
      %3786 = vmatprep.subr.mxu0 0.0
      %3787 = vmatpush1.msra.mxu0 0.0
      %3788 = vmatprep.subr.mxu0 0.0
      %3789 = vmatpush1.msra.mxu0 0.0
      %3790 = vmatprep.subr.mxu0 0.0
      %3791 = vmatpush1.msra.mxu0 0.0
      %3792 = vmatprep.subr.mxu0 0.0
      %3793 = vmatpush1.msra.mxu0 0.0
      %3794 = vmatprep.subr.mxu0 0.0
      %3795 = vmatpush1.msra.mxu0 0.0
      %3796 = vmatprep.subr.mxu0 0.0
      %3797 = vmatpush1.msra.mxu0 0.0
      %3798 = vmatprep.subr.mxu0 0.0
      %3799 = vmatpush1.msra.mxu0 0.0
      %3800 = vmatprep.subr.mxu0 0.0
      %3801 = vmatpush1.msra.mxu0 0.0
      %3802 = vmatprep.subr.mxu0 0.0
      %3803 = vmatpush1.msra.mxu0 0.0
      %3804 = vmatprep.subr.mxu0 0.0
      %3805 = vmatpush1.msra.mxu0 0.0
      %3806 = vmatprep.subr.mxu0 0.0
      %3807 = vmatpush1.msra.mxu0 0.0
      %3808 = vmatprep.subr.mxu0 0.0
      %3809 = vmatpush1.msra.mxu0 0.0
      %3810 = vmatprep.subr.mxu0 0.0
      %3811 = vmatpush1.msra.mxu0 0.0
      %3812 = vmatprep.subr.mxu0 0.0
      %3813 = vmatpush1.msra.mxu0 0.0
      %3814 = vmatprep.subr.mxu0 0.0
      %3815 = vmatpush1.msra.mxu0 0.0
      %3816 = vmatprep.subr.mxu0 0.0
      %3817 = vmatpush1.msra.mxu0 0.0
      %3818 = vmatprep.subr.mxu0 0.0
      %3819 = vmatpush1.msra.mxu0 0.0
      %3820 = vmatprep.subr.mxu0 0.0
      %3821 = vmatpush1.msra.mxu0 0.0
      %3822 = vmatprep.subr.mxu0 0.0
      %3823 = vmatpush1.msra.mxu0 0.0
      %3824 = vmatprep.subr.mxu0 0.0
      %3825 = vmatpush1.msra.mxu0 0.0
      %3826 = vmatprep.subr.mxu0 0.0
      %3827 = vmatpush1.msra.mxu0 0.0
      %3828 = vmatprep.subr.mxu0 0.0
      %3829 = vmatpush1.msra.mxu0 0.0
      %3830 = vmatprep.subr.mxu0 0.0
      %3831 = vmatpush1.msra.mxu0 0.0
      %3832 = vmatprep.subr.mxu0 0.0
      %3833 = vmatpush1.msra.mxu0 0.0
      %3834 = vmatprep.subr.mxu0 0.0
      %3835 = vmatpush1.msra.mxu0 0.0
      %3836 = vmatprep.subr.mxu0 0.0
      %3837 = vmatpush1.msra.mxu0 0.0
      %3838 = vmatprep.subr.mxu0 0.0
      %3839 = vmatpush1.msra.mxu0 0.0
      %3840 = vmatprep.subr.mxu0 0.0
      %3841 = vmatpush1.msra.mxu0 0.0
      %3842 = vmatprep.subr.mxu0 0.0
      %3843 = vmatpush1.msra.mxu0 0.0
      %3844 = vmatprep.subr.mxu0 0.0
      %3845 = vmatpush1.msra.mxu0 0.0
      %3846 = vmatprep.subr.mxu0 0.0
      %3847 = vmatpush1.msra.mxu0 0.0
      %3848 = vmatprep.mubr.f32.mxu0 0.0
      %3849 = vmatmul.mubr.f32.gmra.mrb[0].mxu0 %v3779
      %v3850 = vpop.f32.mrb[0].mxu0
      %v3851 = vadd.f32 0.0, %v3850
      %v3852 = vpop.f32.mrb[0].mxu0
      %3853 = vdwg.mxu0
      %v3855 = vsel %vm476, %v424, 0
      %v3858 = vsel %vm480, %v2938, 0
      %3860 = vmatprep.subr.mxu0 0.0
      %3861 = vmatpush1.msra.mxu0 %v3858
      %3862 = vmatprep.subr.mxu0 0.0
      %3863 = vmatpush1.msra.mxu0 0.0
      %3864 = vmatprep.subr.mxu0 0.0
      %3865 = vmatpush1.msra.mxu0 0.0
      %3866 = vmatprep.subr.mxu0 0.0
      %3867 = vmatpush1.msra.mxu0 0.0
      %3868 = vmatprep.subr.mxu0 0.0
      %3869 = vmatpush1.msra.mxu0 0.0
      %3870 = vmatprep.subr.mxu0 0.0
      %3871 = vmatpush1.msra.mxu0 0.0
      %3872 = vmatprep.subr.mxu0 0.0
      %3873 = vmatpush1.msra.mxu0 0.0
      %3874 = vmatprep.subr.mxu0 0.0
      %3875 = vmatpush1.msra.mxu0 0.0
      %3876 = vmatprep.subr.mxu0 0.0
      %3877 = vmatpush1.msra.mxu0 0.0
      %3878 = vmatprep.subr.mxu0 0.0
      %3879 = vmatpush1.msra.mxu0 0.0
      %3880 = vmatprep.subr.mxu0 0.0
      %3881 = vmatpush1.msra.mxu0 0.0
      %3882 = vmatprep.subr.mxu0 0.0
      %3883 = vmatpush1.msra.mxu0 0.0
      %3884 = vmatprep.subr.mxu0 0.0
      %3885 = vmatpush1.msra.mxu0 0.0
      %3886 = vmatprep.subr.mxu0 0.0
      %3887 = vmatpush1.msra.mxu0 0.0
      %3888 = vmatprep.subr.mxu0 0.0
      %3889 = vmatpush1.msra.mxu0 0.0
      %3890 = vmatprep.subr.mxu0 0.0
      %3891 = vmatpush1.msra.mxu0 0.0
      %3892 = vmatprep.subr.mxu0 0.0
      %3893 = vmatpush1.msra.mxu0 0.0
      %3894 = vmatprep.subr.mxu0 0.0
      %3895 = vmatpush1.msra.mxu0 0.0
      %3896 = vmatprep.subr.mxu0 0.0
      %3897 = vmatpush1.msra.mxu0 0.0
      %3898 = vmatprep.subr.mxu0 0.0
      %3899 = vmatpush1.msra.mxu0 0.0
      %3900 = vmatprep.subr.mxu0 0.0
      %3901 = vmatpush1.msra.mxu0 0.0
      %3902 = vmatprep.subr.mxu0 0.0
      %3903 = vmatpush1.msra.mxu0 0.0
      %3904 = vmatprep.subr.mxu0 0.0
      %3905 = vmatpush1.msra.mxu0 0.0
      %3906 = vmatprep.subr.mxu0 0.0
      %3907 = vmatpush1.msra.mxu0 0.0
      %3908 = vmatprep.subr.mxu0 0.0
      %3909 = vmatpush1.msra.mxu0 0.0
      %3910 = vmatprep.subr.mxu0 0.0
      %3911 = vmatpush1.msra.mxu0 0.0
      %3912 = vmatprep.subr.mxu0 0.0
      %3913 = vmatpush1.msra.mxu0 0.0
      %3914 = vmatprep.subr.mxu0 0.0
      %3915 = vmatpush1.msra.mxu0 0.0
      %3916 = vmatprep.subr.mxu0 0.0
      %3917 = vmatpush1.msra.mxu0 0.0
      %3918 = vmatprep.subr.mxu0 0.0
      %3919 = vmatpush1.msra.mxu0 0.0
      %3920 = vmatprep.subr.mxu0 0.0
      %3921 = vmatpush1.msra.mxu0 0.0
      %3922 = vmatprep.subr.mxu0 0.0
      %3923 = vmatpush1.msra.mxu0 0.0
      %3924 = vmatprep.mubr.f32.mxu0 0.0
      %3925 = vmatmul.mubr.f32.gmra.mrb[0].mxu0 %v3855
      %v3926 = vpop.f32.mrb[0].mxu0
      %v3927 = vadd.f32 0.0, %v3926
      %v3928 = vpop.f32.mrb[0].mxu0
      %3929 = vdwg.mxu0
      %v3931 = vsel %vm476, %v425, 0
      %v3934 = vsel %vm480, %v2939, 0
      %3936 = vmatprep.subr.mxu0 0.0
      %3937 = vmatpush1.msra.mxu0 %v3934
      %3938 = vmatprep.subr.mxu0 0.0
      %3939 = vmatpush1.msra.mxu0 0.0
      %3940 = vmatprep.subr.mxu0 0.0
      %3941 = vmatpush1.msra.mxu0 0.0
      %3942 = vmatprep.subr.mxu0 0.0
      %3943 = vmatpush1.msra.mxu0 0.0
      %3944 = vmatprep.subr.mxu0 0.0
      %3945 = vmatpush1.msra.mxu0 0.0
      %3946 = vmatprep.subr.mxu0 0.0
      %3947 = vmatpush1.msra.mxu0 0.0
      %3948 = vmatprep.subr.mxu0 0.0
      %3949 = vmatpush1.msra.mxu0 0.0
      %3950 = vmatprep.subr.mxu0 0.0
      %3951 = vmatpush1.msra.mxu0 0.0
      %3952 = vmatprep.subr.mxu0 0.0
      %3953 = vmatpush1.msra.mxu0 0.0
      %3954 = vmatprep.subr.mxu0 0.0
      %3955 = vmatpush1.msra.mxu0 0.0
      %3956 = vmatprep.subr.mxu0 0.0
      %3957 = vmatpush1.msra.mxu0 0.0
      %3958 = vmatprep.subr.mxu0 0.0
      %3959 = vmatpush1.msra.mxu0 0.0
      %3960 = vmatprep.subr.mxu0 0.0
      %3961 = vmatpush1.msra.mxu0 0.0
      %3962 = vmatprep.subr.mxu0 0.0
      %3963 = vmatpush1.msra.mxu0 0.0
      %3964 = vmatprep.subr.mxu0 0.0
      %3965 = vmatpush1.msra.mxu0 0.0
      %3966 = vmatprep.subr.mxu0 0.0
      %3967 = vmatpush1.msra.mxu0 0.0
      %3968 = vmatprep.subr.mxu0 0.0
      %3969 = vmatpush1.msra.mxu0 0.0
      %3970 = vmatprep.subr.mxu0 0.0
      %3971 = vmatpush1.msra.mxu0 0.0
      %3972 = vmatprep.subr.mxu0 0.0
      %3973 = vmatpush1.msra.mxu0 0.0
      %3974 = vmatprep.subr.mxu0 0.0
      %3975 = vmatpush1.msra.mxu0 0.0
      %3976 = vmatprep.subr.mxu0 0.0
      %3977 = vmatpush1.msra.mxu0 0.0
      %3978 = vmatprep.subr.mxu0 0.0
      %3979 = vmatpush1.msra.mxu0 0.0
      %3980 = vmatprep.subr.mxu0 0.0
      %3981 = vmatpush1.msra.mxu0 0.0
      %3982 = vmatprep.subr.mxu0 0.0
      %3983 = vmatpush1.msra.mxu0 0.0
      %3984 = vmatprep.subr.mxu0 0.0
      %3985 = vmatpush1.msra.mxu0 0.0
      %3986 = vmatprep.subr.mxu0 0.0
      %3987 = vmatpush1.msra.mxu0 0.0
      %3988 = vmatprep.subr.mxu0 0.0
      %3989 = vmatpush1.msra.mxu0 0.0
      %3990 = vmatprep.subr.mxu0 0.0
      %3991 = vmatpush1.msra.mxu0 0.0
      %3992 = vmatprep.subr.mxu0 0.0
      %3993 = vmatpush1.msra.mxu0 0.0
      %3994 = vmatprep.subr.mxu0 0.0
      %3995 = vmatpush1.msra.mxu0 0.0
      %3996 = vmatprep.subr.mxu0 0.0
      %3997 = vmatpush1.msra.mxu0 0.0
      %3998 = vmatprep.subr.mxu0 0.0
      %3999 = vmatpush1.msra.mxu0 0.0
      %4000 = vmatprep.mubr.f32.mxu0 0.0
      %4001 = vmatmul.mubr.f32.gmra.mrb[0].mxu0 %v3931
      %v4002 = vpop.f32.mrb[0].mxu0
      %v4003 = vadd.f32 0.0, %v4002
      %v4004 = vpop.f32.mrb[0].mxu0
      %4005 = vdwg.mxu0
      %v4007 = vsel %vm476, %v426, 0
      %v4010 = vsel %vm480, %v2940, 0
      %4012 = vmatprep.subr.mxu0 0.0
      %4013 = vmatpush1.msra.mxu0 %v4010
      %4014 = vmatprep.subr.mxu0 0.0
      %4015 = vmatpush1.msra.mxu0 0.0
      %4016 = vmatprep.subr.mxu0 0.0
      %4017 = vmatpush1.msra.mxu0 0.0
      %4018 = vmatprep.subr.mxu0 0.0
      %4019 = vmatpush1.msra.mxu0 0.0
      %4020 = vmatprep.subr.mxu0 0.0
      %4021 = vmatpush1.msra.mxu0 0.0
      %4022 = vmatprep.subr.mxu0 0.0
      %4023 = vmatpush1.msra.mxu0 0.0
      %4024 = vmatprep.subr.mxu0 0.0
      %4025 = vmatpush1.msra.mxu0 0.0
      %4026 = vmatprep.subr.mxu0 0.0
      %4027 = vmatpush1.msra.mxu0 0.0
      %4028 = vmatprep.subr.mxu0 0.0
      %4029 = vmatpush1.msra.mxu0 0.0
      %4030 = vmatprep.subr.mxu0 0.0
      %4031 = vmatpush1.msra.mxu0 0.0
      %4032 = vmatprep.subr.mxu0 0.0
      %4033 = vmatpush1.msra.mxu0 0.0
      %4034 = vmatprep.subr.mxu0 0.0
      %4035 = vmatpush1.msra.mxu0 0.0
      %4036 = vmatprep.subr.mxu0 0.0
      %4037 = vmatpush1.msra.mxu0 0.0
      %4038 = vmatprep.subr.mxu0 0.0
      %4039 = vmatpush1.msra.mxu0 0.0
      %4040 = vmatprep.subr.mxu0 0.0
      %4041 = vmatpush1.msra.mxu0 0.0
      %4042 = vmatprep.subr.mxu0 0.0
      %4043 = vmatpush1.msra.mxu0 0.0
      %4044 = vmatprep.subr.mxu0 0.0
      %4045 = vmatpush1.msra.mxu0 0.0
      %4046 = vmatprep.subr.mxu0 0.0
      %4047 = vmatpush1.msra.mxu0 0.0
      %4048 = vmatprep.subr.mxu0 0.0
      %4049 = vmatpush1.msra.mxu0 0.0
      %4050 = vmatprep.subr.mxu0 0.0
      %4051 = vmatpush1.msra.mxu0 0.0
      %4052 = vmatprep.subr.mxu0 0.0
      %4053 = vmatpush1.msra.mxu0 0.0
      %4054 = vmatprep.subr.mxu0 0.0
      %4055 = vmatpush1.msra.mxu0 0.0
      %4056 = vmatprep.subr.mxu0 0.0
      %4057 = vmatpush1.msra.mxu0 0.0
      %4058 = vmatprep.subr.mxu0 0.0
      %4059 = vmatpush1.msra.mxu0 0.0
      %4060 = vmatprep.subr.mxu0 0.0
      %4061 = vmatpush1.msra.mxu0 0.0
      %4062 = vmatprep.subr.mxu0 0.0
      %4063 = vmatpush1.msra.mxu0 0.0
      %4064 = vmatprep.subr.mxu0 0.0
      %4065 = vmatpush1.msra.mxu0 0.0
      %4066 = vmatprep.subr.mxu0 0.0
      %4067 = vmatpush1.msra.mxu0 0.0
      %4068 = vmatprep.subr.mxu0 0.0
      %4069 = vmatpush1.msra.mxu0 0.0
      %4070 = vmatprep.subr.mxu0 0.0
      %4071 = vmatpush1.msra.mxu0 0.0
      %4072 = vmatprep.subr.mxu0 0.0
      %4073 = vmatpush1.msra.mxu0 0.0
      %4074 = vmatprep.subr.mxu0 0.0
      %4075 = vmatpush1.msra.mxu0 0.0
      %4076 = vmatprep.mubr.f32.mxu0 0.0
      %4077 = vmatmul.mubr.f32.gmra.mrb[0].mxu0 %v4007
      %v4078 = vpop.f32.mrb[0].mxu0
      %v4079 = vadd.f32 0.0, %v4078
      %v4080 = vpop.f32.mrb[0].mxu0
      %4081 = vdwg.mxu0
      %v4083 = vsel %vm476, %v427, 0
      %v4086 = vsel %vm480, %v2941, 0
      %4088 = vmatprep.subr.mxu0 0.0
      %4089 = vmatpush1.msra.mxu0 %v4086
      %4090 = vmatprep.subr.mxu0 0.0
      %4091 = vmatpush1.msra.mxu0 0.0
      %4092 = vmatprep.subr.mxu0 0.0
      %4093 = vmatpush1.msra.mxu0 0.0
      %4094 = vmatprep.subr.mxu0 0.0
      %4095 = vmatpush1.msra.mxu0 0.0
      %4096 = vmatprep.subr.mxu0 0.0
      %4097 = vmatpush1.msra.mxu0 0.0
      %4098 = vmatprep.subr.mxu0 0.0
      %4099 = vmatpush1.msra.mxu0 0.0
      %4100 = vmatprep.subr.mxu0 0.0
      %4101 = vmatpush1.msra.mxu0 0.0
      %4102 = vmatprep.subr.mxu0 0.0
      %4103 = vmatpush1.msra.mxu0 0.0
      %4104 = vmatprep.subr.mxu0 0.0
      %4105 = vmatpush1.msra.mxu0 0.0
      %4106 = vmatprep.subr.mxu0 0.0
      %4107 = vmatpush1.msra.mxu0 0.0
      %4108 = vmatprep.subr.mxu0 0.0
      %4109 = vmatpush1.msra.mxu0 0.0
      %4110 = vmatprep.subr.mxu0 0.0
      %4111 = vmatpush1.msra.mxu0 0.0
      %4112 = vmatprep.subr.mxu0 0.0
      %4113 = vmatpush1.msra.mxu0 0.0
      %4114 = vmatprep.subr.mxu0 0.0
      %4115 = vmatpush1.msra.mxu0 0.0
      %4116 = vmatprep.subr.mxu0 0.0
      %4117 = vmatpush1.msra.mxu0 0.0
      %4118 = vmatprep.subr.mxu0 0.0
      %4119 = vmatpush1.msra.mxu0 0.0
      %4120 = vmatprep.subr.mxu0 0.0
      %4121 = vmatpush1.msra.mxu0 0.0
      %4122 = vmatprep.subr.mxu0 0.0
      %4123 = vmatpush1.msra.mxu0 0.0
      %4124 = vmatprep.subr.mxu0 0.0
      %4125 = vmatpush1.msra.mxu0 0.0
      %4126 = vmatprep.subr.mxu0 0.0
      %4127 = vmatpush1.msra.mxu0 0.0
      %4128 = vmatprep.subr.mxu0 0.0
      %4129 = vmatpush1.msra.mxu0 0.0
      %4130 = vmatprep.subr.mxu0 0.0
      %4131 = vmatpush1.msra.mxu0 0.0
      %4132 = vmatprep.subr.mxu0 0.0
      %4133 = vmatpush1.msra.mxu0 0.0
      %4134 = vmatprep.subr.mxu0 0.0
      %4135 = vmatpush1.msra.mxu0 0.0
      %4136 = vmatprep.subr.mxu0 0.0
      %4137 = vmatpush1.msra.mxu0 0.0
      %4138 = vmatprep.subr.mxu0 0.0
      %4139 = vmatpush1.msra.mxu0 0.0
      %4140 = vmatprep.subr.mxu0 0.0
      %4141 = vmatpush1.msra.mxu0 0.0
      %4142 = vmatprep.subr.mxu0 0.0
      %4143 = vmatpush1.msra.mxu0 0.0
      %4144 = vmatprep.subr.mxu0 0.0
      %4145 = vmatpush1.msra.mxu0 0.0
      %4146 = vmatprep.subr.mxu0 0.0
      %4147 = vmatpush1.msra.mxu0 0.0
      %4148 = vmatprep.subr.mxu0 0.0
      %4149 = vmatpush1.msra.mxu0 0.0
      %4150 = vmatprep.subr.mxu0 0.0
      %4151 = vmatpush1.msra.mxu0 0.0
      %4152 = vmatprep.mubr.f32.mxu0 0.0
      %4153 = vmatmul.mubr.f32.gmra.mrb[0].mxu0 %v4083
      %v4154 = vpop.f32.mrb[0].mxu0
      %v4155 = vadd.f32 0.0, %v4154
      %v4156 = vpop.f32.mrb[0].mxu0
      %4157 = vdwg.mxu0
      %v4158 = vsub.f32 %v551, %v3015
      %v4159 = vsub.f32 %v627, %v3091
      %v4160 = vsub.f32 %v703, %v3167
      %v4161 = vsub.f32 %v779, %v3243
      %v4162 = vsub.f32 %v855, %v3319
      %v4163 = vsub.f32 %v931, %v3395
      %v4164 = vsub.f32 %v1007, %v3471
      %v4165 = vsub.f32 %v1083, %v3547
      %v4166 = vsub.f32 %v1159, %v3623
      %v4167 = vsub.f32 %v1235, %v3699
      %v4168 = vsub.f32 %v1311, %v3775
      %v4169 = vsub.f32 %v1387, %v3851
      %v4170 = vsub.f32 %v1463, %v3927
      %v4171 = vsub.f32 %v1539, %v4003
      %v4172 = vsub.f32 %v1615, %v4079
      %v4173 = vsub.f32 %v1691, %v4155
      %vm4174 = vcmask 25600
      %4175 = vst.msk [vmem:[%s384] sm:$0x3] %vm4174, %v4158
      %4176 = vst.msk [vmem:[%s384 + $0x2] sm:$0x3] %vm4174, %v4159
      %4177 = vst.msk [vmem:[%s384 + $0x4] sm:$0x3] %vm4174, %v4160
      %4178 = vst.msk [vmem:[%s384 + $0x6] sm:$0x3] %vm4174, %v4161
      %4179 = vst.msk [vmem:[%s384 + $0x8] sm:$0x3] %vm4174, %v4162
      %4180 = vst.msk [vmem:[%s384 + $0xa] sm:$0x3] %vm4174, %v4163
      %4181 = vst.msk [vmem:[%s384 + $0xc] sm:$0x3] %vm4174, %v4164
      %4182 = vst.msk [vmem:[%s384 + $0xe] sm:$0x3] %vm4174, %v4165
      %4183 = vst.msk [vmem:[%s384 + $0x10] sm:$0x3] %vm4174, %v4166
      %4184 = vst.msk [vmem:[%s384 + $0x12] sm:$0x3] %vm4174, %v4167
      %4185 = vst.msk [vmem:[%s384 + $0x14] sm:$0x3] %vm4174, %v4168
      %4186 = vst.msk [vmem:[%s384 + $0x16] sm:$0x3] %vm4174, %v4169
      %4187 = vst.msk [vmem:[%s384 + $0x18] sm:$0x3] %vm4174, %v4170
      %4188 = vst.msk [vmem:[%s384 + $0x1a] sm:$0x3] %vm4174, %v4171
      %4189 = vst.msk [vmem:[%s384 + $0x1c] sm:$0x3] %vm4174, %v4172
      %4190 = vst.msk [vmem:[%s384 + $0x1e] sm:$0x3] %vm4174, %v4173
      %v4191 = vadd.f32 %v551, %v1783
      %v4192 = vadd.f32 %v627, %v1859
      %v4193 = vadd.f32 %v703, %v1935
      %v4194 = vadd.f32 %v779, %v2011
      %v4195 = vadd.f32 %v855, %v2087
      %v4196 = vadd.f32 %v931, %v2163
      %v4197 = vadd.f32 %v1007, %v2239
      %v4198 = vadd.f32 %v1083, %v2315
      %v4199 = vadd.f32 %v1159, %v2391
      %v4200 = vadd.f32 %v1235, %v2467
      %v4201 = vadd.f32 %v1311, %v2543
      %v4202 = vadd.f32 %v1387, %v2619
      %v4203 = vadd.f32 %v1463, %v2695
      %v4204 = vadd.f32 %v1539, %v2771
      %v4205 = vadd.f32 %v1615, %v2847
      %v4206 = vadd.f32 %v1691, %v2923
      %4207 = vst.msk [vmem:[%s394] sm:$0x3] %vm4174, %v4191
      %4208 = vst.msk [vmem:[%s394 + $0x2] sm:$0x3] %vm4174, %v4192
      %4209 = vst.msk [vmem:[%s394 + $0x4] sm:$0x3] %vm4174, %v4193
      %4210 = vst.msk [vmem:[%s394 + $0x6] sm:$0x3] %vm4174, %v4194
      %4211 = vst.msk [vmem:[%s394 + $0x8] sm:$0x3] %vm4174, %v4195
      %4212 = vst.msk [vmem:[%s394 + $0xa] sm:$0x3] %vm4174, %v4196
      %4213 = vst.msk [vmem:[%s394 + $0xc] sm:$0x3] %vm4174, %v4197
      %4214 = vst.msk [vmem:[%s394 + $0xe] sm:$0x3] %vm4174, %v4198
      %4215 = vst.msk [vmem:[%s394 + $0x10] sm:$0x3] %vm4174, %v4199
      %4216 = vst.msk [vmem:[%s394 + $0x12] sm:$0x3] %vm4174, %v4200
      %4217 = vst.msk [vmem:[%s394 + $0x14] sm:$0x3] %vm4174, %v4201
      %4218 = vst.msk [vmem:[%s394 + $0x16] sm:$0x3] %vm4174, %v4202
      %4219 = vst.msk [vmem:[%s394 + $0x18] sm:$0x3] %vm4174, %v4203
      %4220 = vst.msk [vmem:[%s394 + $0x1a] sm:$0x3] %vm4174, %v4204
      %4221 = vst.msk [vmem:[%s394 + $0x1c] sm:$0x3] %vm4174, %v4205
      %4222 = vst.msk [vmem:[%s394 + $0x1e] sm:$0x3] %vm4174, %v4206
      %s4223 = smul.u32 16, %s22
      %p4224 = scmp.lt.s32.totalorder %s21, 1
      %s4225 = scalar_select %p4224, %s21, 1
      %p4226 = scmp.lt.s32.totalorder %s4223, 15
      %s4227 = scalar_select %p4226, %s4223, 15
      %s4228 = smul.addr %s4225, 16
      %s4229 = sadd.s32 %s4227, %s4228
      %s4230 = smul.addr %s4229, 2
      %s4231 = scalar_lea.vmem %s4, %s4230
      %s4232 = smul.u32 16, %s22
      %p4233 = scmp.lt.s32.totalorder %s21, 1
      %s4234 = scalar_select %p4233, %s21, 1
      %p4235 = scmp.lt.s32.totalorder %s4232, 15
      %s4236 = scalar_select %p4235, %s4232, 15
      %s4237 = smul.addr %s4234, 16
      %s4238 = sadd.s32 %s4236, %s4237
      %s4239 = smul.addr %s4238, 2
      %s4240 = scalar_lea.vmem %s5, %s4239
      // Predicated region
      $region37: #{_lambda_.1} parent=35 // pred_check
        %p4241 = pneg %p161
      $region38: #{_lambda_.1} parent=35 // pred_check_branch
        %4243 = sbr.rel (%p4241) target = $region40
      $region39: #{_lambda_.1} parent=35 // pred_region
        %s4244 = smul.u32 16, %s22
      $region40: #{_lambda_.1} parent=35 // pred_fallthru
        _
      // Predicated region
      $region41: #{_lambda_.1} parent=35 // pred_check
        %p4245 = pneg %p189
      $region42: #{_lambda_.1} parent=35 // pred_check_branch
        %4247 = sbr.rel (%p4245) target = $region44
      $region43: #{_lambda_.1} parent=35 // pred_region
        %s4248 = smul.u32 16, %s22
      $region44: #{_lambda_.1} parent=35 // pred_fallthru
        _
    $region36: #{_lambda_.1} parent=5 // pred_fallthru
      _
    %p4249 = scmp.le.s32.totalorder 2, %s12
    // Predicated region
    $region45: #{_lambda_.1} parent=5 // pred_check
      %p4250 = pneg %p4249
    $region46: #{_lambda_.1} parent=5 // pred_check_branch
      %4252 = sbr.rel (%p4250) target = $region48
    $region47: #{_lambda_.1} parent=5 // pred_region
      %s4253 = ssub.s32 %s12, 2
      // Predicated region
      $region49: #{_lambda_.1} parent=47 // pred_check
        %p4254 = pneg %p167
      $region50: #{_lambda_.1} parent=47 // pred_check_branch
        %4256 = sbr.rel (%p4254) target = $region52
      $region51: #{_lambda_.1} parent=47 // pred_region
        %s4257 = smul.u32 16, %s24
        %p4258 = scmp.lt.s32.totalorder %s23, 1
        %s4259 = scalar_select %p4258, %s23, 1
        %p4260 = scmp.lt.s32.totalorder %s4257, 15
        %s4261 = scalar_select %p4260, %s4257, 15
        %s4262 = smul.addr %s4259, 16
        %s4263 = sadd.s32 %s4261, %s4262
        %s4264 = smul.addr %s4263, 2
        %s4265 = scalar_lea.vmem %s4, %s4264
      $region52: #{_lambda_.1} parent=47 // pred_fallthru
        _
      // Predicated region
      $region53: #{_lambda_.1} parent=47 // pred_check
        %p4266 = pneg %p195
      $region54: #{_lambda_.1} parent=47 // pred_check_branch
        %4268 = sbr.rel (%p4266) target = $region56
      $region55: #{_lambda_.1} parent=47 // pred_region
        %s4269 = smul.u32 16, %s24
        %p4270 = scmp.lt.s32.totalorder %s23, 1
        %s4271 = scalar_select %p4270, %s23, 1
        %p4272 = scmp.lt.s32.totalorder %s4269, 15
        %s4273 = scalar_select %p4272, %s4269, 15
        %s4274 = smul.addr %s4271, 16
        %s4275 = sadd.s32 %s4273, %s4274
        %s4276 = smul.addr %s4275, 2
        %s4277 = scalar_lea.vmem %s5, %s4276
      $region56: #{_lambda_.1} parent=47 // pred_fallthru
        _
    $region48: #{_lambda_.1} parent=5 // pred_fallthru
      _
  $region6: #{_lambda_.1} parent=0 // loop_footer
    %s16 = sadd.s32 1, %s12
  $region7: #{_lambda_.1} parent=0 // loop_footer_branch
    %11 = sbr.rel target = $region3
  $region8: #{_lambda_.1} parent=0 // loop_exit
    _

</llo_original>
